<compile_context>
chip_gen: v7x
topology: tpu7x:2x2x1
jax: 0.10.0
libtpu: 0.0.40
codegen_flags: <defaults>
</compile_context>

<pallas_src>
import functools

import jax
import jax.numpy as jnp
from jax import lax
from jax.experimental import pallas as pl
from jax.experimental.pallas import tpu as pltpu

BN_EPS = 1e-5


def _residual_block_kernel(x_ref, w1_ref, s1_ref, b1_ref,
                           w2_ref, s2_ref, b2_ref, o_ref,
                           act_ref, shift_ref, acc_ref, *, use_residual):
    """Grid = (batch, repeat). One (H, W, C) image per step; repeat carried in VMEM."""
    H, W = o_ref.shape[1], o_ref.shape[2]
    Cmid = w1_ref.shape[-1]

    r = pl.program_id(1)

    # First repeat for this batch element: load the carried activation (f32).
    @pl.when(r == 0)
    def _():
        act_ref[...] = x_ref[0].astype(jnp.float32)

    # ---- CNNBlock #1: 1x1 conv (bf16 MXU, f32 acc) -> folded BN -> ReLU ----
    y1 = jnp.dot(act_ref[...].astype(jnp.bfloat16), w1_ref[0],
                 preferred_element_type=jnp.float32)              # (H, W, Cmid)
    y1 = jnp.maximum(y1 * s1_ref[0] + b1_ref[0], 0.0)

    # ---- CNNBlock #2: 3x3 conv (padding=1) -> folded BN -> ReLU ------------
    # shift_ref[kw][i, w, :] == y1[i - 1, w + kw - 1, :]  (zero when OOB).
    # Rows 0 and H+1 are the zero H-padding; only these 6 tiny rows are
    # (re)zeroed each step (the interior is fully overwritten below).
    zrow = jnp.zeros((3, 1, W, Cmid), shift_ref.dtype)
    shift_ref[:, 0:1] = zrow
    shift_ref[:, H + 1:H + 2] = zrow

    zcol = jnp.zeros((H, 1, Cmid), jnp.float32)
    left = jnp.concatenate([zcol, y1[:, :W - 1, :]], axis=1)      # kw = 0 tap
    right = jnp.concatenate([y1[:, 1:, :], zcol], axis=1)         # kw = 2 tap
    shift_ref[0, 1:H + 1] = left.astype(jnp.bfloat16)
    shift_ref[1, 1:H + 1] = y1.astype(jnp.bfloat16)
    shift_ref[2, 1:H + 1] = right.astype(jnp.bfloat16)

    # 9 shifted matmuls; windows slice only the leading (untiled) H axis,
    # accumulated into a f32 VMEM scratch (not a live value).
    for kh in range(3):
        for kw in range(3):
            window = shift_ref[kw, kh:kh + H]                     # (H, W, Cmid) bf16
            contrib = jnp.dot(window, w2_ref[0, kh, kw],
                              preferred_element_type=jnp.float32)  # (H, W, C)
            if kh == 0 and kw == 0:
                acc_ref[...] = contrib
            else:
                acc_ref[...] += contrib
    y2 = jnp.maximum(acc_ref[...] * s2_ref[0] + b2_ref[0], 0.0)

    # Residual add (re-read act_ref here instead of keeping x live across
    # both convs) and carry the result for the next repeat.
    out = act_ref[...] + y2 if use_residual else y2
    act_ref[...] = out

    @pl.when(r == pl.num_programs(1) - 1)
    def _():
        o_ref[0] = out.astype(o_ref.dtype)


def residual_block_forward(x_nchw, params, use_residual=True):
    """params: list (length num_repeats) of (w1, s1, b1, w2, s2, b2) f32 arrays.
       w1: (C, Cmid); w2: (3, 3, Cmid, C) HWIO; s*/b* folded BN scale/bias."""
    x = jnp.transpose(x_nchw, (0, 2, 3, 1)).astype(jnp.float32)   # NCHW -> NHWC
    B, H, W, C = x.shape
    Cmid = C // 2
    R = len(params)

    # Stack per-repeat parameters on a leading repeat axis (bf16 weights).
    w1 = jnp.stack([p[0] for p in params]).astype(jnp.bfloat16)         # (R, C, Cmid)
    s1 = jnp.stack([p[1] for p in params]).reshape(R, 1, Cmid)          # f32
    b1 = jnp.stack([p[2] for p in params]).reshape(R, 1, Cmid)
    w2 = jnp.stack([p[3] for p in params]).astype(jnp.bfloat16)         # (R, 3, 3, Cmid, C)
    s2 = jnp.stack([p[4] for p in params]).reshape(R, 1, C)
    b2 = jnp.stack([p[5] for p in params]).reshape(R, 1, C)

    kernel = functools.partial(_residual_block_kernel, use_residual=use_residual)

    def rep(shape):
        return pl.BlockSpec(shape, lambda b, r: (r,) + (0,) * (len(shape) - 1))

    out = pl.pallas_call(
        kernel,
        out_shape=jax.ShapeDtypeStruct((B, H, W, C), jnp.float32),
        grid_spec=pltpu.PrefetchScalarGridSpec(
            num_scalar_prefetch=0,
            grid=(B, R),                                   # repeat axis last
            in_specs=[
                pl.BlockSpec((1, H, W, C), lambda b, r: (b, 0, 0, 0)),  # x
                rep((1, C, Cmid)),                                      # w1 (bf16)
                rep((1, 1, Cmid)), rep((1, 1, Cmid)),                   # bn1 scale/bias
                rep((1, 3, 3, Cmid, C)),                                # w2 (bf16)
                rep((1, 1, C)), rep((1, 1, C)),                         # bn2 scale/bias
            ],
            out_specs=pl.BlockSpec((1, H, W, C), lambda b, r: (b, 0, 0, 0)),
            scratch_shapes=[
                pltpu.VMEM((H, W, C), jnp.float32),             # carried activation
                pltpu.VMEM((3, H + 2, W, Cmid), jnp.bfloat16),  # pre-shifted y1
                pltpu.VMEM((H, W, C), jnp.float32),             # 3x3 conv accumulator
            ],
        ),
        compiler_params=pltpu.CompilerParams(
            dimension_semantics=("parallel", "arbitrary"),
            vmem_limit_bytes=48 * 1024 * 1024),
    )(x, w1, s1, b1, w2, s2, b2)
    return jnp.transpose(out, (0, 3, 1, 2))                      # NHWC -> NCHW


# ----------------------------------------------------------------------
# deterministic parameter construction (folded BatchNorm, inference mode)
# ----------------------------------------------------------------------
def _fold_bn(gamma, beta, mean, var):
    scale = gamma / jnp.sqrt(var + BN_EPS)
    bias = beta - mean * scale
    return scale, bias


def make_params(key, channels, num_repeats):
    C, Cmid = channels, channels // 2
    params = []
    for _ in range(num_repeats):
        keys = jax.random.split(key, 11)
        key = keys[0]
        w1 = 0.2 * jax.random.normal(keys[1], (C, Cmid), jnp.float32)
        w2 = 0.2 * jax.random.normal(keys[2], (3, 3, Cmid, C), jnp.float32)
        g1 = 1.0 + 0.1 * jax.random.normal(keys[3], (Cmid,), jnp.float32)
        be1 = 0.1 * jax.random.normal(keys[4], (Cmid,), jnp.float32)
        m1 = 0.1 * jax.random.normal(keys[5], (Cmid,), jnp.float32)
        v1 = jnp.abs(jax.random.normal(keys[6], (Cmid,), jnp.float32)) + 0.5
        g2 = 1.0 + 0.1 * jax.random.normal(keys[7], (C,), jnp.float32)
        be2 = 0.1 * jax.random.normal(keys[8], (C,), jnp.float32)
        m2 = 0.1 * jax.random.normal(keys[9], (C,), jnp.float32)
        v2 = jnp.abs(jax.random.normal(keys[10], (C,), jnp.float32)) + 0.5
        s1, b1 = _fold_bn(g1, be1, m1, v1)
        s2, b2 = _fold_bn(g2, be2, m2, v2)
        params.append((w1, s1, b1, w2, s2, b2))
    return params


# ----------------------------------------------------------------------
# pure-JAX reference (same bf16-operand / f32-accumulate precision as kernel)
# ----------------------------------------------------------------------
def reference_forward(x_nchw, params, use_residual=True):
    x = jnp.transpose(x_nchw, (0, 2, 3, 1)).astype(jnp.float32)   # NHWC
    for (w1, s1, b1, w2, s2, b2) in params:
        y1 = jnp.einsum("bhwc,cm->bhwm", x.astype(jnp.bfloat16),
                        w1.astype(jnp.bfloat16),
                        preferred_element_type=jnp.float32)
        y1 = jnp.maximum(y1 * s1 + b1, 0.0)
        y2 = lax.conv_general_dilated(
            y1.astype(jnp.bfloat16), w2.astype(jnp.bfloat16),
            window_strides=(1, 1), padding=((1, 1), (1, 1)),
            dimension_numbers=("NHWC", "HWIO", "NHWC"),
            preferred_element_type=jnp.float32)
        y2 = jnp.maximum(y2 * s2 + b2, 0.0)
        x = x + y2 if use_residual else y2
    return jnp.transpose(x, (0, 3, 1, 2))


if __name__ == "__main__":
    B, C, H, W = 2, 4, 16, 16
    num_repeats = 2
    use_residual = True

    key = jax.random.PRNGKey(0)
    kx, kp = jax.random.split(key)
    x = jax.random.normal(kx, (B, C, H, W), jnp.float32)   # NCHW like PyTorch
    params = make_params(kp, C, num_repeats)

    out = jax.block_until_ready(residual_block_forward(x, params, use_residual))
    ref = jax.block_until_ready(reference_forward(x, params, use_residual))

    assert out.shape == (B, C, H, W)
    max_err = float(jnp.max(jnp.abs(out - ref)))
    assert jnp.allclose(out, ref, atol=2e-3, rtol=2e-3), max_err

    print("KERNEL_OK")
</pallas_src>

<mosaic_0001>
module attributes {stable_mosaic.version = 11 : i64} {
  func.func @_residual_block_kernel(%arg0: i32, %arg1: i32, %arg2: memref<1x16x16x4xf32, #tpu.memory_space<vmem>>, %arg3: memref<1x4x2xbf16, #tpu.memory_space<vmem>>, %arg4: memref<1x1x2xf32, #tpu.memory_space<vmem>>, %arg5: memref<1x1x2xf32, #tpu.memory_space<vmem>>, %arg6: memref<1x3x3x2x4xbf16, #tpu.memory_space<vmem>>, %arg7: memref<1x1x4xf32, #tpu.memory_space<vmem>>, %arg8: memref<1x1x4xf32, #tpu.memory_space<vmem>>, %arg9: memref<1x16x16x4xf32, #tpu.memory_space<vmem>>, %arg10: memref<16x16x4xf32, #tpu.memory_space<vmem>>, %arg11: memref<3x18x16x2xbf16, #tpu.memory_space<vmem>>, %arg12: memref<16x16x4xf32, #tpu.memory_space<vmem>>) attributes {dimension_semantics = [#tpu.dimension_semantics<parallel>, #tpu.dimension_semantics<arbitrary>], iteration_bounds = array<i64: 2, 2>, scalar_prefetch = 0 : i64, scratch_operands = 3 : i64, tpu.core_type = #tpu.core_type<tc>, window_params = [{transform_indices = @transform_0, window_bounds = array<i64: 1, 16, 16, 4>}, {transform_indices = @transform_1, window_bounds = array<i64: 1, 4, 2>}, {transform_indices = @transform_2, window_bounds = array<i64: 1, 1, 2>}, {transform_indices = @transform_3, window_bounds = array<i64: 1, 1, 2>}, {transform_indices = @transform_4, window_bounds = array<i64: 1, 3, 3, 2, 4>}, {transform_indices = @transform_5, window_bounds = array<i64: 1, 1, 4>}, {transform_indices = @transform_6, window_bounds = array<i64: 1, 1, 4>}, {transform_indices = @transform_7, window_bounds = array<i64: 1, 16, 16, 4>}]} {
    %c0_i32 = arith.constant 0 : i32
    %0 = arith.cmpi eq, %arg1, %c0_i32 : i32
    %1 = arith.extui %0 : i1 to i32
    %c0_i32_0 = arith.constant 0 : i32
    %2 = arith.cmpi ne, %1, %c0_i32_0 : i32
    scf.if %2 {
      %c0_190 = arith.constant 0 : index
      %c0_191 = arith.constant 0 : index
      %c0_192 = arith.constant 0 : index
      %c0_193 = arith.constant 0 : index
      %129 = vector.load %arg2[%c0_190, %c0_191, %c0_192, %c0_193] : memref<1x16x16x4xf32, #tpu.memory_space<vmem>>, vector<1x16x16x4xf32>
      %130 = vector.shape_cast %129 : vector<1x16x16x4xf32> to vector<16x16x4xf32>
      %c0_194 = arith.constant 0 : index
      %c0_195 = arith.constant 0 : index
      %c0_196 = arith.constant 0 : index
      %131 = vector.load %arg10[%c0_194, %c0_195, %c0_196] : memref<16x16x4xf32, #tpu.memory_space<vmem>>, vector<16x16x4xf32>
      tpu.vector_store %arg10[%c0_194, %c0_195, %c0_196], %130 {strides = array<i32>} : memref<16x16x4xf32, #tpu.memory_space<vmem>>, vector<16x16x4xf32>,
    } else {
    }
    %c0 = arith.constant 0 : index
    %c0_1 = arith.constant 0 : index
    %c0_2 = arith.constant 0 : index
    %3 = vector.load %arg10[%c0, %c0_1, %c0_2] : memref<16x16x4xf32, #tpu.memory_space<vmem>>, vector<16x16x4xf32>
    %4 = arith.truncf %3 : vector<16x16x4xf32> to vector<16x16x4xbf16>
    %c0_3 = arith.constant 0 : index
    %c0_4 = arith.constant 0 : index
    %c0_5 = arith.constant 0 : index
    %5 = vector.load %arg3[%c0_3, %c0_4, %c0_5] : memref<1x4x2xbf16, #tpu.memory_space<vmem>>, vector<1x4x2xbf16>
    %6 = vector.shape_cast %5 : vector<1x4x2xbf16> to vector<4x2xbf16>
    %cst = arith.constant dense<0.000000e+00> : vector<16x16x2xf32>
    %7 = tpu.matmul %4, %6, %cst {dimension_numbers = #tpu.dot_dimension_numbers<[2], [0], [0, 1], [1], [0, 0, 0, 1, 1, 1], [], []>} : vector<16x16x4xbf16>, vector<4x2xbf16>, vector<16x16x2xf32> -> vector<16x16x2xf32>
    %c0_6 = arith.constant 0 : index
    %c0_7 = arith.constant 0 : index
    %c0_8 = arith.constant 0 : index
    %8 = vector.load %arg4[%c0_6, %c0_7, %c0_8] : memref<1x1x2xf32, #tpu.memory_space<vmem>>, vector<1x1x2xf32>
    %9 = vector.shape_cast %8 : vector<1x1x2xf32> to vector<1x2xf32>
    %10 = vector.shape_cast %9 : vector<1x2xf32> to vector<1x1x2xf32>
    %11 = vector.broadcast %10 : vector<1x1x2xf32> to vector<16x16x2xf32>
    %12 = arith.mulf %7, %11 : vector<16x16x2xf32>
    %c0_9 = arith.constant 0 : index
    %c0_10 = arith.constant 0 : index
    %c0_11 = arith.constant 0 : index
    %13 = vector.load %arg5[%c0_9, %c0_10, %c0_11] : memref<1x1x2xf32, #tpu.memory_space<vmem>>, vector<1x1x2xf32>
    %14 = vector.shape_cast %13 : vector<1x1x2xf32> to vector<1x2xf32>
    %15 = vector.shape_cast %14 : vector<1x2xf32> to vector<1x1x2xf32>
    %16 = vector.broadcast %15 : vector<1x1x2xf32> to vector<16x16x2xf32>
    %17 = arith.addf %12, %16 : vector<16x16x2xf32>
    %cst_12 = arith.constant 0.000000e+00 : f32
    %18 = vector.broadcast %cst_12 : f32 to vector<16x16x2xf32>
    %19 = arith.maximumf %17, %18 : vector<16x16x2xf32>
    %cst_13 = arith.constant 0.000000e+00 : bf16
    %20 = vector.broadcast %cst_13 : bf16 to vector<3x1x16x2xbf16>
    %c0_14 = arith.constant 0 : index
    %c0_15 = arith.constant 0 : index
    %c0_16 = arith.constant 0 : index
    %c0_17 = arith.constant 0 : index
    %21 = vector.load %arg11[%c0_14, %c0_15, %c0_16, %c0_17] : memref<3x18x16x2xbf16, #tpu.memory_space<vmem>>, vector<3x1x16x2xbf16>
    tpu.vector_store %arg11[%c0_14, %c0_15, %c0_16, %c0_17], %20 {strides = array<i32>} : memref<3x18x16x2xbf16, #tpu.memory_space<vmem>>, vector<3x1x16x2xbf16>,
    %c0_18 = arith.constant 0 : index
    %c17 = arith.constant 17 : index
    %c0_19 = arith.constant 0 : index
    %c0_20 = arith.constant 0 : index
    %22 = vector.load %arg11[%c0_18, %c17, %c0_19, %c0_20] : memref<3x18x16x2xbf16, #tpu.memory_space<vmem>>, vector<3x1x16x2xbf16>
    tpu.vector_store %arg11[%c0_18, %c17, %c0_19, %c0_20], %20 {strides = array<i32>} : memref<3x18x16x2xbf16, #tpu.memory_space<vmem>>, vector<3x1x16x2xbf16>,
    %cst_21 = arith.constant 0.000000e+00 : f32
    %23 = vector.broadcast %cst_21 : f32 to vector<16x1x2xf32>
    %24 = vector.extract_strided_slice %19 {offsets = [0, 0, 0], sizes = [16, 15, 2], strides = [1, 1, 1]} : vector<16x16x2xf32> to vector<16x15x2xf32>
    %25 = tpu.concatenate %23, %24 in 1 : vector<16x1x2xf32>, vector<16x15x2xf32> -> vector<16x16x2xf32>
    %26 = vector.extract_strided_slice %19 {offsets = [0, 1, 0], sizes = [16, 15, 2], strides = [1, 1, 1]} : vector<16x16x2xf32> to vector<16x15x2xf32>
    %27 = tpu.concatenate %26, %23 in 1 : vector<16x15x2xf32>, vector<16x1x2xf32> -> vector<16x16x2xf32>
    %28 = arith.truncf %25 : vector<16x16x2xf32> to vector<16x16x2xbf16>
    %c0_22 = arith.constant 0 : index
    %c1 = arith.constant 1 : index
    %c0_23 = arith.constant 0 : index
    %c0_24 = arith.constant 0 : index
    %29 = vector.load %arg11[%c0_22, %c1, %c0_23, %c0_24] : memref<3x18x16x2xbf16, #tpu.memory_space<vmem>>, vector<1x16x16x2xbf16>
    %30 = vector.shape_cast %29 : vector<1x16x16x2xbf16> to vector<16x16x2xbf16>
    %31 = vector.shape_cast %28 : vector<16x16x2xbf16> to vector<1x16x16x2xbf16>
    tpu.vector_store %arg11[%c0_22, %c1, %c0_23, %c0_24], %31 {strides = array<i32>} : memref<3x18x16x2xbf16, #tpu.memory_space<vmem>>, vector<1x16x16x2xbf16>,
    %32 = arith.truncf %19 : vector<16x16x2xf32> to vector<16x16x2xbf16>
    %c1_25 = arith.constant 1 : index
    %c1_26 = arith.constant 1 : index
    %c0_27 = arith.constant 0 : index
    %c0_28 = arith.constant 0 : index
    %33 = vector.load %arg11[%c1_25, %c1_26, %c0_27, %c0_28] : memref<3x18x16x2xbf16, #tpu.memory_space<vmem>>, vector<1x16x16x2xbf16>
    %34 = vector.shape_cast %33 : vector<1x16x16x2xbf16> to vector<16x16x2xbf16>
    %35 = vector.shape_cast %32 : vector<16x16x2xbf16> to vector<1x16x16x2xbf16>
    tpu.vector_store %arg11[%c1_25, %c1_26, %c0_27, %c0_28], %35 {strides = array<i32>} : memref<3x18x16x2xbf16, #tpu.memory_space<vmem>>, vector<1x16x16x2xbf16>,
    %36 = arith.truncf %27 : vector<16x16x2xf32> to vector<16x16x2xbf16>
    %c2 = arith.constant 2 : index
    %c1_29 = arith.constant 1 : index
    %c0_30 = arith.constant 0 : index
    %c0_31 = arith.constant 0 : index
    %37 = vector.load %arg11[%c2, %c1_29, %c0_30, %c0_31] : memref<3x18x16x2xbf16, #tpu.memory_space<vmem>>, vector<1x16x16x2xbf16>
    %38 = vector.shape_cast %37 : vector<1x16x16x2xbf16> to vector<16x16x2xbf16>
    %39 = vector.shape_cast %36 : vector<16x16x2xbf16> to vector<1x16x16x2xbf16>
    tpu.vector_store %arg11[%c2, %c1_29, %c0_30, %c0_31], %39 {strides = array<i32>} : memref<3x18x16x2xbf16, #tpu.memory_space<vmem>>, vector<1x16x16x2xbf16>,
    %c0_32 = arith.constant 0 : index
    %c0_33 = arith.constant 0 : index
    %c0_34 = arith.constant 0 : index
    %c0_35 = arith.constant 0 : index
    %40 = vector.load %arg11[%c0_32, %c0_33, %c0_34, %c0_35] : memref<3x18x16x2xbf16, #tpu.memory_space<vmem>>, vector<1x16x16x2xbf16>
    %41 = vector.shape_cast %40 : vector<1x16x16x2xbf16> to vector<16x16x2xbf16>
    %c0_36 = arith.constant 0 : index
    %c0_37 = arith.constant 0 : index
    %c0_38 = arith.constant 0 : index
    %c0_39 = arith.constant 0 : index
    %c0_40 = arith.constant 0 : index
    %42 = vector.load %arg6[%c0_36, %c0_37, %c0_38, %c0_39, %c0_40] : memref<1x3x3x2x4xbf16, #tpu.memory_space<vmem>>, vector<1x1x1x2x4xbf16>
    %43 = vector.shape_cast %42 : vector<1x1x1x2x4xbf16> to vector<2x4xbf16>
    %cst_41 = arith.constant dense<0.000000e+00> : vector<16x16x4xf32>
    %44 = tpu.matmul %41, %43, %cst_41 {dimension_numbers = #tpu.dot_dimension_numbers<[2], [0], [0, 1], [1], [0, 0, 0, 1, 1, 1], [], []>} : vector<16x16x2xbf16>, vector<2x4xbf16>, vector<16x16x4xf32> -> vector<16x16x4xf32>
    %c0_42 = arith.constant 0 : index
    %c0_43 = arith.constant 0 : index
    %c0_44 = arith.constant 0 : index
    %45 = vector.load %arg12[%c0_42, %c0_43, %c0_44] : memref<16x16x4xf32, #tpu.memory_space<vmem>>, vector<16x16x4xf32>
    tpu.vector_store %arg12[%c0_42, %c0_43, %c0_44], %44 {strides = array<i32>} : memref<16x16x4xf32, #tpu.memory_space<vmem>>, vector<16x16x4xf32>,
    %c1_45 = arith.constant 1 : index
    %c0_46 = arith.constant 0 : index
    %c0_47 = arith.constant 0 : index
    %c0_48 = arith.constant 0 : index
    %46 = vector.load %arg11[%c1_45, %c0_46, %c0_47, %c0_48] : memref<3x18x16x2xbf16, #tpu.memory_space<vmem>>, vector<1x16x16x2xbf16>
    %47 = vector.shape_cast %46 : vector<1x16x16x2xbf16> to vector<16x16x2xbf16>
    %c0_49 = arith.constant 0 : index
    %c0_50 = arith.constant 0 : index
    %c1_51 = arith.constant 1 : index
    %c0_52 = arith.constant 0 : index
    %c0_53 = arith.constant 0 : index
    %48 = vector.load %arg6[%c0_49, %c0_50, %c1_51, %c0_52, %c0_53] : memref<1x3x3x2x4xbf16, #tpu.memory_space<vmem>>, vector<1x1x1x2x4xbf16>
    %49 = vector.shape_cast %48 : vector<1x1x1x2x4xbf16> to vector<2x4xbf16>
    %cst_54 = arith.constant dense<0.000000e+00> : vector<16x16x4xf32>
    %50 = tpu.matmul %47, %49, %cst_54 {dimension_numbers = #tpu.dot_dimension_numbers<[2], [0], [0, 1], [1], [0, 0, 0, 1, 1, 1], [], []>} : vector<16x16x2xbf16>, vector<2x4xbf16>, vector<16x16x4xf32> -> vector<16x16x4xf32>
    %c0_55 = arith.constant 0 : index
    %c0_56 = arith.constant 0 : index
    %c0_57 = arith.constant 0 : index
    %51 = vector.load %arg12[%c0_55, %c0_56, %c0_57] : memref<16x16x4xf32, #tpu.memory_space<vmem>>, vector<16x16x4xf32>
    %52 = arith.addf %51, %50 : vector<16x16x4xf32>
    %c0_58 = arith.constant 0 : index
    %c0_59 = arith.constant 0 : index
    %c0_60 = arith.constant 0 : index
    %53 = vector.load %arg12[%c0_58, %c0_59, %c0_60] : memref<16x16x4xf32, #tpu.memory_space<vmem>>, vector<16x16x4xf32>
    tpu.vector_store %arg12[%c0_58, %c0_59, %c0_60], %52 {strides = array<i32>} : memref<16x16x4xf32, #tpu.memory_space<vmem>>, vector<16x16x4xf32>,
    %c2_61 = arith.constant 2 : index
    %c0_62 = arith.constant 0 : index
    %c0_63 = arith.constant 0 : index
    %c0_64 = arith.constant 0 : index
    %54 = vector.load %arg11[%c2_61, %c0_62, %c0_63, %c0_64] : memref<3x18x16x2xbf16, #tpu.memory_space<vmem>>, vector<1x16x16x2xbf16>
    %55 = vector.shape_cast %54 : vector<1x16x16x2xbf16> to vector<16x16x2xbf16>
    %c0_65 = arith.constant 0 : index
    %c0_66 = arith.constant 0 : index
    %c2_67 = arith.constant 2 : index
    %c0_68 = arith.constant 0 : index
    %c0_69 = arith.constant 0 : index
    %56 = vector.load %arg6[%c0_65, %c0_66, %c2_67, %c0_68, %c0_69] : memref<1x3x3x2x4xbf16, #tpu.memory_space<vmem>>, vector<1x1x1x2x4xbf16>
    %57 = vector.shape_cast %56 : vector<1x1x1x2x4xbf16> to vector<2x4xbf16>
    %cst_70 = arith.constant dense<0.000000e+00> : vector<16x16x4xf32>
    %58 = tpu.matmul %55, %57, %cst_70 {dimension_numbers = #tpu.dot_dimension_numbers<[2], [0], [0, 1], [1], [0, 0, 0, 1, 1, 1], [], []>} : vector<16x16x2xbf16>, vector<2x4xbf16>, vector<16x16x4xf32> -> vector<16x16x4xf32>
    %c0_71 = arith.constant 0 : index
    %c0_72 = arith.constant 0 : index
    %c0_73 = arith.constant 0 : index
    %59 = vector.load %arg12[%c0_71, %c0_72, %c0_73] : memref<16x16x4xf32, #tpu.memory_space<vmem>>, vector<16x16x4xf32>
    %60 = arith.addf %59, %58 : vector<16x16x4xf32>
    %c0_74 = arith.constant 0 : index
    %c0_75 = arith.constant 0 : index
    %c0_76 = arith.constant 0 : index
    %61 = vector.load %arg12[%c0_74, %c0_75, %c0_76] : memref<16x16x4xf32, #tpu.memory_space<vmem>>, vector<16x16x4xf32>
    tpu.vector_store %arg12[%c0_74, %c0_75, %c0_76], %60 {strides = array<i32>} : memref<16x16x4xf32, #tpu.memory_space<vmem>>, vector<16x16x4xf32>,
    %c0_77 = arith.constant 0 : index
    %c1_78 = arith.constant 1 : index
    %c0_79 = arith.constant 0 : index
    %c0_80 = arith.constant 0 : index
    %62 = vector.load %arg11[%c0_77, %c1_78, %c0_79, %c0_80] : memref<3x18x16x2xbf16, #tpu.memory_space<vmem>>, vector<1x16x16x2xbf16>
    %63 = vector.shape_cast %62 : vector<1x16x16x2xbf16> to vector<16x16x2xbf16>
    %c0_81 = arith.constant 0 : index
    %c1_82 = arith.constant 1 : index
    %c0_83 = arith.constant 0 : index
    %c0_84 = arith.constant 0 : index
    %c0_85 = arith.constant 0 : index
    %64 = vector.load %arg6[%c0_81, %c1_82, %c0_83, %c0_84, %c0_85] : memref<1x3x3x2x4xbf16, #tpu.memory_space<vmem>>, vector<1x1x1x2x4xbf16>
    %65 = vector.shape_cast %64 : vector<1x1x1x2x4xbf16> to vector<2x4xbf16>
    %cst_86 = arith.constant dense<0.000000e+00> : vector<16x16x4xf32>
    %66 = tpu.matmul %63, %65, %cst_86 {dimension_numbers = #tpu.dot_dimension_numbers<[2], [0], [0, 1], [1], [0, 0, 0, 1, 1, 1], [], []>} : vector<16x16x2xbf16>, vector<2x4xbf16>, vector<16x16x4xf32> -> vector<16x16x4xf32>
    %c0_87 = arith.constant 0 : index
    %c0_88 = arith.constant 0 : index
    %c0_89 = arith.constant 0 : index
    %67 = vector.load %arg12[%c0_87, %c0_88, %c0_89] : memref<16x16x4xf32, #tpu.memory_space<vmem>>, vector<16x16x4xf32>
    %68 = arith.addf %67, %66 : vector<16x16x4xf32>
    %c0_90 = arith.constant 0 : index
    %c0_91 = arith.constant 0 : index
    %c0_92 = arith.constant 0 : index
    %69 = vector.load %arg12[%c0_90, %c0_91, %c0_92] : memref<16x16x4xf32, #tpu.memory_space<vmem>>, vector<16x16x4xf32>
    tpu.vector_store %arg12[%c0_90, %c0_91, %c0_92], %68 {strides = array<i32>} : memref<16x16x4xf32, #tpu.memory_space<vmem>>, vector<16x16x4xf32>,
    %c1_93 = arith.constant 1 : index
    %c1_94 = arith.constant 1 : index
    %c0_95 = arith.constant 0 : index
    %c0_96 = arith.constant 0 : index
    %70 = vector.load %arg11[%c1_93, %c1_94, %c0_95, %c0_96] : memref<3x18x16x2xbf16, #tpu.memory_space<vmem>>, vector<1x16x16x2xbf16>
    %71 = vector.shape_cast %70 : vector<1x16x16x2xbf16> to vector<16x16x2xbf16>
    %c0_97 = arith.constant 0 : index
    %c1_98 = arith.constant 1 : index
    %c1_99 = arith.constant 1 : index
    %c0_100 = arith.constant 0 : index
    %c0_101 = arith.constant 0 : index
    %72 = vector.load %arg6[%c0_97, %c1_98, %c1_99, %c0_100, %c0_101] : memref<1x3x3x2x4xbf16, #tpu.memory_space<vmem>>, vector<1x1x1x2x4xbf16>
    %73 = vector.shape_cast %72 : vector<1x1x1x2x4xbf16> to vector<2x4xbf16>
    %cst_102 = arith.constant dense<0.000000e+00> : vector<16x16x4xf32>
    %74 = tpu.matmul %71, %73, %cst_102 {dimension_numbers = #tpu.dot_dimension_numbers<[2], [0], [0, 1], [1], [0, 0, 0, 1, 1, 1], [], []>} : vector<16x16x2xbf16>, vector<2x4xbf16>, vector<16x16x4xf32> -> vector<16x16x4xf32>
    %c0_103 = arith.constant 0 : index
    %c0_104 = arith.constant 0 : index
    %c0_105 = arith.constant 0 : index
    %75 = vector.load %arg12[%c0_103, %c0_104, %c0_105] : memref<16x16x4xf32, #tpu.memory_space<vmem>>, vector<16x16x4xf32>
    %76 = arith.addf %75, %74 : vector<16x16x4xf32>
    %c0_106 = arith.constant 0 : index
    %c0_107 = arith.constant 0 : index
    %c0_108 = arith.constant 0 : index
    %77 = vector.load %arg12[%c0_106, %c0_107, %c0_108] : memref<16x16x4xf32, #tpu.memory_space<vmem>>, vector<16x16x4xf32>
    tpu.vector_store %arg12[%c0_106, %c0_107, %c0_108], %76 {strides = array<i32>} : memref<16x16x4xf32, #tpu.memory_space<vmem>>, vector<16x16x4xf32>,
    %c2_109 = arith.constant 2 : index
    %c1_110 = arith.constant 1 : index
    %c0_111 = arith.constant 0 : index
    %c0_112 = arith.constant 0 : index
    %78 = vector.load %arg11[%c2_109, %c1_110, %c0_111, %c0_112] : memref<3x18x16x2xbf16, #tpu.memory_space<vmem>>, vector<1x16x16x2xbf16>
    %79 = vector.shape_cast %78 : vector<1x16x16x2xbf16> to vector<16x16x2xbf16>
    %c0_113 = arith.constant 0 : index
    %c1_114 = arith.constant 1 : index
    %c2_115 = arith.constant 2 : index
    %c0_116 = arith.constant 0 : index
    %c0_117 = arith.constant 0 : index
    %80 = vector.load %arg6[%c0_113, %c1_114, %c2_115, %c0_116, %c0_117] : memref<1x3x3x2x4xbf16, #tpu.memory_space<vmem>>, vector<1x1x1x2x4xbf16>
    %81 = vector.shape_cast %80 : vector<1x1x1x2x4xbf16> to vector<2x4xbf16>
    %cst_118 = arith.constant dense<0.000000e+00> : vector<16x16x4xf32>
    %82 = tpu.matmul %79, %81, %cst_118 {dimension_numbers = #tpu.dot_dimension_numbers<[2], [0], [0, 1], [1], [0, 0, 0, 1, 1, 1], [], []>} : vector<16x16x2xbf16>, vector<2x4xbf16>, vector<16x16x4xf32> -> vector<16x16x4xf32>
    %c0_119 = arith.constant 0 : index
    %c0_120 = arith.constant 0 : index
    %c0_121 = arith.constant 0 : index
    %83 = vector.load %arg12[%c0_119, %c0_120, %c0_121] : memref<16x16x4xf32, #tpu.memory_space<vmem>>, vector<16x16x4xf32>
    %84 = arith.addf %83, %82 : vector<16x16x4xf32>
    %c0_122 = arith.constant 0 : index
    %c0_123 = arith.constant 0 : index
    %c0_124 = arith.constant 0 : index
    %85 = vector.load %arg12[%c0_122, %c0_123, %c0_124] : memref<16x16x4xf32, #tpu.memory_space<vmem>>, vector<16x16x4xf32>
    tpu.vector_store %arg12[%c0_122, %c0_123, %c0_124], %84 {strides = array<i32>} : memref<16x16x4xf32, #tpu.memory_space<vmem>>, vector<16x16x4xf32>,
    %c0_125 = arith.constant 0 : index
    %c2_126 = arith.constant 2 : index
    %c0_127 = arith.constant 0 : index
    %c0_128 = arith.constant 0 : index
    %86 = vector.load %arg11[%c0_125, %c2_126, %c0_127, %c0_128] : memref<3x18x16x2xbf16, #tpu.memory_space<vmem>>, vector<1x16x16x2xbf16>
    %87 = vector.shape_cast %86 : vector<1x16x16x2xbf16> to vector<16x16x2xbf16>
    %c0_129 = arith.constant 0 : index
    %c2_130 = arith.constant 2 : index
    %c0_131 = arith.constant 0 : index
    %c0_132 = arith.constant 0 : index
    %c0_133 = arith.constant 0 : index
    %88 = vector.load %arg6[%c0_129, %c2_130, %c0_131, %c0_132, %c0_133] : memref<1x3x3x2x4xbf16, #tpu.memory_space<vmem>>, vector<1x1x1x2x4xbf16>
    %89 = vector.shape_cast %88 : vector<1x1x1x2x4xbf16> to vector<2x4xbf16>
    %cst_134 = arith.constant dense<0.000000e+00> : vector<16x16x4xf32>
    %90 = tpu.matmul %87, %89, %cst_134 {dimension_numbers = #tpu.dot_dimension_numbers<[2], [0], [0, 1], [1], [0, 0, 0, 1, 1, 1], [], []>} : vector<16x16x2xbf16>, vector<2x4xbf16>, vector<16x16x4xf32> -> vector<16x16x4xf32>
    %c0_135 = arith.constant 0 : index
    %c0_136 = arith.constant 0 : index
    %c0_137 = arith.constant 0 : index
    %91 = vector.load %arg12[%c0_135, %c0_136, %c0_137] : memref<16x16x4xf32, #tpu.memory_space<vmem>>, vector<16x16x4xf32>
    %92 = arith.addf %91, %90 : vector<16x16x4xf32>
    %c0_138 = arith.constant 0 : index
    %c0_139 = arith.constant 0 : index
    %c0_140 = arith.constant 0 : index
    %93 = vector.load %arg12[%c0_138, %c0_139, %c0_140] : memref<16x16x4xf32, #tpu.memory_space<vmem>>, vector<16x16x4xf32>
    tpu.vector_store %arg12[%c0_138, %c0_139, %c0_140], %92 {strides = array<i32>} : memref<16x16x4xf32, #tpu.memory_space<vmem>>, vector<16x16x4xf32>,
    %c1_141 = arith.constant 1 : index
    %c2_142 = arith.constant 2 : index
    %c0_143 = arith.constant 0 : index
    %c0_144 = arith.constant 0 : index
    %94 = vector.load %arg11[%c1_141, %c2_142, %c0_143, %c0_144] : memref<3x18x16x2xbf16, #tpu.memory_space<vmem>>, vector<1x16x16x2xbf16>
    %95 = vector.shape_cast %94 : vector<1x16x16x2xbf16> to vector<16x16x2xbf16>
    %c0_145 = arith.constant 0 : index
    %c2_146 = arith.constant 2 : index
    %c1_147 = arith.constant 1 : index
    %c0_148 = arith.constant 0 : index
    %c0_149 = arith.constant 0 : index
    %96 = vector.load %arg6[%c0_145, %c2_146, %c1_147, %c0_148, %c0_149] : memref<1x3x3x2x4xbf16, #tpu.memory_space<vmem>>, vector<1x1x1x2x4xbf16>
    %97 = vector.shape_cast %96 : vector<1x1x1x2x4xbf16> to vector<2x4xbf16>
    %cst_150 = arith.constant dense<0.000000e+00> : vector<16x16x4xf32>
    %98 = tpu.matmul %95, %97, %cst_150 {dimension_numbers = #tpu.dot_dimension_numbers<[2], [0], [0, 1], [1], [0, 0, 0, 1, 1, 1], [], []>} : vector<16x16x2xbf16>, vector<2x4xbf16>, vector<16x16x4xf32> -> vector<16x16x4xf32>
    %c0_151 = arith.constant 0 : index
    %c0_152 = arith.constant 0 : index
    %c0_153 = arith.constant 0 : index
    %99 = vector.load %arg12[%c0_151, %c0_152, %c0_153] : memref<16x16x4xf32, #tpu.memory_space<vmem>>, vector<16x16x4xf32>
    %100 = arith.addf %99, %98 : vector<16x16x4xf32>
    %c0_154 = arith.constant 0 : index
    %c0_155 = arith.constant 0 : index
    %c0_156 = arith.constant 0 : index
    %101 = vector.load %arg12[%c0_154, %c0_155, %c0_156] : memref<16x16x4xf32, #tpu.memory_space<vmem>>, vector<16x16x4xf32>
    tpu.vector_store %arg12[%c0_154, %c0_155, %c0_156], %100 {strides = array<i32>} : memref<16x16x4xf32, #tpu.memory_space<vmem>>, vector<16x16x4xf32>,
    %c2_157 = arith.constant 2 : index
    %c2_158 = arith.constant 2 : index
    %c0_159 = arith.constant 0 : index
    %c0_160 = arith.constant 0 : index
    %102 = vector.load %arg11[%c2_157, %c2_158, %c0_159, %c0_160] : memref<3x18x16x2xbf16, #tpu.memory_space<vmem>>, vector<1x16x16x2xbf16>
    %103 = vector.shape_cast %102 : vector<1x16x16x2xbf16> to vector<16x16x2xbf16>
    %c0_161 = arith.constant 0 : index
    %c2_162 = arith.constant 2 : index
    %c2_163 = arith.constant 2 : index
    %c0_164 = arith.constant 0 : index
    %c0_165 = arith.constant 0 : index
    %104 = vector.load %arg6[%c0_161, %c2_162, %c2_163, %c0_164, %c0_165] : memref<1x3x3x2x4xbf16, #tpu.memory_space<vmem>>, vector<1x1x1x2x4xbf16>
    %105 = vector.shape_cast %104 : vector<1x1x1x2x4xbf16> to vector<2x4xbf16>
    %cst_166 = arith.constant dense<0.000000e+00> : vector<16x16x4xf32>
    %106 = tpu.matmul %103, %105, %cst_166 {dimension_numbers = #tpu.dot_dimension_numbers<[2], [0], [0, 1], [1], [0, 0, 0, 1, 1, 1], [], []>} : vector<16x16x2xbf16>, vector<2x4xbf16>, vector<16x16x4xf32> -> vector<16x16x4xf32>
    %c0_167 = arith.constant 0 : index
    %c0_168 = arith.constant 0 : index
    %c0_169 = arith.constant 0 : index
    %107 = vector.load %arg12[%c0_167, %c0_168, %c0_169] : memref<16x16x4xf32, #tpu.memory_space<vmem>>, vector<16x16x4xf32>
    %108 = arith.addf %107, %106 : vector<16x16x4xf32>
    %c0_170 = arith.constant 0 : index
    %c0_171 = arith.constant 0 : index
    %c0_172 = arith.constant 0 : index
    %109 = vector.load %arg12[%c0_170, %c0_171, %c0_172] : memref<16x16x4xf32, #tpu.memory_space<vmem>>, vector<16x16x4xf32>
    tpu.vector_store %arg12[%c0_170, %c0_171, %c0_172], %108 {strides = array<i32>} : memref<16x16x4xf32, #tpu.memory_space<vmem>>, vector<16x16x4xf32>,
    %c0_173 = arith.constant 0 : index
    %c0_174 = arith.constant 0 : index
    %c0_175 = arith.constant 0 : index
    %110 = vector.load %arg12[%c0_173, %c0_174, %c0_175] : memref<16x16x4xf32, #tpu.memory_space<vmem>>, vector<16x16x4xf32>
    %c0_176 = arith.constant 0 : index
    %c0_177 = arith.constant 0 : index
    %c0_178 = arith.constant 0 : index
    %111 = vector.load %arg7[%c0_176, %c0_177, %c0_178] : memref<1x1x4xf32, #tpu.memory_space<vmem>>, vector<1x1x4xf32>
    %112 = vector.shape_cast %111 : vector<1x1x4xf32> to vector<1x4xf32>
    %113 = vector.shape_cast %112 : vector<1x4xf32> to vector<1x1x4xf32>
    %114 = vector.broadcast %113 : vector<1x1x4xf32> to vector<16x16x4xf32>
    %115 = arith.mulf %110, %114 : vector<16x16x4xf32>
    %c0_179 = arith.constant 0 : index
    %c0_180 = arith.constant 0 : index
    %c0_181 = arith.constant 0 : index
    %116 = vector.load %arg8[%c0_179, %c0_180, %c0_181] : memref<1x1x4xf32, #tpu.memory_space<vmem>>, vector<1x1x4xf32>
    %117 = vector.shape_cast %116 : vector<1x1x4xf32> to vector<1x4xf32>
    %118 = vector.shape_cast %117 : vector<1x4xf32> to vector<1x1x4xf32>
    %119 = vector.broadcast %118 : vector<1x1x4xf32> to vector<16x16x4xf32>
    %120 = arith.addf %115, %119 : vector<16x16x4xf32>
    %cst_182 = arith.constant 0.000000e+00 : f32
    %121 = vector.broadcast %cst_182 : f32 to vector<16x16x4xf32>
    %122 = arith.maximumf %120, %121 : vector<16x16x4xf32>
    %c0_183 = arith.constant 0 : index
    %c0_184 = arith.constant 0 : index
    %c0_185 = arith.constant 0 : index
    %123 = vector.load %arg10[%c0_183, %c0_184, %c0_185] : memref<16x16x4xf32, #tpu.memory_space<vmem>>, vector<16x16x4xf32>
    %124 = arith.addf %123, %122 : vector<16x16x4xf32>
    %c0_186 = arith.constant 0 : index
    %c0_187 = arith.constant 0 : index
    %c0_188 = arith.constant 0 : index
    %125 = vector.load %arg10[%c0_186, %c0_187, %c0_188] : memref<16x16x4xf32, #tpu.memory_space<vmem>>, vector<16x16x4xf32>
    tpu.vector_store %arg10[%c0_186, %c0_187, %c0_188], %124 {strides = array<i32>} : memref<16x16x4xf32, #tpu.memory_space<vmem>>, vector<16x16x4xf32>,
    %c1_i32 = arith.constant 1 : i32
    %126 = arith.cmpi eq, %arg1, %c1_i32 : i32
    %127 = arith.extui %126 : i1 to i32
    %c0_i32_189 = arith.constant 0 : i32
    %128 = arith.cmpi ne, %127, %c0_i32_189 : i32
    scf.if %128 {
      %c0_190 = arith.constant 0 : index
      %c0_191 = arith.constant 0 : index
      %c0_192 = arith.constant 0 : index
      %c0_193 = arith.constant 0 : index
      %129 = vector.load %arg9[%c0_190, %c0_191, %c0_192, %c0_193] : memref<1x16x16x4xf32, #tpu.memory_space<vmem>>, vector<1x16x16x4xf32>
      %130 = vector.shape_cast %129 : vector<1x16x16x4xf32> to vector<16x16x4xf32>
      %131 = vector.shape_cast %124 : vector<16x16x4xf32> to vector<1x16x16x4xf32>
      tpu.vector_store %arg9[%c0_190, %c0_191, %c0_192, %c0_193], %131 {strides = array<i32>} : memref<1x16x16x4xf32, #tpu.memory_space<vmem>>, vector<1x16x16x4xf32>,
    } else {
    }
    return
  }
  func.func @transform_0(%arg0: i32, %arg1: i32) -> (i32, i32, i32, i32) {
    %c0_i32 = arith.constant 0 : i32
    %c0_i32_0 = arith.constant 0 : i32
    %c0_i32_1 = arith.constant 0 : i32
    %c0_i32_2 = arith.constant 0 : i32
    return %arg0, %c0_i32, %c0_i32_0, %c0_i32_1 : i32, i32, i32, i32
  }
  func.func @transform_1(%arg0: i32, %arg1: i32) -> (i32, i32, i32) {
    %c0_i32 = arith.constant 0 : i32
    %c0_i32_0 = arith.constant 0 : i32
    %c0_i32_1 = arith.constant 0 : i32
    return %arg1, %c0_i32, %c0_i32_0 : i32, i32, i32
  }
  func.func @transform_2(%arg0: i32, %arg1: i32) -> (i32, i32, i32) {
    %c0_i32 = arith.constant 0 : i32
    %c0_i32_0 = arith.constant 0 : i32
    %c0_i32_1 = arith.constant 0 : i32
    return %arg1, %c0_i32, %c0_i32_0 : i32, i32, i32
  }
  func.func @transform_3(%arg0: i32, %arg1: i32) -> (i32, i32, i32) {
    %c0_i32 = arith.constant 0 : i32
    %c0_i32_0 = arith.constant 0 : i32
    %c0_i32_1 = arith.constant 0 : i32
    return %arg1, %c0_i32, %c0_i32_0 : i32, i32, i32
  }
  func.func @transform_4(%arg0: i32, %arg1: i32) -> (i32, i32, i32, i32, i32) {
    %c0_i32 = arith.constant 0 : i32
    %c0_i32_0 = arith.constant 0 : i32
    %c0_i32_1 = arith.constant 0 : i32
    %c0_i32_2 = arith.constant 0 : i32
    %c0_i32_3 = arith.constant 0 : i32
    return %arg1, %c0_i32, %c0_i32_0, %c0_i32_1, %c0_i32_2 : i32, i32, i32, i32, i32
  }
  func.func @transform_5(%arg0: i32, %arg1: i32) -> (i32, i32, i32) {
    %c0_i32 = arith.constant 0 : i32
    %c0_i32_0 = arith.constant 0 : i32
    %c0_i32_1 = arith.constant 0 : i32
    return %arg1, %c0_i32, %c0_i32_0 : i32, i32, i32
  }
  func.func @transform_6(%arg0: i32, %arg1: i32) -> (i32, i32, i32) {
    %c0_i32 = arith.constant 0 : i32
    %c0_i32_0 = arith.constant 0 : i32
    %c0_i32_1 = arith.constant 0 : i32
    return %arg1, %c0_i32, %c0_i32_0 : i32, i32, i32
  }
  func.func @transform_7(%arg0: i32, %arg1: i32) -> (i32, i32, i32, i32) {
    %c0_i32 = arith.constant 0 : i32
    %c0_i32_0 = arith.constant 0 : i32
    %c0_i32_1 = arith.constant 0 : i32
    %c0_i32_2 = arith.constant 0 : i32
    return %arg0, %c0_i32, %c0_i32_0, %c0_i32_1 : i32, i32, i32, i32
  }
}

</mosaic_0001>

<llo_original>
// kernel: tpu_custom_call.1
$region0: #{tpu_custom_call.1}
  #allocation0 [shape = 'u32[]', space=smem, size = 0x4, offset = 0x4, fixed_abs, tag = 'smem constant byte address 0x4 - core index']
  #allocation1 [shape = 'u32[144,128]{1,0:T(1,128)}', space=vmem, size = 0x12000, scoped, tag = 'internal scratch']
  #allocation2 [shape = 'f32[16,16,4]{2,1,0:T(8,128)}', space=vmem, size = 0x20000, scoped, tag = 'scratch operand']
  #allocation3 [shape = 'bf16[3,18,16,2]{3,2,1,0:T(16,128)(2,1)}', space=vmem, size = 0x36000, scoped, tag = 'scratch operand']
  #allocation4 [shape = 'f32[16,16,4]{2,1,0:T(8,128)}', space=vmem, size = 0x20000, scoped, tag = 'scratch operand']
  %s0 = inlined_call_operand.vmem [shape: f32[2,16,16,4], index: 0, kind: input, shape index: {}]
  %s1 = inlined_call_operand.vmem [shape: bf16[2,4,2], index: 1, kind: input, shape index: {}]
  %s2 = inlined_call_operand.vmem [shape: f32[2,1,2], index: 2, kind: input, shape index: {}]
  %s3 = inlined_call_operand.vmem [shape: f32[2,1,2], index: 3, kind: input, shape index: {}]
  %s4 = inlined_call_operand.vmem [shape: bf16[2,3,3,2,4], index: 4, kind: input, shape index: {}]
  %s5 = inlined_call_operand.vmem [shape: f32[2,1,4], index: 5, kind: input, shape index: {}]
  %s6 = inlined_call_operand.vmem [shape: f32[2,1,4], index: 6, kind: input, shape index: {}]
  %s7 = inlined_call_operand.vmem [shape: f32[2,16,16,4], index: 7, kind: output, shape index: {}]
  %s8 = sld [smem:[#allocation0]]
  $region69: #{tpu_custom_call.1} parent=0
    _
  %s10 = ssub.s32 1, %s8
  %s11 = scalar_select 0, %s10, %s8
  loop: start=0, step=1, limit=6
  $region2: #{tpu_custom_call.1} parent=0 // loop_pre_header
    _
  $region3: #{tpu_custom_call.1} parent=0 // loop_header
    %s13 = sphi 0, %s17
    %p14 = scmp.ge.s32.totalorder %s13, 6
    %s20 = sphi 0, %s32
    %s21 = sphi 0, %s28
    %s22 = sphi 0, %s20
    %s23 = sphi 0, %s21
    %s24 = sphi 0, %s22
    %s25 = sphi 0, %s23
    %s35 = sphi 0, %s37
    %s38 = sphi 0, %s35
    %s39 = sphi 0, %s38
    %s55 = sphi 0, %s39
    %s61 = sphi 0, %s63
    %s64 = sphi 0, %s61
    %s65 = sphi 0, %s64
    %s81 = sphi 0, %s65
    %s87 = sphi 0, %s89
    %s90 = sphi 0, %s87
    %s91 = sphi 0, %s90
    %s107 = sphi 0, %s91
    %s113 = sphi 0, %s115
    %s116 = sphi 0, %s113
    %s117 = sphi 0, %s116
    %s133 = sphi 0, %s117
    %s139 = sphi 0, %s141
    %s142 = sphi 0, %s139
    %s143 = sphi 0, %s142
    %s159 = sphi 0, %s143
    %s165 = sphi 0, %s167
    %s168 = sphi 0, %s165
    %s169 = sphi 0, %s168
    %s185 = sphi 0, %s169
    %s191 = sphi 0, %s193
    %s194 = sphi 0, %s191
    %s195 = sphi 0, %s194
    %s211 = sphi 0, %s195
    %s217 = sphi 0, %s219
    %s220 = sphi 0, %s217
    %s221 = sphi 0, %s220
    %s237 = sphi 0, %s221
  $region4: #{tpu_custom_call.1} parent=0 // loop_header_branch
    %16 = sbr.rel (%p14) target = $region8
  $region5: #{tpu_custom_call.1} parent=0 // loop_body
    %s18 = ssub.s32 %s13, 1
    %s19 = ssub.s32 %s13, 2
    %s26 = sadd.s32 1, %s21
    %p27 = scmp.ge.s32.totalorder %s26, 2
    %s28 = scalar_select %p27, 0, %s26
    %s29 = sadd.s32 1, %s20
    %s30 = scalar_select %p27, %s29, %s20
    %p31 = scmp.ge.s32.totalorder %s30, 2
    %s32 = scalar_select %p31, 0, %s30
    %s33 = ssub.s32 %s20, %s32
    %p34 = scmp.eq.s32.totalorder %s33, 0
    %s36 = sadd.s32 %s35, 1
    %s37 = scalar_select %p34, %s35, %s36
    %p40 = pneg %p34
    %p41 = scmp.eq.s32.totalorder %s13, 3
    %p42 = por %p40, %p41
    %p43 = scmp.ne.s32.totalorder %s35, %s38
    %p44 = scmp.eq.s32.totalorder %s13, 0
    %p45 = por %p43, %p44
    %p46 = scmp.ne.s32.totalorder %s35, %s38
    %p47 = scmp.eq.s32.totalorder %s18, 3
    %p48 = por %p46, %p47
    %p49 = scmp.ne.s32.totalorder %s38, %s39
    %p50 = scmp.eq.s32.totalorder %s18, 0
    %p51 = por %p49, %p50
    %p52 = scmp.ne.s32.totalorder %s38, %s39
    %p53 = scmp.eq.s32.totalorder %s19, 3
    %p54 = por %p52, %p53
    %p56 = scmp.ne.s32.totalorder %s39, %s55
    %p57 = scmp.eq.s32.totalorder %s19, 0
    %p58 = por %p56, %p57
    %s59 = ssub.s32 %s21, %s28
    %p60 = scmp.eq.s32.totalorder %s59, 0
    %s62 = sadd.s32 %s61, 1
    %s63 = scalar_select %p60, %s61, %s62
    %p66 = pneg %p60
    %p67 = scmp.eq.s32.totalorder %s13, 3
    %p68 = por %p66, %p67
    %p69 = scmp.ne.s32.totalorder %s61, %s64
    %p70 = scmp.eq.s32.totalorder %s13, 0
    %p71 = por %p69, %p70
    %p72 = scmp.ne.s32.totalorder %s61, %s64
    %p73 = scmp.eq.s32.totalorder %s18, 3
    %p74 = por %p72, %p73
    %p75 = scmp.ne.s32.totalorder %s64, %s65
    %p76 = scmp.eq.s32.totalorder %s18, 0
    %p77 = por %p75, %p76
    %p78 = scmp.ne.s32.totalorder %s64, %s65
    %p79 = scmp.eq.s32.totalorder %s19, 3
    %p80 = por %p78, %p79
    %p82 = scmp.ne.s32.totalorder %s65, %s81
    %p83 = scmp.eq.s32.totalorder %s19, 0
    %p84 = por %p82, %p83
    %s85 = ssub.s32 %s21, %s28
    %p86 = scmp.eq.s32.totalorder %s85, 0
    %s88 = sadd.s32 %s87, 1
    %s89 = scalar_select %p86, %s87, %s88
    %p92 = pneg %p86
    %p93 = scmp.eq.s32.totalorder %s13, 3
    %p94 = por %p92, %p93
    %p95 = scmp.ne.s32.totalorder %s87, %s90
    %p96 = scmp.eq.s32.totalorder %s13, 0
    %p97 = por %p95, %p96
    %p98 = scmp.ne.s32.totalorder %s87, %s90
    %p99 = scmp.eq.s32.totalorder %s18, 3
    %p100 = por %p98, %p99
    %p101 = scmp.ne.s32.totalorder %s90, %s91
    %p102 = scmp.eq.s32.totalorder %s18, 0
    %p103 = por %p101, %p102
    %p104 = scmp.ne.s32.totalorder %s90, %s91
    %p105 = scmp.eq.s32.totalorder %s19, 3
    %p106 = por %p104, %p105
    %p108 = scmp.ne.s32.totalorder %s91, %s107
    %p109 = scmp.eq.s32.totalorder %s19, 0
    %p110 = por %p108, %p109
    %s111 = ssub.s32 %s21, %s28
    %p112 = scmp.eq.s32.totalorder %s111, 0
    %s114 = sadd.s32 %s113, 1
    %s115 = scalar_select %p112, %s113, %s114
    %p118 = pneg %p112
    %p119 = scmp.eq.s32.totalorder %s13, 3
    %p120 = por %p118, %p119
    %p121 = scmp.ne.s32.totalorder %s113, %s116
    %p122 = scmp.eq.s32.totalorder %s13, 0
    %p123 = por %p121, %p122
    %p124 = scmp.ne.s32.totalorder %s113, %s116
    %p125 = scmp.eq.s32.totalorder %s18, 3
    %p126 = por %p124, %p125
    %p127 = scmp.ne.s32.totalorder %s116, %s117
    %p128 = scmp.eq.s32.totalorder %s18, 0
    %p129 = por %p127, %p128
    %p130 = scmp.ne.s32.totalorder %s116, %s117
    %p131 = scmp.eq.s32.totalorder %s19, 3
    %p132 = por %p130, %p131
    %p134 = scmp.ne.s32.totalorder %s117, %s133
    %p135 = scmp.eq.s32.totalorder %s19, 0
    %p136 = por %p134, %p135
    %s137 = ssub.s32 %s21, %s28
    %p138 = scmp.eq.s32.totalorder %s137, 0
    %s140 = sadd.s32 %s139, 1
    %s141 = scalar_select %p138, %s139, %s140
    %p144 = pneg %p138
    %p145 = scmp.eq.s32.totalorder %s13, 3
    %p146 = por %p144, %p145
    %p147 = scmp.ne.s32.totalorder %s139, %s142
    %p148 = scmp.eq.s32.totalorder %s13, 0
    %p149 = por %p147, %p148
    %p150 = scmp.ne.s32.totalorder %s139, %s142
    %p151 = scmp.eq.s32.totalorder %s18, 3
    %p152 = por %p150, %p151
    %p153 = scmp.ne.s32.totalorder %s142, %s143
    %p154 = scmp.eq.s32.totalorder %s18, 0
    %p155 = por %p153, %p154
    %p156 = scmp.ne.s32.totalorder %s142, %s143
    %p157 = scmp.eq.s32.totalorder %s19, 3
    %p158 = por %p156, %p157
    %p160 = scmp.ne.s32.totalorder %s143, %s159
    %p161 = scmp.eq.s32.totalorder %s19, 0
    %p162 = por %p160, %p161
    %s163 = ssub.s32 %s21, %s28
    %p164 = scmp.eq.s32.totalorder %s163, 0
    %s166 = sadd.s32 %s165, 1
    %s167 = scalar_select %p164, %s165, %s166
    %p170 = pneg %p164
    %p171 = scmp.eq.s32.totalorder %s13, 3
    %p172 = por %p170, %p171
    %p173 = scmp.ne.s32.totalorder %s165, %s168
    %p174 = scmp.eq.s32.totalorder %s13, 0
    %p175 = por %p173, %p174
    %p176 = scmp.ne.s32.totalorder %s165, %s168
    %p177 = scmp.eq.s32.totalorder %s18, 3
    %p178 = por %p176, %p177
    %p179 = scmp.ne.s32.totalorder %s168, %s169
    %p180 = scmp.eq.s32.totalorder %s18, 0
    %p181 = por %p179, %p180
    %p182 = scmp.ne.s32.totalorder %s168, %s169
    %p183 = scmp.eq.s32.totalorder %s19, 3
    %p184 = por %p182, %p183
    %p186 = scmp.ne.s32.totalorder %s169, %s185
    %p187 = scmp.eq.s32.totalorder %s19, 0
    %p188 = por %p186, %p187
    %s189 = ssub.s32 %s21, %s28
    %p190 = scmp.eq.s32.totalorder %s189, 0
    %s192 = sadd.s32 %s191, 1
    %s193 = scalar_select %p190, %s191, %s192
    %p196 = pneg %p190
    %p197 = scmp.eq.s32.totalorder %s13, 3
    %p198 = por %p196, %p197
    %p199 = scmp.ne.s32.totalorder %s191, %s194
    %p200 = scmp.eq.s32.totalorder %s13, 0
    %p201 = por %p199, %p200
    %p202 = scmp.ne.s32.totalorder %s191, %s194
    %p203 = scmp.eq.s32.totalorder %s18, 3
    %p204 = por %p202, %p203
    %p205 = scmp.ne.s32.totalorder %s194, %s195
    %p206 = scmp.eq.s32.totalorder %s18, 0
    %p207 = por %p205, %p206
    %p208 = scmp.ne.s32.totalorder %s194, %s195
    %p209 = scmp.eq.s32.totalorder %s19, 3
    %p210 = por %p208, %p209
    %p212 = scmp.ne.s32.totalorder %s195, %s211
    %p213 = scmp.eq.s32.totalorder %s19, 0
    %p214 = por %p212, %p213
    %s215 = ssub.s32 %s20, %s32
    %p216 = scmp.eq.s32.totalorder %s215, 0
    %s218 = sadd.s32 %s217, 1
    %s219 = scalar_select %p216, %s217, %s218
    %p222 = pneg %p216
    %p223 = scmp.eq.s32.totalorder %s13, 3
    %p224 = por %p222, %p223
    %p225 = scmp.ne.s32.totalorder %s217, %s220
    %p226 = scmp.eq.s32.totalorder %s13, 0
    %p227 = por %p225, %p226
    %p228 = scmp.ne.s32.totalorder %s217, %s220
    %p229 = scmp.eq.s32.totalorder %s18, 3
    %p230 = por %p228, %p229
    %p231 = scmp.ne.s32.totalorder %s220, %s221
    %p232 = scmp.eq.s32.totalorder %s18, 0
    %p233 = por %p231, %p232
    %p234 = scmp.ne.s32.totalorder %s220, %s221
    %p235 = scmp.eq.s32.totalorder %s19, 3
    %p236 = por %p234, %p235
    %p238 = scmp.ne.s32.totalorder %s221, %s237
    %p239 = scmp.eq.s32.totalorder %s19, 0
    %p240 = por %p238, %p239
    %p241 = scmp.le.s32.totalorder 1, %s13
    %p242 = scmp.lt.s32.totalorder %s13, 5
    %p243 = pnand %p241, %p242
    %p244 = pneg %p243
    // Predicated region
    $region9: #{tpu_custom_call.1} parent=5 // pred_check
      _
    $region10: #{tpu_custom_call.1} parent=5 // pred_check_branch
      %246 = sbr.rel (%p243) target = $region12
    $region11: #{tpu_custom_call.1} parent=5 // pred_region
      %s247 = ssub.s32 %s13, 1
    $region12: #{tpu_custom_call.1} parent=5 // pred_fallthru
      _
    %p248 = scmp.lt.s32.totalorder %s13, 4
    // Predicated region
    $region13: #{tpu_custom_call.1} parent=5 // pred_check
      %p249 = pneg %p248
    $region14: #{tpu_custom_call.1} parent=5 // pred_check_branch
      %251 = sbr.rel (%p249) target = $region16
    $region15: #{tpu_custom_call.1} parent=5 // pred_region
      // Predicated region
      $region17: #{tpu_custom_call.1} parent=15 // pred_check
        %p252 = pneg %p45
      $region18: #{tpu_custom_call.1} parent=15 // pred_check_branch
        %254 = sbr.rel (%p252) target = $region20
      $region19: #{tpu_custom_call.1} parent=15 // pred_region
        %p255 = scmp.lt.s32.totalorder %s20, 1
        %s256 = scalar_select %p255, %s20, 1
        %s257 = smul.addr %s256, 32
        %s258 = smul.addr %s257, 8
        %s259 = scalar_lea.vmem %s0, %s258
      $region20: #{tpu_custom_call.1} parent=15 // pred_fallthru
        _
      // Predicated region
      $region21: #{tpu_custom_call.1} parent=15 // pred_check
        %p260 = pneg %p71
      $region22: #{tpu_custom_call.1} parent=15 // pred_check_branch
        %262 = sbr.rel (%p260) target = $region24
      $region23: #{tpu_custom_call.1} parent=15 // pred_region
        %p263 = scmp.lt.s32.totalorder %s21, 1
        %s264 = scalar_select %p263, %s21, 1
        %s265 = smul.addr %s264, 2
        %s266 = scalar_lea.vmem %s1, %s265
      $region24: #{tpu_custom_call.1} parent=15 // pred_fallthru
        _
      // Predicated region
      $region25: #{tpu_custom_call.1} parent=15 // pred_check
        %p267 = pneg %p97
      $region26: #{tpu_custom_call.1} parent=15 // pred_check_branch
        %269 = sbr.rel (%p267) target = $region28
      $region27: #{tpu_custom_call.1} parent=15 // pred_region
        %p270 = scmp.lt.s32.totalorder %s21, 1
        %s271 = scalar_select %p270, %s21, 1
        %s272 = scalar_lea.vmem %s2, %s271
      $region28: #{tpu_custom_call.1} parent=15 // pred_fallthru
        _
      // Predicated region
      $region29: #{tpu_custom_call.1} parent=15 // pred_check
        %p273 = pneg %p123
      $region30: #{tpu_custom_call.1} parent=15 // pred_check_branch
        %275 = sbr.rel (%p273) target = $region32
      $region31: #{tpu_custom_call.1} parent=15 // pred_region
        %p276 = scmp.lt.s32.totalorder %s21, 1
        %s277 = scalar_select %p276, %s21, 1
        %s278 = scalar_lea.vmem %s3, %s277
      $region32: #{tpu_custom_call.1} parent=15 // pred_fallthru
        _
      // Predicated region
      $region33: #{tpu_custom_call.1} parent=15 // pred_check
        %p279 = pneg %p149
      $region34: #{tpu_custom_call.1} parent=15 // pred_check_branch
        %281 = sbr.rel (%p279) target = $region36
      $region35: #{tpu_custom_call.1} parent=15 // pred_region
        %p282 = scmp.lt.s32.totalorder %s21, 1
        %s283 = scalar_select %p282, %s21, 1
        %s284 = smul.addr %s283, 9
        %s285 = scalar_lea.vmem %s4, %s284
      $region36: #{tpu_custom_call.1} parent=15 // pred_fallthru
        _
      // Predicated region
      $region37: #{tpu_custom_call.1} parent=15 // pred_check
        %p286 = pneg %p175
      $region38: #{tpu_custom_call.1} parent=15 // pred_check_branch
        %288 = sbr.rel (%p286) target = $region40
      $region39: #{tpu_custom_call.1} parent=15 // pred_region
        %p289 = scmp.lt.s32.totalorder %s21, 1
        %s290 = scalar_select %p289, %s21, 1
        %s291 = scalar_lea.vmem %s5, %s290
      $region40: #{tpu_custom_call.1} parent=15 // pred_fallthru
        _
      // Predicated region
      $region41: #{tpu_custom_call.1} parent=15 // pred_check
        %p292 = pneg %p201
      $region42: #{tpu_custom_call.1} parent=15 // pred_check_branch
        %294 = sbr.rel (%p292) target = $region44
      $region43: #{tpu_custom_call.1} parent=15 // pred_region
        %p295 = scmp.lt.s32.totalorder %s21, 1
        %s296 = scalar_select %p295, %s21, 1
        %s297 = scalar_lea.vmem %s6, %s296
      $region44: #{tpu_custom_call.1} parent=15 // pred_fallthru
        _
    $region16: #{tpu_custom_call.1} parent=5 // pred_fallthru
      _
    %p298 = scmp.le.s32.totalorder 1, %s13
    %p299 = scmp.lt.s32.totalorder %s13, 5
    %p300 = pnand %p298, %p299
    %p301 = pneg %p300
    // Predicated region
    $region45: #{tpu_custom_call.1} parent=5 // pred_check
      _
    $region46: #{tpu_custom_call.1} parent=5 // pred_check_branch
      %303 = sbr.rel (%p300) target = $region48
    $region47: #{tpu_custom_call.1} parent=5 // pred_region
      %s304 = ssub.s32 %s13, 1
      %p305 = scmp.lt.s32.totalorder %s22, 1
      %s306 = scalar_select %p305, %s22, 1
      %s307 = smul.addr %s306, 32
      %s308 = smul.addr %s307, 8
      %s309 = scalar_lea.vmem %s0, %s308
      %p310 = pneg %p51
      %p311 = pneg %p48
      %p312 = scmp.lt.s32.totalorder %s23, 1
      %s313 = scalar_select %p312, %s23, 1
      %s314 = smul.addr %s313, 2
      %s315 = scalar_lea.vmem %s1, %s314
      %p316 = pneg %p77
      %p317 = pneg %p74
      %p318 = scmp.lt.s32.totalorder %s23, 1
      %s319 = scalar_select %p318, %s23, 1
      %s320 = scalar_lea.vmem %s2, %s319
      %p321 = pneg %p103
      %p322 = pneg %p100
      %p323 = scmp.lt.s32.totalorder %s23, 1
      %s324 = scalar_select %p323, %s23, 1
      %s325 = scalar_lea.vmem %s3, %s324
      %p326 = pneg %p129
      %p327 = pneg %p126
      %p328 = scmp.lt.s32.totalorder %s23, 1
      %s329 = scalar_select %p328, %s23, 1
      %s330 = smul.addr %s329, 9
      %s331 = scalar_lea.vmem %s4, %s330
      %p332 = pneg %p155
      %p333 = pneg %p152
      %p334 = scmp.lt.s32.totalorder %s23, 1
      %s335 = scalar_select %p334, %s23, 1
      %s336 = scalar_lea.vmem %s5, %s335
      %p337 = pneg %p181
      %p338 = pneg %p178
      %p339 = scmp.lt.s32.totalorder %s23, 1
      %s340 = scalar_select %p339, %s23, 1
      %s341 = scalar_lea.vmem %s6, %s340
      %p342 = pneg %p207
      %p343 = pneg %p204
      %p344 = pneg %p233
      %p345 = pneg %p230
      %p346 = scmp.lt.s32.totalorder %s22, 1
      %s347 = scalar_select %p346, %s22, 1
      %s348 = smul.addr %s347, 32
      %s349 = smul.addr %s348, 8
      %s350 = scalar_lea.vmem %s7, %s349
      %p351 = scmp.lt.s32.totalorder %s22, 1
      %s352 = scalar_select %p351, %s22, 1
      %s353 = smul.addr %s352, 32
      %s354 = smul.addr %s353, 8
      %s355 = scalar_lea.vmem %s0, %s354
      %p356 = scmp.lt.s32.totalorder %s23, 1
      %s357 = scalar_select %p356, %s23, 1
      %s358 = smul.addr %s357, 2
      %s359 = scalar_lea.vmem %s1, %s358
      %p360 = scmp.lt.s32.totalorder %s23, 1
      %s361 = scalar_select %p360, %s23, 1
      %s362 = scalar_lea.vmem %s2, %s361
      %p363 = scmp.lt.s32.totalorder %s23, 1
      %s364 = scalar_select %p363, %s23, 1
      %s365 = scalar_lea.vmem %s3, %s364
      %p366 = scmp.lt.s32.totalorder %s23, 1
      %s367 = scalar_select %p366, %s23, 1
      %s368 = smul.addr %s367, 9
      %s369 = scalar_lea.vmem %s4, %s368
      %p370 = scmp.lt.s32.totalorder %s23, 1
      %s371 = scalar_select %p370, %s23, 1
      %s372 = scalar_lea.vmem %s5, %s371
      %p373 = scmp.lt.s32.totalorder %s23, 1
      %s374 = scalar_select %p373, %s23, 1
      %s375 = scalar_lea.vmem %s6, %s374
      %p376 = scmp.lt.s32.totalorder %s22, 1
      %s377 = scalar_select %p376, %s22, 1
      %s378 = smul.addr %s377, 32
      %s379 = smul.addr %s378, 8
      %s380 = scalar_lea.vmem %s7, %s379
      %p382 = scmp.eq.s32.totalorder %s23, 0
      // Predicated region
      $region49: #{tpu_custom_call.1} parent=47 // pred_check
        %p383 = pneg %p382
      $region50: #{tpu_custom_call.1} parent=47 // pred_check_branch
        %385 = sbr.rel (%p383) target = $region52
      $region51: #{tpu_custom_call.1} parent=47 // pred_region
        %v386 = vld [vmem:[%s355] sm:$0xff]
        %v387 = vld [vmem:[%s355 + $0x8] sm:$0xff]
        %v388 = vld [vmem:[%s355 + $0x10] sm:$0xff]
        %v389 = vld [vmem:[%s355 + $0x18] sm:$0xff]
        %v390 = vld [vmem:[%s355 + $0x20] sm:$0xff]
        %v391 = vld [vmem:[%s355 + $0x28] sm:$0xff]
        %v392 = vld [vmem:[%s355 + $0x30] sm:$0xff]
        %v393 = vld [vmem:[%s355 + $0x38] sm:$0xff]
        %v394 = vld [vmem:[%s355 + $0x40] sm:$0xff]
        %v395 = vld [vmem:[%s355 + $0x48] sm:$0xff]
        %v396 = vld [vmem:[%s355 + $0x50] sm:$0xff]
        %v397 = vld [vmem:[%s355 + $0x58] sm:$0xff]
        %v398 = vld [vmem:[%s355 + $0x60] sm:$0xff]
        %v399 = vld [vmem:[%s355 + $0x68] sm:$0xff]
        %v400 = vld [vmem:[%s355 + $0x70] sm:$0xff]
        %v401 = vld [vmem:[%s355 + $0x78] sm:$0xff]
        %v402 = vld [vmem:[%s355 + $0x80] sm:$0xff]
        %v403 = vld [vmem:[%s355 + $0x88] sm:$0xff]
        %v404 = vld [vmem:[%s355 + $0x90] sm:$0xff]
        %v405 = vld [vmem:[%s355 + $0x98] sm:$0xff]
        %v406 = vld [vmem:[%s355 + $0xa0] sm:$0xff]
        %v407 = vld [vmem:[%s355 + $0xa8] sm:$0xff]
        %v408 = vld [vmem:[%s355 + $0xb0] sm:$0xff]
        %v409 = vld [vmem:[%s355 + $0xb8] sm:$0xff]
        %v410 = vld [vmem:[%s355 + $0xc0] sm:$0xff]
        %v411 = vld [vmem:[%s355 + $0xc8] sm:$0xff]
        %v412 = vld [vmem:[%s355 + $0xd0] sm:$0xff]
        %v413 = vld [vmem:[%s355 + $0xd8] sm:$0xff]
        %v414 = vld [vmem:[%s355 + $0xe0] sm:$0xff]
        %v415 = vld [vmem:[%s355 + $0xe8] sm:$0xff]
        %v416 = vld [vmem:[%s355 + $0xf0] sm:$0xff]
        %v417 = vld [vmem:[%s355 + $0xf8] sm:$0xff]
        %vm418 = vcmask 31744
        %419 = vst.msk [vmem:[#allocation2] sm:$0xff] %vm418, %v386
        %420 = vst.msk [vmem:[#allocation2 + $0x8] sm:$0xff] %vm418, %v387
        %421 = vst.msk [vmem:[#allocation2 + $0x10] sm:$0xff] %vm418, %v388
        %422 = vst.msk [vmem:[#allocation2 + $0x18] sm:$0xff] %vm418, %v389
        %423 = vst.msk [vmem:[#allocation2 + $0x20] sm:$0xff] %vm418, %v390
        %424 = vst.msk [vmem:[#allocation2 + $0x28] sm:$0xff] %vm418, %v391
        %425 = vst.msk [vmem:[#allocation2 + $0x30] sm:$0xff] %vm418, %v392
        %426 = vst.msk [vmem:[#allocation2 + $0x38] sm:$0xff] %vm418, %v393
        %427 = vst.msk [vmem:[#allocation2 + $0x40] sm:$0xff] %vm418, %v394
        %428 = vst.msk [vmem:[#allocation2 + $0x48] sm:$0xff] %vm418, %v395
        %429 = vst.msk [vmem:[#allocation2 + $0x50] sm:$0xff] %vm418, %v396
        %430 = vst.msk [vmem:[#allocation2 + $0x58] sm:$0xff] %vm418, %v397
        %431 = vst.msk [vmem:[#allocation2 + $0x60] sm:$0xff] %vm418, %v398
        %432 = vst.msk [vmem:[#allocation2 + $0x68] sm:$0xff] %vm418, %v399
        %433 = vst.msk [vmem:[#allocation2 + $0x70] sm:$0xff] %vm418, %v400
        %434 = vst.msk [vmem:[#allocation2 + $0x78] sm:$0xff] %vm418, %v401
        %435 = vst.msk [vmem:[#allocation2 + $0x80] sm:$0xff] %vm418, %v402
        %436 = vst.msk [vmem:[#allocation2 + $0x88] sm:$0xff] %vm418, %v403
        %437 = vst.msk [vmem:[#allocation2 + $0x90] sm:$0xff] %vm418, %v404
        %438 = vst.msk [vmem:[#allocation2 + $0x98] sm:$0xff] %vm418, %v405
        %439 = vst.msk [vmem:[#allocation2 + $0xa0] sm:$0xff] %vm418, %v406
        %440 = vst.msk [vmem:[#allocation2 + $0xa8] sm:$0xff] %vm418, %v407
        %441 = vst.msk [vmem:[#allocation2 + $0xb0] sm:$0xff] %vm418, %v408
        %442 = vst.msk [vmem:[#allocation2 + $0xb8] sm:$0xff] %vm418, %v409
        %443 = vst.msk [vmem:[#allocation2 + $0xc0] sm:$0xff] %vm418, %v410
        %444 = vst.msk [vmem:[#allocation2 + $0xc8] sm:$0xff] %vm418, %v411
        %445 = vst.msk [vmem:[#allocation2 + $0xd0] sm:$0xff] %vm418, %v412
        %446 = vst.msk [vmem:[#allocation2 + $0xd8] sm:$0xff] %vm418, %v413
        %447 = vst.msk [vmem:[#allocation2 + $0xe0] sm:$0xff] %vm418, %v414
        %448 = vst.msk [vmem:[#allocation2 + $0xe8] sm:$0xff] %vm418, %v415
        %449 = vst.msk [vmem:[#allocation2 + $0xf0] sm:$0xff] %vm418, %v416
        %450 = vst.msk [vmem:[#allocation2 + $0xf8] sm:$0xff] %vm418, %v417
      $region52: #{tpu_custom_call.1} parent=47 // pred_fallthru
        _
      %v451 = vld [vmem:[#allocation2] sm:$0xff]
      %v452 = vld [vmem:[#allocation2 + $0x8] sm:$0xff]
      %v453 = vld [vmem:[#allocation2 + $0x10] sm:$0xff]
      %v454 = vld [vmem:[#allocation2 + $0x18] sm:$0xff]
      %v455 = vld [vmem:[#allocation2 + $0x20] sm:$0xff]
      %v456 = vld [vmem:[#allocation2 + $0x28] sm:$0xff]
      %v457 = vld [vmem:[#allocation2 + $0x30] sm:$0xff]
      %v458 = vld [vmem:[#allocation2 + $0x38] sm:$0xff]
      %v459 = vld [vmem:[#allocation2 + $0x40] sm:$0xff]
      %v460 = vld [vmem:[#allocation2 + $0x48] sm:$0xff]
      %v461 = vld [vmem:[#allocation2 + $0x50] sm:$0xff]
      %v462 = vld [vmem:[#allocation2 + $0x58] sm:$0xff]
      %v463 = vld [vmem:[#allocation2 + $0x60] sm:$0xff]
      %v464 = vld [vmem:[#allocation2 + $0x68] sm:$0xff]
      %v465 = vld [vmem:[#allocation2 + $0x70] sm:$0xff]
      %v466 = vld [vmem:[#allocation2 + $0x78] sm:$0xff]
      %v467 = vld [vmem:[#allocation2 + $0x80] sm:$0xff]
      %v468 = vld [vmem:[#allocation2 + $0x88] sm:$0xff]
      %v469 = vld [vmem:[#allocation2 + $0x90] sm:$0xff]
      %v470 = vld [vmem:[#allocation2 + $0x98] sm:$0xff]
      %v471 = vld [vmem:[#allocation2 + $0xa0] sm:$0xff]
      %v472 = vld [vmem:[#allocation2 + $0xa8] sm:$0xff]
      %v473 = vld [vmem:[#allocation2 + $0xb0] sm:$0xff]
      %v474 = vld [vmem:[#allocation2 + $0xb8] sm:$0xff]
      %v475 = vld [vmem:[#allocation2 + $0xc0] sm:$0xff]
      %v476 = vld [vmem:[#allocation2 + $0xc8] sm:$0xff]
      %v477 = vld [vmem:[#allocation2 + $0xd0] sm:$0xff]
      %v478 = vld [vmem:[#allocation2 + $0xd8] sm:$0xff]
      %v479 = vld [vmem:[#allocation2 + $0xe0] sm:$0xff]
      %v480 = vld [vmem:[#allocation2 + $0xe8] sm:$0xff]
      %v481 = vld [vmem:[#allocation2 + $0xf0] sm:$0xff]
      %v482 = vld [vmem:[#allocation2 + $0xf8] sm:$0xff]
      %v483 = vpack.c.bf16 %v452, %v451
      %v484 = vpack.c.bf16 %v454, %v453
      %v485 = vpack.c.bf16 %v456, %v455
      %v486 = vpack.c.bf16 %v458, %v457
      %v487 = vpack.c.bf16 %v460, %v459
      %v488 = vpack.c.bf16 %v462, %v461
      %v489 = vpack.c.bf16 %v464, %v463
      %v490 = vpack.c.bf16 %v466, %v465
      %v491 = vpack.c.bf16 %v468, %v467
      %v492 = vpack.c.bf16 %v470, %v469
      %v493 = vpack.c.bf16 %v472, %v471
      %v494 = vpack.c.bf16 %v474, %v473
      %v495 = vpack.c.bf16 %v476, %v475
      %v496 = vpack.c.bf16 %v478, %v477
      %v497 = vpack.c.bf16 %v480, %v479
      %v498 = vpack.c.bf16 %v482, %v481
      %v499 = vld [vmem:[%s359] sm:$0x3]
      %vm500 = vcmask 31744
      %v502 = vsel %vm500, %v483, 0
      %v505 = vsel %vm500, %v484, 0
      %v508 = vsel %vm500, %v485, 0
      %v511 = vsel %vm500, %v486, 0
      %v514 = vsel %vm500, %v487, 0
      %v517 = vsel %vm500, %v488, 0
      %v520 = vsel %vm500, %v489, 0
      %v523 = vsel %vm500, %v490, 0
      %v526 = vsel %vm500, %v491, 0
      %v529 = vsel %vm500, %v492, 0
      %v532 = vsel %vm500, %v493, 0
      %v535 = vsel %vm500, %v494, 0
      %v538 = vsel %vm500, %v495, 0
      %v541 = vsel %vm500, %v496, 0
      %v544 = vsel %vm500, %v497, 0
      %v547 = vsel %vm500, %v498, 0
      %vm549 = vcmask 1041408
      %v551 = vsel %vm549, %v499, 0
      %553 = vmatprep.subr.bf16.mxu0 0
      %554 = vmatpush1.bf16.msra.mxu0 %v551
      %555 = vmatprep.subr.bf16.mxu0 0
      %556 = vmatpush1.bf16.msra.mxu0 0
      %557 = vmatprep.subr.bf16.mxu0 0
      %558 = vmatpush1.bf16.msra.mxu0 0
      %559 = vmatprep.subr.bf16.mxu0 0
      %560 = vmatpush1.bf16.msra.mxu0 0
      %561 = vmatprep.subr.bf16.mxu0 0
      %562 = vmatpush1.bf16.msra.mxu0 0
      %563 = vmatprep.subr.bf16.mxu0 0
      %564 = vmatpush1.bf16.msra.mxu0 0
      %565 = vmatprep.subr.bf16.mxu0 0
      %566 = vmatpush1.bf16.msra.mxu0 0
      %567 = vmatprep.subr.bf16.mxu0 0
      %568 = vmatpush1.bf16.msra.mxu0 0
      %569 = vmatprep.subr.bf16.mxu0 0
      %570 = vmatpush1.bf16.msra.mxu0 0
      %571 = vmatprep.subr.bf16.mxu0 0
      %572 = vmatpush1.bf16.msra.mxu0 0
      %573 = vmatprep.subr.bf16.mxu0 0
      %574 = vmatpush1.bf16.msra.mxu0 0
      %575 = vmatprep.subr.bf16.mxu0 0
      %576 = vmatpush1.bf16.msra.mxu0 0
      %577 = vmatprep.subr.bf16.mxu0 0
      %578 = vmatpush1.bf16.msra.mxu0 0
      %579 = vmatprep.subr.bf16.mxu0 0
      %580 = vmatpush1.bf16.msra.mxu0 0
      %581 = vmatprep.subr.bf16.mxu0 0
      %582 = vmatpush1.bf16.msra.mxu0 0
      %583 = vmatprep.subr.bf16.mxu0 0
      %584 = vmatpush1.bf16.msra.mxu0 0
      %585 = vmatprep.mubr.bf16.mxu0 0
      %586 = vmatmul.mubr.bf16.gmra.mrb[0].mxu0 %v502
      %v587 = vpop.f32.mrb[0].mxu0
      %v588 = vadd.f32 0.0, %v587
      %v589 = vpop.f32.mrb[0].mxu0
      %v590 = vpop.f32.mrb[0].mxu0
      %v591 = vadd.f32 0.0, %v590
      %v592 = vpop.f32.mrb[0].mxu0
      %593 = vmatprep.mubr.bf16.mxu0 0
      %594 = vmatmul.mubr.bf16.gmra.mrb[0].mxu0 %v505
      %v595 = vpop.f32.mrb[0].mxu0
      %v596 = vadd.f32 0.0, %v595
      %v597 = vpop.f32.mrb[0].mxu0
      %v598 = vpop.f32.mrb[0].mxu0
      %v599 = vadd.f32 0.0, %v598
      %v600 = vpop.f32.mrb[0].mxu0
      %601 = vmatprep.mubr.bf16.mxu0 0
      %602 = vmatmul.mubr.bf16.gmra.mrb[0].mxu0 %v508
      %v603 = vpop.f32.mrb[0].mxu0
      %v604 = vadd.f32 0.0, %v603
      %v605 = vpop.f32.mrb[0].mxu0
      %v606 = vpop.f32.mrb[0].mxu0
      %v607 = vadd.f32 0.0, %v606
      %v608 = vpop.f32.mrb[0].mxu0
      %609 = vmatprep.mubr.bf16.mxu0 0
      %610 = vmatmul.mubr.bf16.gmra.mrb[0].mxu0 %v511
      %v611 = vpop.f32.mrb[0].mxu0
      %v612 = vadd.f32 0.0, %v611
      %v613 = vpop.f32.mrb[0].mxu0
      %v614 = vpop.f32.mrb[0].mxu0
      %v615 = vadd.f32 0.0, %v614
      %v616 = vpop.f32.mrb[0].mxu0
      %617 = vmatprep.mubr.bf16.mxu0 0
      %618 = vmatmul.mubr.bf16.gmra.mrb[0].mxu0 %v514
      %v619 = vpop.f32.mrb[0].mxu0
      %v620 = vadd.f32 0.0, %v619
      %v621 = vpop.f32.mrb[0].mxu0
      %v622 = vpop.f32.mrb[0].mxu0
      %v623 = vadd.f32 0.0, %v622
      %v624 = vpop.f32.mrb[0].mxu0
      %625 = vmatprep.mubr.bf16.mxu0 0
      %626 = vmatmul.mubr.bf16.gmra.mrb[0].mxu0 %v517
      %v627 = vpop.f32.mrb[0].mxu0
      %v628 = vadd.f32 0.0, %v627
      %v629 = vpop.f32.mrb[0].mxu0
      %v630 = vpop.f32.mrb[0].mxu0
      %v631 = vadd.f32 0.0, %v630
      %v632 = vpop.f32.mrb[0].mxu0
      %633 = vmatprep.mubr.bf16.mxu0 0
      %634 = vmatmul.mubr.bf16.gmra.mrb[0].mxu0 %v520
      %v635 = vpop.f32.mrb[0].mxu0
      %v636 = vadd.f32 0.0, %v635
      %v637 = vpop.f32.mrb[0].mxu0
      %v638 = vpop.f32.mrb[0].mxu0
      %v639 = vadd.f32 0.0, %v638
      %v640 = vpop.f32.mrb[0].mxu0
      %641 = vmatprep.mubr.bf16.mxu0 0
      %642 = vmatmul.mubr.bf16.gmra.mrb[0].mxu0 %v523
      %v643 = vpop.f32.mrb[0].mxu0
      %v644 = vadd.f32 0.0, %v643
      %v645 = vpop.f32.mrb[0].mxu0
      %v646 = vpop.f32.mrb[0].mxu0
      %v647 = vadd.f32 0.0, %v646
      %v648 = vpop.f32.mrb[0].mxu0
      %649 = vmatprep.mubr.bf16.mxu0 0
      %650 = vmatmul.mubr.bf16.gmra.mrb[0].mxu0 %v526
      %v651 = vpop.f32.mrb[0].mxu0
      %v652 = vadd.f32 0.0, %v651
      %v653 = vpop.f32.mrb[0].mxu0
      %v654 = vpop.f32.mrb[0].mxu0
      %v655 = vadd.f32 0.0, %v654
      %v656 = vpop.f32.mrb[0].mxu0
      %657 = vmatprep.mubr.bf16.mxu0 0
      %658 = vmatmul.mubr.bf16.gmra.mrb[0].mxu0 %v529
      %v659 = vpop.f32.mrb[0].mxu0
      %v660 = vadd.f32 0.0, %v659
      %v661 = vpop.f32.mrb[0].mxu0
      %v662 = vpop.f32.mrb[0].mxu0
      %v663 = vadd.f32 0.0, %v662
      %v664 = vpop.f32.mrb[0].mxu0
      %665 = vmatprep.mubr.bf16.mxu0 0
      %666 = vmatmul.mubr.bf16.gmra.mrb[0].mxu0 %v532
      %v667 = vpop.f32.mrb[0].mxu0
      %v668 = vadd.f32 0.0, %v667
      %v669 = vpop.f32.mrb[0].mxu0
      %v670 = vpop.f32.mrb[0].mxu0
      %v671 = vadd.f32 0.0, %v670
      %v672 = vpop.f32.mrb[0].mxu0
      %673 = vmatprep.mubr.bf16.mxu0 0
      %674 = vmatmul.mubr.bf16.gmra.mrb[0].mxu0 %v535
      %v675 = vpop.f32.mrb[0].mxu0
      %v676 = vadd.f32 0.0, %v675
      %v677 = vpop.f32.mrb[0].mxu0
      %v678 = vpop.f32.mrb[0].mxu0
      %v679 = vadd.f32 0.0, %v678
      %v680 = vpop.f32.mrb[0].mxu0
      %681 = vmatprep.mubr.bf16.mxu0 0
      %682 = vmatmul.mubr.bf16.gmra.mrb[0].mxu0 %v538
      %v683 = vpop.f32.mrb[0].mxu0
      %v684 = vadd.f32 0.0, %v683
      %v685 = vpop.f32.mrb[0].mxu0
      %v686 = vpop.f32.mrb[0].mxu0
      %v687 = vadd.f32 0.0, %v686
      %v688 = vpop.f32.mrb[0].mxu0
      %689 = vmatprep.mubr.bf16.mxu0 0
      %690 = vmatmul.mubr.bf16.gmra.mrb[0].mxu0 %v541
      %v691 = vpop.f32.mrb[0].mxu0
      %v692 = vadd.f32 0.0, %v691
      %v693 = vpop.f32.mrb[0].mxu0
      %v694 = vpop.f32.mrb[0].mxu0
      %v695 = vadd.f32 0.0, %v694
      %v696 = vpop.f32.mrb[0].mxu0
      %697 = vmatprep.mubr.bf16.mxu0 0
      %698 = vmatmul.mubr.bf16.gmra.mrb[0].mxu0 %v544
      %v699 = vpop.f32.mrb[0].mxu0
      %v700 = vadd.f32 0.0, %v699
      %v701 = vpop.f32.mrb[0].mxu0
      %v702 = vpop.f32.mrb[0].mxu0
      %v703 = vadd.f32 0.0, %v702
      %v704 = vpop.f32.mrb[0].mxu0
      %705 = vmatprep.mubr.bf16.mxu0 0
      %706 = vmatmul.mubr.bf16.gmra.mrb[0].mxu0 %v547
      %v707 = vpop.f32.mrb[0].mxu0
      %v708 = vadd.f32 0.0, %v707
      %v709 = vpop.f32.mrb[0].mxu0
      %v710 = vpop.f32.mrb[0].mxu0
      %v711 = vadd.f32 0.0, %v710
      %v712 = vpop.f32.mrb[0].mxu0
      %713 = vdwg.mxu0
      %v714 = vld [vmem:[%s362] sm:$0x1]
      %v716 = vlaneseq
      %v717 = vshrl.u32 %v716, 7
      %v718 = vsub.s32 0, %v717
      %v719 = vrot.slane %v714, %v718
      %v721 = vmul.f32 %v588, %v719
      %v722 = vmul.f32 %v591, %v719
      %v723 = vmul.f32 %v596, %v719
      %v724 = vmul.f32 %v599, %v719
      %v725 = vmul.f32 %v604, %v719
      %v726 = vmul.f32 %v607, %v719
      %v727 = vmul.f32 %v612, %v719
      %v728 = vmul.f32 %v615, %v719
      %v729 = vmul.f32 %v620, %v719
      %v730 = vmul.f32 %v623, %v719
      %v731 = vmul.f32 %v628, %v719
      %v732 = vmul.f32 %v631, %v719
      %v733 = vmul.f32 %v636, %v719
      %v734 = vmul.f32 %v639, %v719
      %v735 = vmul.f32 %v644, %v719
      %v736 = vmul.f32 %v647, %v719
      %v737 = vmul.f32 %v652, %v719
      %v738 = vmul.f32 %v655, %v719
      %v739 = vmul.f32 %v660, %v719
      %v740 = vmul.f32 %v663, %v719
      %v741 = vmul.f32 %v668, %v719
      %v742 = vmul.f32 %v671, %v719
      %v743 = vmul.f32 %v676, %v719
      %v744 = vmul.f32 %v679, %v719
      %v745 = vmul.f32 %v684, %v719
      %v746 = vmul.f32 %v687, %v719
      %v747 = vmul.f32 %v692, %v719
      %v748 = vmul.f32 %v695, %v719
      %v749 = vmul.f32 %v700, %v719
      %v750 = vmul.f32 %v703, %v719
      %v751 = vmul.f32 %v708, %v719
      %v752 = vmul.f32 %v711, %v719
      %v753 = vld [vmem:[%s365] sm:$0x1]
      %v755 = vlaneseq
      %v756 = vshrl.u32 %v755, 7
      %v757 = vsub.s32 0, %v756
      %v758 = vrot.slane %v753, %v757
      %v760 = vadd.f32 %v721, %v758
      %v761 = vadd.f32 %v722, %v758
      %v762 = vadd.f32 %v723, %v758
      %v763 = vadd.f32 %v724, %v758
      %v764 = vadd.f32 %v725, %v758
      %v765 = vadd.f32 %v726, %v758
      %v766 = vadd.f32 %v727, %v758
      %v767 = vadd.f32 %v728, %v758
      %v768 = vadd.f32 %v729, %v758
      %v769 = vadd.f32 %v730, %v758
      %v770 = vadd.f32 %v731, %v758
      %v771 = vadd.f32 %v732, %v758
      %v772 = vadd.f32 %v733, %v758
      %v773 = vadd.f32 %v734, %v758
      %v774 = vadd.f32 %v735, %v758
      %v775 = vadd.f32 %v736, %v758
      %v776 = vadd.f32 %v737, %v758
      %v777 = vadd.f32 %v738, %v758
      %v778 = vadd.f32 %v739, %v758
      %v779 = vadd.f32 %v740, %v758
      %v780 = vadd.f32 %v741, %v758
      %v781 = vadd.f32 %v742, %v758
      %v782 = vadd.f32 %v743, %v758
      %v783 = vadd.f32 %v744, %v758
      %v784 = vadd.f32 %v745, %v758
      %v785 = vadd.f32 %v746, %v758
      %v786 = vadd.f32 %v747, %v758
      %v787 = vadd.f32 %v748, %v758
      %v788 = vadd.f32 %v749, %v758
      %v789 = vadd.f32 %v750, %v758
      %v790 = vadd.f32 %v751, %v758
      %v791 = vadd.f32 %v752, %v758
      %v792 = vmax.f32 %v760, 0.0
      %v793 = vmax.f32 %v761, 0.0
      %v794 = vmax.f32 %v762, 0.0
      %v795 = vmax.f32 %v763, 0.0
      %v796 = vmax.f32 %v764, 0.0
      %v797 = vmax.f32 %v765, 0.0
      %v798 = vmax.f32 %v766, 0.0
      %v799 = vmax.f32 %v767, 0.0
      %v800 = vmax.f32 %v768, 0.0
      %v801 = vmax.f32 %v769, 0.0
      %v802 = vmax.f32 %v770, 0.0
      %v803 = vmax.f32 %v771, 0.0
      %v804 = vmax.f32 %v772, 0.0
      %v805 = vmax.f32 %v773, 0.0
      %v806 = vmax.f32 %v774, 0.0
      %v807 = vmax.f32 %v775, 0.0
      %v808 = vmax.f32 %v776, 0.0
      %v809 = vmax.f32 %v777, 0.0
      %v810 = vmax.f32 %v778, 0.0
      %v811 = vmax.f32 %v779, 0.0
      %v812 = vmax.f32 %v780, 0.0
      %v813 = vmax.f32 %v781, 0.0
      %v814 = vmax.f32 %v782, 0.0
      %v815 = vmax.f32 %v783, 0.0
      %v816 = vmax.f32 %v784, 0.0
      %v817 = vmax.f32 %v785, 0.0
      %v818 = vmax.f32 %v786, 0.0
      %v819 = vmax.f32 %v787, 0.0
      %v820 = vmax.f32 %v788, 0.0
      %v821 = vmax.f32 %v789, 0.0
      %v822 = vmax.f32 %v790, 0.0
      %v823 = vmax.f32 %v791, 0.0
      %vm824 = vcmask 15360
      %825 = vst.msk [vmem:[#allocation3] sm:$0xff] %vm824, 0
      %826 = vst.msk [vmem:[#allocation3 + $0x90] sm:$0xff] %vm824, 0
      %827 = vst.msk [vmem:[#allocation3 + $0x120] sm:$0xff] %vm824, 0
      %s828 = scalar_lea.vmem [#allocation3], 136
      %829 = vst.msk [vmem:[%s828] sm:$0xff] %vm824, 0
      %830 = vst.msk [vmem:[%s828 + $0x90] sm:$0xff] %vm824, 0
      %831 = vst.msk [vmem:[%s828 + $0x120] sm:$0xff] %vm824, 0
      %vm864 = vcmask 1040384
      %v865 = vrot.slane %v792, 7
      %v866 = vrot.slane %v793, 7
      %v867 = vsel %vm864, %v865, %v866
      %v868 = vrot.slane %v794, 7
      %v869 = vrot.slane %v795, 7
      %v870 = vsel %vm864, %v868, %v869
      %v871 = vrot.slane %v796, 7
      %v872 = vrot.slane %v797, 7
      %v873 = vsel %vm864, %v871, %v872
      %v874 = vrot.slane %v798, 7
      %v875 = vrot.slane %v799, 7
      %v876 = vsel %vm864, %v874, %v875
      %v877 = vrot.slane %v800, 7
      %v878 = vrot.slane %v801, 7
      %v879 = vsel %vm864, %v877, %v878
      %v880 = vrot.slane %v802, 7
      %v881 = vrot.slane %v803, 7
      %v882 = vsel %vm864, %v880, %v881
      %v883 = vrot.slane %v804, 7
      %v884 = vrot.slane %v805, 7
      %v885 = vsel %vm864, %v883, %v884
      %v886 = vrot.slane %v806, 7
      %v887 = vrot.slane %v807, 7
      %v888 = vsel %vm864, %v886, %v887
      %v889 = vrot.slane %v808, 7
      %v890 = vrot.slane %v809, 7
      %v891 = vsel %vm864, %v889, %v890
      %v892 = vrot.slane %v810, 7
      %v893 = vrot.slane %v811, 7
      %v894 = vsel %vm864, %v892, %v893
      %v895 = vrot.slane %v812, 7
      %v896 = vrot.slane %v813, 7
      %v897 = vsel %vm864, %v895, %v896
      %v898 = vrot.slane %v814, 7
      %v899 = vrot.slane %v815, 7
      %v900 = vsel %vm864, %v898, %v899
      %v901 = vrot.slane %v816, 7
      %v902 = vrot.slane %v817, 7
      %v903 = vsel %vm864, %v901, %v902
      %v904 = vrot.slane %v818, 7
      %v905 = vrot.slane %v819, 7
      %v906 = vsel %vm864, %v904, %v905
      %v907 = vrot.slane %v820, 7
      %v908 = vrot.slane %v821, 7
      %v909 = vsel %vm864, %v907, %v908
      %v910 = vrot.slane %v822, 7
      %v911 = vrot.slane %v823, 7
      %v912 = vsel %vm864, %v910, %v911
      %v945 = vsel %vm864, 0.0, %v865
      %v946 = vsel %vm864, 0.0, %v868
      %v947 = vsel %vm864, 0.0, %v871
      %v948 = vsel %vm864, 0.0, %v874
      %v949 = vsel %vm864, 0.0, %v877
      %v950 = vsel %vm864, 0.0, %v880
      %v951 = vsel %vm864, 0.0, %v883
      %v952 = vsel %vm864, 0.0, %v886
      %v953 = vsel %vm864, 0.0, %v889
      %v954 = vsel %vm864, 0.0, %v892
      %v955 = vsel %vm864, 0.0, %v895
      %v956 = vsel %vm864, 0.0, %v898
      %v957 = vsel %vm864, 0.0, %v901
      %v958 = vsel %vm864, 0.0, %v904
      %v959 = vsel %vm864, 0.0, %v907
      %v960 = vsel %vm864, 0.0, %v910
      %vm961 = vcmask 1046528
      %v962 = vrot.slane %v792, 1
      %v963 = vrot.slane %v793, 1
      %v964 = vsel %vm961, %v962, %v963
      %v965 = vrot.slane %v794, 1
      %v966 = vrot.slane %v795, 1
      %v967 = vsel %vm961, %v965, %v966
      %v968 = vrot.slane %v796, 1
      %v969 = vrot.slane %v797, 1
      %v970 = vsel %vm961, %v968, %v969
      %v971 = vrot.slane %v798, 1
      %v972 = vrot.slane %v799, 1
      %v973 = vsel %vm961, %v971, %v972
      %v974 = vrot.slane %v800, 1
      %v975 = vrot.slane %v801, 1
      %v976 = vsel %vm961, %v974, %v975
      %v977 = vrot.slane %v802, 1
      %v978 = vrot.slane %v803, 1
      %v979 = vsel %vm961, %v977, %v978
      %v980 = vrot.slane %v804, 1
      %v981 = vrot.slane %v805, 1
      %v982 = vsel %vm961, %v980, %v981
      %v983 = vrot.slane %v806, 1
      %v984 = vrot.slane %v807, 1
      %v985 = vsel %vm961, %v983, %v984
      %v986 = vrot.slane %v808, 1
      %v987 = vrot.slane %v809, 1
      %v988 = vsel %vm961, %v986, %v987
      %v989 = vrot.slane %v810, 1
      %v990 = vrot.slane %v811, 1
      %v991 = vsel %vm961, %v989, %v990
      %v992 = vrot.slane %v812, 1
      %v993 = vrot.slane %v813, 1
      %v994 = vsel %vm961, %v992, %v993
      %v995 = vrot.slane %v814, 1
      %v996 = vrot.slane %v815, 1
      %v997 = vsel %vm961, %v995, %v996
      %v998 = vrot.slane %v816, 1
      %v999 = vrot.slane %v817, 1
      %v1000 = vsel %vm961, %v998, %v999
      %v1001 = vrot.slane %v818, 1
      %v1002 = vrot.slane %v819, 1
      %v1003 = vsel %vm961, %v1001, %v1002
      %v1004 = vrot.slane %v820, 1
      %v1005 = vrot.slane %v821, 1
      %v1006 = vsel %vm961, %v1004, %v1005
      %v1007 = vrot.slane %v822, 1
      %v1008 = vrot.slane %v823, 1
      %v1009 = vsel %vm961, %v1007, %v1008
      %v1042 = vsel %vm961, %v963, 0.0
      %v1043 = vsel %vm961, %v966, 0.0
      %v1044 = vsel %vm961, %v969, 0.0
      %v1045 = vsel %vm961, %v972, 0.0
      %v1046 = vsel %vm961, %v975, 0.0
      %v1047 = vsel %vm961, %v978, 0.0
      %v1048 = vsel %vm961, %v981, 0.0
      %v1049 = vsel %vm961, %v984, 0.0
      %v1050 = vsel %vm961, %v987, 0.0
      %v1051 = vsel %vm961, %v990, 0.0
      %v1052 = vsel %vm961, %v993, 0.0
      %v1053 = vsel %vm961, %v996, 0.0
      %v1054 = vsel %vm961, %v999, 0.0
      %v1055 = vsel %vm961, %v1002, 0.0
      %v1056 = vsel %vm961, %v1005, 0.0
      %v1057 = vsel %vm961, %v1008, 0.0
      %v1058 = vpack.c.bf16 %v867, %v945
      %v1059 = vpack.c.bf16 %v870, %v946
      %v1060 = vpack.c.bf16 %v873, %v947
      %v1061 = vpack.c.bf16 %v876, %v948
      %v1062 = vpack.c.bf16 %v879, %v949
      %v1063 = vpack.c.bf16 %v882, %v950
      %v1064 = vpack.c.bf16 %v885, %v951
      %v1065 = vpack.c.bf16 %v888, %v952
      %v1066 = vpack.c.bf16 %v891, %v953
      %v1067 = vpack.c.bf16 %v894, %v954
      %v1068 = vpack.c.bf16 %v897, %v955
      %v1069 = vpack.c.bf16 %v900, %v956
      %v1070 = vpack.c.bf16 %v903, %v957
      %v1071 = vpack.c.bf16 %v906, %v958
      %v1072 = vpack.c.bf16 %v909, %v959
      %v1073 = vpack.c.bf16 %v912, %v960
      %s1074 = scalar_lea.vmem [#allocation3], 8
      %1075 = vst.msk [vmem:[%s1074] sm:$0xff] %vm824, %v1058
      %1076 = vst.msk [vmem:[%s1074 + $0x8] sm:$0xff] %vm824, %v1059
      %1077 = vst.msk [vmem:[%s1074 + $0x10] sm:$0xff] %vm824, %v1060
      %1078 = vst.msk [vmem:[%s1074 + $0x18] sm:$0xff] %vm824, %v1061
      %1079 = vst.msk [vmem:[%s1074 + $0x20] sm:$0xff] %vm824, %v1062
      %1080 = vst.msk [vmem:[%s1074 + $0x28] sm:$0xff] %vm824, %v1063
      %1081 = vst.msk [vmem:[%s1074 + $0x30] sm:$0xff] %vm824, %v1064
      %1082 = vst.msk [vmem:[%s1074 + $0x38] sm:$0xff] %vm824, %v1065
      %1083 = vst.msk [vmem:[%s1074 + $0x40] sm:$0xff] %vm824, %v1066
      %1084 = vst.msk [vmem:[%s1074 + $0x48] sm:$0xff] %vm824, %v1067
      %1085 = vst.msk [vmem:[%s1074 + $0x50] sm:$0xff] %vm824, %v1068
      %1086 = vst.msk [vmem:[%s1074 + $0x58] sm:$0xff] %vm824, %v1069
      %1087 = vst.msk [vmem:[%s1074 + $0x60] sm:$0xff] %vm824, %v1070
      %1088 = vst.msk [vmem:[%s1074 + $0x68] sm:$0xff] %vm824, %v1071
      %1089 = vst.msk [vmem:[%s1074 + $0x70] sm:$0xff] %vm824, %v1072
      %1090 = vst.msk [vmem:[%s1074 + $0x78] sm:$0xff] %vm824, %v1073
      %v1091 = vpack.c.bf16 %v793, %v792
      %v1092 = vpack.c.bf16 %v795, %v794
      %v1093 = vpack.c.bf16 %v797, %v796
      %v1094 = vpack.c.bf16 %v799, %v798
      %v1095 = vpack.c.bf16 %v801, %v800
      %v1096 = vpack.c.bf16 %v803, %v802
      %v1097 = vpack.c.bf16 %v805, %v804
      %v1098 = vpack.c.bf16 %v807, %v806
      %v1099 = vpack.c.bf16 %v809, %v808
      %v1100 = vpack.c.bf16 %v811, %v810
      %v1101 = vpack.c.bf16 %v813, %v812
      %v1102 = vpack.c.bf16 %v815, %v814
      %v1103 = vpack.c.bf16 %v817, %v816
      %v1104 = vpack.c.bf16 %v819, %v818
      %v1105 = vpack.c.bf16 %v821, %v820
      %v1106 = vpack.c.bf16 %v823, %v822
      %s1107 = scalar_lea.vmem [#allocation3], 152
      %1108 = vst.msk [vmem:[%s1107] sm:$0xff] %vm824, %v1091
      %1109 = vst.msk [vmem:[%s1107 + $0x8] sm:$0xff] %vm824, %v1092
      %1110 = vst.msk [vmem:[%s1107 + $0x10] sm:$0xff] %vm824, %v1093
      %1111 = vst.msk [vmem:[%s1107 + $0x18] sm:$0xff] %vm824, %v1094
      %1112 = vst.msk [vmem:[%s1107 + $0x20] sm:$0xff] %vm824, %v1095
      %1113 = vst.msk [vmem:[%s1107 + $0x28] sm:$0xff] %vm824, %v1096
      %1114 = vst.msk [vmem:[%s1107 + $0x30] sm:$0xff] %vm824, %v1097
      %1115 = vst.msk [vmem:[%s1107 + $0x38] sm:$0xff] %vm824, %v1098
      %1116 = vst.msk [vmem:[%s1107 + $0x40] sm:$0xff] %vm824, %v1099
      %1117 = vst.msk [vmem:[%s1107 + $0x48] sm:$0xff] %vm824, %v1100
      %1118 = vst.msk [vmem:[%s1107 + $0x50] sm:$0xff] %vm824, %v1101
      %1119 = vst.msk [vmem:[%s1107 + $0x58] sm:$0xff] %vm824, %v1102
      %1120 = vst.msk [vmem:[%s1107 + $0x60] sm:$0xff] %vm824, %v1103
      %1121 = vst.msk [vmem:[%s1107 + $0x68] sm:$0xff] %vm824, %v1104
      %1122 = vst.msk [vmem:[%s1107 + $0x70] sm:$0xff] %vm824, %v1105
      %1123 = vst.msk [vmem:[%s1107 + $0x78] sm:$0xff] %vm824, %v1106
      %v1124 = vpack.c.bf16 %v1042, %v964
      %v1125 = vpack.c.bf16 %v1043, %v967
      %v1126 = vpack.c.bf16 %v1044, %v970
      %v1127 = vpack.c.bf16 %v1045, %v973
      %v1128 = vpack.c.bf16 %v1046, %v976
      %v1129 = vpack.c.bf16 %v1047, %v979
      %v1130 = vpack.c.bf16 %v1048, %v982
      %v1131 = vpack.c.bf16 %v1049, %v985
      %v1132 = vpack.c.bf16 %v1050, %v988
      %v1133 = vpack.c.bf16 %v1051, %v991
      %v1134 = vpack.c.bf16 %v1052, %v994
      %v1135 = vpack.c.bf16 %v1053, %v997
      %v1136 = vpack.c.bf16 %v1054, %v1000
      %v1137 = vpack.c.bf16 %v1055, %v1003
      %v1138 = vpack.c.bf16 %v1056, %v1006
      %v1139 = vpack.c.bf16 %v1057, %v1009
      %s1140 = scalar_lea.vmem [#allocation3], 296
      %1141 = vst.msk [vmem:[%s1140] sm:$0xff] %vm824, %v1124
      %1142 = vst.msk [vmem:[%s1140 + $0x8] sm:$0xff] %vm824, %v1125
      %1143 = vst.msk [vmem:[%s1140 + $0x10] sm:$0xff] %vm824, %v1126
      %1144 = vst.msk [vmem:[%s1140 + $0x18] sm:$0xff] %vm824, %v1127
      %1145 = vst.msk [vmem:[%s1140 + $0x20] sm:$0xff] %vm824, %v1128
      %1146 = vst.msk [vmem:[%s1140 + $0x28] sm:$0xff] %vm824, %v1129
      %1147 = vst.msk [vmem:[%s1140 + $0x30] sm:$0xff] %vm824, %v1130
      %1148 = vst.msk [vmem:[%s1140 + $0x38] sm:$0xff] %vm824, %v1131
      %1149 = vst.msk [vmem:[%s1140 + $0x40] sm:$0xff] %vm824, %v1132
      %1150 = vst.msk [vmem:[%s1140 + $0x48] sm:$0xff] %vm824, %v1133
      %1151 = vst.msk [vmem:[%s1140 + $0x50] sm:$0xff] %vm824, %v1134
      %1152 = vst.msk [vmem:[%s1140 + $0x58] sm:$0xff] %vm824, %v1135
      %1153 = vst.msk [vmem:[%s1140 + $0x60] sm:$0xff] %vm824, %v1136
      %1154 = vst.msk [vmem:[%s1140 + $0x68] sm:$0xff] %vm824, %v1137
      %1155 = vst.msk [vmem:[%s1140 + $0x70] sm:$0xff] %vm824, %v1138
      %1156 = vst.msk [vmem:[%s1140 + $0x78] sm:$0xff] %vm824, %v1139
      %v1157 = vld [vmem:[#allocation3] sm:$0xff]
      %v1158 = vld [vmem:[#allocation3 + $0x8] sm:$0xff]
      %v1159 = vld [vmem:[#allocation3 + $0x10] sm:$0xff]
      %v1160 = vld [vmem:[#allocation3 + $0x18] sm:$0xff]
      %v1161 = vld [vmem:[#allocation3 + $0x20] sm:$0xff]
      %v1162 = vld [vmem:[#allocation3 + $0x28] sm:$0xff]
      %v1163 = vld [vmem:[#allocation3 + $0x30] sm:$0xff]
      %v1164 = vld [vmem:[#allocation3 + $0x38] sm:$0xff]
      %v1165 = vld [vmem:[#allocation3 + $0x40] sm:$0xff]
      %v1166 = vld [vmem:[#allocation3 + $0x48] sm:$0xff]
      %v1167 = vld [vmem:[#allocation3 + $0x50] sm:$0xff]
      %v1168 = vld [vmem:[#allocation3 + $0x58] sm:$0xff]
      %v1169 = vld [vmem:[#allocation3 + $0x60] sm:$0xff]
      %v1170 = vld [vmem:[#allocation3 + $0x68] sm:$0xff]
      %v1171 = vld [vmem:[#allocation3 + $0x70] sm:$0xff]
      %v1172 = vld [vmem:[#allocation3 + $0x78] sm:$0xff]
      %v1173 = vld [vmem:[%s369] sm:$0x1]
      %v1175 = vsel %vm824, %v1157, 0
      %v1178 = vsel %vm824, %v1158, 0
      %v1181 = vsel %vm824, %v1159, 0
      %v1184 = vsel %vm824, %v1160, 0
      %v1187 = vsel %vm824, %v1161, 0
      %v1190 = vsel %vm824, %v1162, 0
      %v1193 = vsel %vm824, %v1163, 0
      %v1196 = vsel %vm824, %v1164, 0
      %v1199 = vsel %vm824, %v1165, 0
      %v1202 = vsel %vm824, %v1166, 0
      %v1205 = vsel %vm824, %v1167, 0
      %v1208 = vsel %vm824, %v1168, 0
      %v1211 = vsel %vm824, %v1169, 0
      %v1214 = vsel %vm824, %v1170, 0
      %v1217 = vsel %vm824, %v1171, 0
      %v1220 = vsel %vm824, %v1172, 0
      %v1223 = vsel %vm864, %v1173, 0
      %1225 = vmatprep.subr.bf16.mxu0 0
      %1226 = vmatpush1.bf16.msra.mxu0 %v1223
      %1227 = vmatprep.subr.bf16.mxu0 0
      %1228 = vmatpush1.bf16.msra.mxu0 0
      %1229 = vmatprep.subr.bf16.mxu0 0
      %1230 = vmatpush1.bf16.msra.mxu0 0
      %1231 = vmatprep.subr.bf16.mxu0 0
      %1232 = vmatpush1.bf16.msra.mxu0 0
      %1233 = vmatprep.subr.bf16.mxu0 0
      %1234 = vmatpush1.bf16.msra.mxu0 0
      %1235 = vmatprep.subr.bf16.mxu0 0
      %1236 = vmatpush1.bf16.msra.mxu0 0
      %1237 = vmatprep.subr.bf16.mxu0 0
      %1238 = vmatpush1.bf16.msra.mxu0 0
      %1239 = vmatprep.subr.bf16.mxu0 0
      %1240 = vmatpush1.bf16.msra.mxu0 0
      %1241 = vmatprep.subr.bf16.mxu0 0
      %1242 = vmatpush1.bf16.msra.mxu0 0
      %1243 = vmatprep.subr.bf16.mxu0 0
      %1244 = vmatpush1.bf16.msra.mxu0 0
      %1245 = vmatprep.subr.bf16.mxu0 0
      %1246 = vmatpush1.bf16.msra.mxu0 0
      %1247 = vmatprep.subr.bf16.mxu0 0
      %1248 = vmatpush1.bf16.msra.mxu0 0
      %1249 = vmatprep.subr.bf16.mxu0 0
      %1250 = vmatpush1.bf16.msra.mxu0 0
      %1251 = vmatprep.subr.bf16.mxu0 0
      %1252 = vmatpush1.bf16.msra.mxu0 0
      %1253 = vmatprep.subr.bf16.mxu0 0
      %1254 = vmatpush1.bf16.msra.mxu0 0
      %1255 = vmatprep.subr.bf16.mxu0 0
      %1256 = vmatpush1.bf16.msra.mxu0 0
      %1257 = vmatprep.mubr.bf16.mxu0 0
      %1258 = vmatmul.mubr.bf16.gmra.mrb[0].mxu0 %v1175
      %v1259 = vpop.f32.mrb[0].mxu0
      %v1260 = vadd.f32 0.0, %v1259
      %v1261 = vpop.f32.mrb[0].mxu0
      %v1262 = vpop.f32.mrb[0].mxu0
      %v1263 = vadd.f32 0.0, %v1262
      %v1264 = vpop.f32.mrb[0].mxu0
      %1265 = vmatprep.mubr.bf16.mxu0 0
      %1266 = vmatmul.mubr.bf16.gmra.mrb[0].mxu0 %v1178
      %v1267 = vpop.f32.mrb[0].mxu0
      %v1268 = vadd.f32 0.0, %v1267
      %v1269 = vpop.f32.mrb[0].mxu0
      %v1270 = vpop.f32.mrb[0].mxu0
      %v1271 = vadd.f32 0.0, %v1270
      %v1272 = vpop.f32.mrb[0].mxu0
      %1273 = vmatprep.mubr.bf16.mxu0 0
      %1274 = vmatmul.mubr.bf16.gmra.mrb[0].mxu0 %v1181
      %v1275 = vpop.f32.mrb[0].mxu0
      %v1276 = vadd.f32 0.0, %v1275
      %v1277 = vpop.f32.mrb[0].mxu0
      %v1278 = vpop.f32.mrb[0].mxu0
      %v1279 = vadd.f32 0.0, %v1278
      %v1280 = vpop.f32.mrb[0].mxu0
      %1281 = vmatprep.mubr.bf16.mxu0 0
      %1282 = vmatmul.mubr.bf16.gmra.mrb[0].mxu0 %v1184
      %v1283 = vpop.f32.mrb[0].mxu0
      %v1284 = vadd.f32 0.0, %v1283
      %v1285 = vpop.f32.mrb[0].mxu0
      %v1286 = vpop.f32.mrb[0].mxu0
      %v1287 = vadd.f32 0.0, %v1286
      %v1288 = vpop.f32.mrb[0].mxu0
      %1289 = vmatprep.mubr.bf16.mxu0 0
      %1290 = vmatmul.mubr.bf16.gmra.mrb[0].mxu0 %v1187
      %v1291 = vpop.f32.mrb[0].mxu0
      %v1292 = vadd.f32 0.0, %v1291
      %v1293 = vpop.f32.mrb[0].mxu0
      %v1294 = vpop.f32.mrb[0].mxu0
      %v1295 = vadd.f32 0.0, %v1294
      %v1296 = vpop.f32.mrb[0].mxu0
      %1297 = vmatprep.mubr.bf16.mxu0 0
      %1298 = vmatmul.mubr.bf16.gmra.mrb[0].mxu0 %v1190
      %v1299 = vpop.f32.mrb[0].mxu0
      %v1300 = vadd.f32 0.0, %v1299
      %v1301 = vpop.f32.mrb[0].mxu0
      %v1302 = vpop.f32.mrb[0].mxu0
      %v1303 = vadd.f32 0.0, %v1302
      %v1304 = vpop.f32.mrb[0].mxu0
      %1305 = vmatprep.mubr.bf16.mxu0 0
      %1306 = vmatmul.mubr.bf16.gmra.mrb[0].mxu0 %v1193
      %v1307 = vpop.f32.mrb[0].mxu0
      %v1308 = vadd.f32 0.0, %v1307
      %v1309 = vpop.f32.mrb[0].mxu0
      %v1310 = vpop.f32.mrb[0].mxu0
      %v1311 = vadd.f32 0.0, %v1310
      %v1312 = vpop.f32.mrb[0].mxu0
      %1313 = vmatprep.mubr.bf16.mxu0 0
      %1314 = vmatmul.mubr.bf16.gmra.mrb[0].mxu0 %v1196
      %v1315 = vpop.f32.mrb[0].mxu0
      %v1316 = vadd.f32 0.0, %v1315
      %v1317 = vpop.f32.mrb[0].mxu0
      %v1318 = vpop.f32.mrb[0].mxu0
      %v1319 = vadd.f32 0.0, %v1318
      %v1320 = vpop.f32.mrb[0].mxu0
      %1321 = vmatprep.mubr.bf16.mxu0 0
      %1322 = vmatmul.mubr.bf16.gmra.mrb[0].mxu0 %v1199
      %v1323 = vpop.f32.mrb[0].mxu0
      %v1324 = vadd.f32 0.0, %v1323
      %v1325 = vpop.f32.mrb[0].mxu0
      %v1326 = vpop.f32.mrb[0].mxu0
      %v1327 = vadd.f32 0.0, %v1326
      %v1328 = vpop.f32.mrb[0].mxu0
      %1329 = vmatprep.mubr.bf16.mxu0 0
      %1330 = vmatmul.mubr.bf16.gmra.mrb[0].mxu0 %v1202
      %v1331 = vpop.f32.mrb[0].mxu0
      %v1332 = vadd.f32 0.0, %v1331
      %v1333 = vpop.f32.mrb[0].mxu0
      %v1334 = vpop.f32.mrb[0].mxu0
      %v1335 = vadd.f32 0.0, %v1334
      %v1336 = vpop.f32.mrb[0].mxu0
      %1337 = vmatprep.mubr.bf16.mxu0 0
      %1338 = vmatmul.mubr.bf16.gmra.mrb[0].mxu0 %v1205
      %v1339 = vpop.f32.mrb[0].mxu0
      %v1340 = vadd.f32 0.0, %v1339
      %v1341 = vpop.f32.mrb[0].mxu0
      %v1342 = vpop.f32.mrb[0].mxu0
      %v1343 = vadd.f32 0.0, %v1342
      %v1344 = vpop.f32.mrb[0].mxu0
      %1345 = vmatprep.mubr.bf16.mxu0 0
      %1346 = vmatmul.mubr.bf16.gmra.mrb[0].mxu0 %v1208
      %v1347 = vpop.f32.mrb[0].mxu0
      %v1348 = vadd.f32 0.0, %v1347
      %v1349 = vpop.f32.mrb[0].mxu0
      %v1350 = vpop.f32.mrb[0].mxu0
      %v1351 = vadd.f32 0.0, %v1350
      %v1352 = vpop.f32.mrb[0].mxu0
      %1353 = vmatprep.mubr.bf16.mxu0 0
      %1354 = vmatmul.mubr.bf16.gmra.mrb[0].mxu0 %v1211
      %v1355 = vpop.f32.mrb[0].mxu0
      %v1356 = vadd.f32 0.0, %v1355
      %v1357 = vpop.f32.mrb[0].mxu0
      %v1358 = vpop.f32.mrb[0].mxu0
      %v1359 = vadd.f32 0.0, %v1358
      %v1360 = vpop.f32.mrb[0].mxu0
      %1361 = vmatprep.mubr.bf16.mxu0 0
      %1362 = vmatmul.mubr.bf16.gmra.mrb[0].mxu0 %v1214
      %v1363 = vpop.f32.mrb[0].mxu0
      %v1364 = vadd.f32 0.0, %v1363
      %v1365 = vpop.f32.mrb[0].mxu0
      %v1366 = vpop.f32.mrb[0].mxu0
      %v1367 = vadd.f32 0.0, %v1366
      %v1368 = vpop.f32.mrb[0].mxu0
      %1369 = vmatprep.mubr.bf16.mxu0 0
      %1370 = vmatmul.mubr.bf16.gmra.mrb[0].mxu0 %v1217
      %v1371 = vpop.f32.mrb[0].mxu0
      %v1372 = vadd.f32 0.0, %v1371
      %v1373 = vpop.f32.mrb[0].mxu0
      %v1374 = vpop.f32.mrb[0].mxu0
      %v1375 = vadd.f32 0.0, %v1374
      %v1376 = vpop.f32.mrb[0].mxu0
      %1377 = vmatprep.mubr.bf16.mxu0 0
      %1378 = vmatmul.mubr.bf16.gmra.mrb[0].mxu0 %v1220
      %v1379 = vpop.f32.mrb[0].mxu0
      %v1380 = vadd.f32 0.0, %v1379
      %v1381 = vpop.f32.mrb[0].mxu0
      %v1382 = vpop.f32.mrb[0].mxu0
      %v1383 = vadd.f32 0.0, %v1382
      %v1384 = vpop.f32.mrb[0].mxu0
      %1385 = vdwg.mxu0
      %1386 = vst.msk [vmem:[#allocation4] sm:$0xff] %vm500, %v1260
      %1387 = vst.msk [vmem:[#allocation4 + $0x8] sm:$0xff] %vm500, %v1263
      %1388 = vst.msk [vmem:[#allocation4 + $0x10] sm:$0xff] %vm500, %v1268
      %1389 = vst.msk [vmem:[#allocation4 + $0x18] sm:$0xff] %vm500, %v1271
      %1390 = vst.msk [vmem:[#allocation4 + $0x20] sm:$0xff] %vm500, %v1276
      %1391 = vst.msk [vmem:[#allocation4 + $0x28] sm:$0xff] %vm500, %v1279
      %1392 = vst.msk [vmem:[#allocation4 + $0x30] sm:$0xff] %vm500, %v1284
      %1393 = vst.msk [vmem:[#allocation4 + $0x38] sm:$0xff] %vm500, %v1287
      %1394 = vst.msk [vmem:[#allocation4 + $0x40] sm:$0xff] %vm500, %v1292
      %1395 = vst.msk [vmem:[#allocation4 + $0x48] sm:$0xff] %vm500, %v1295
      %1396 = vst.msk [vmem:[#allocation4 + $0x50] sm:$0xff] %vm500, %v1300
      %1397 = vst.msk [vmem:[#allocation4 + $0x58] sm:$0xff] %vm500, %v1303
      %1398 = vst.msk [vmem:[#allocation4 + $0x60] sm:$0xff] %vm500, %v1308
      %1399 = vst.msk [vmem:[#allocation4 + $0x68] sm:$0xff] %vm500, %v1311
      %1400 = vst.msk [vmem:[#allocation4 + $0x70] sm:$0xff] %vm500, %v1316
      %1401 = vst.msk [vmem:[#allocation4 + $0x78] sm:$0xff] %vm500, %v1319
      %1402 = vst.msk [vmem:[#allocation4 + $0x80] sm:$0xff] %vm500, %v1324
      %1403 = vst.msk [vmem:[#allocation4 + $0x88] sm:$0xff] %vm500, %v1327
      %1404 = vst.msk [vmem:[#allocation4 + $0x90] sm:$0xff] %vm500, %v1332
      %1405 = vst.msk [vmem:[#allocation4 + $0x98] sm:$0xff] %vm500, %v1335
      %1406 = vst.msk [vmem:[#allocation4 + $0xa0] sm:$0xff] %vm500, %v1340
      %1407 = vst.msk [vmem:[#allocation4 + $0xa8] sm:$0xff] %vm500, %v1343
      %1408 = vst.msk [vmem:[#allocation4 + $0xb0] sm:$0xff] %vm500, %v1348
      %1409 = vst.msk [vmem:[#allocation4 + $0xb8] sm:$0xff] %vm500, %v1351
      %1410 = vst.msk [vmem:[#allocation4 + $0xc0] sm:$0xff] %vm500, %v1356
      %1411 = vst.msk [vmem:[#allocation4 + $0xc8] sm:$0xff] %vm500, %v1359
      %1412 = vst.msk [vmem:[#allocation4 + $0xd0] sm:$0xff] %vm500, %v1364
      %1413 = vst.msk [vmem:[#allocation4 + $0xd8] sm:$0xff] %vm500, %v1367
      %1414 = vst.msk [vmem:[#allocation4 + $0xe0] sm:$0xff] %vm500, %v1372
      %1415 = vst.msk [vmem:[#allocation4 + $0xe8] sm:$0xff] %vm500, %v1375
      %1416 = vst.msk [vmem:[#allocation4 + $0xf0] sm:$0xff] %vm500, %v1380
      %1417 = vst.msk [vmem:[#allocation4 + $0xf8] sm:$0xff] %vm500, %v1383
      %s1418 = scalar_lea.vmem [#allocation3], 144
      %v1419 = vld [vmem:[%s1418] sm:$0xff]
      %v1420 = vld [vmem:[%s1418 + $0x8] sm:$0xff]
      %v1421 = vld [vmem:[%s1418 + $0x10] sm:$0xff]
      %v1422 = vld [vmem:[%s1418 + $0x18] sm:$0xff]
      %v1423 = vld [vmem:[%s1418 + $0x20] sm:$0xff]
      %v1424 = vld [vmem:[%s1418 + $0x28] sm:$0xff]
      %v1425 = vld [vmem:[%s1418 + $0x30] sm:$0xff]
      %v1426 = vld [vmem:[%s1418 + $0x38] sm:$0xff]
      %v1427 = vld [vmem:[%s1418 + $0x40] sm:$0xff]
      %v1428 = vld [vmem:[%s1418 + $0x48] sm:$0xff]
      %v1429 = vld [vmem:[%s1418 + $0x50] sm:$0xff]
      %v1430 = vld [vmem:[%s1418 + $0x58] sm:$0xff]
      %v1431 = vld [vmem:[%s1418 + $0x60] sm:$0xff]
      %v1432 = vld [vmem:[%s1418 + $0x68] sm:$0xff]
      %v1433 = vld [vmem:[%s1418 + $0x70] sm:$0xff]
      %v1434 = vld [vmem:[%s1418 + $0x78] sm:$0xff]
      %s1435 = scalar_lea.vmem %s369, 1
      %v1436 = vld [vmem:[%s1435] sm:$0x1]
      %v1438 = vsel %vm824, %v1419, 0
      %v1441 = vsel %vm824, %v1420, 0
      %v1444 = vsel %vm824, %v1421, 0
      %v1447 = vsel %vm824, %v1422, 0
      %v1450 = vsel %vm824, %v1423, 0
      %v1453 = vsel %vm824, %v1424, 0
      %v1456 = vsel %vm824, %v1425, 0
      %v1459 = vsel %vm824, %v1426, 0
      %v1462 = vsel %vm824, %v1427, 0
      %v1465 = vsel %vm824, %v1428, 0
      %v1468 = vsel %vm824, %v1429, 0
      %v1471 = vsel %vm824, %v1430, 0
      %v1474 = vsel %vm824, %v1431, 0
      %v1477 = vsel %vm824, %v1432, 0
      %v1480 = vsel %vm824, %v1433, 0
      %v1483 = vsel %vm824, %v1434, 0
      %v1486 = vsel %vm864, %v1436, 0
      %1488 = vmatprep.subr.bf16.mxu0 0
      %1489 = vmatpush1.bf16.msra.mxu0 %v1486
      %1490 = vmatprep.subr.bf16.mxu0 0
      %1491 = vmatpush1.bf16.msra.mxu0 0
      %1492 = vmatprep.subr.bf16.mxu0 0
      %1493 = vmatpush1.bf16.msra.mxu0 0
      %1494 = vmatprep.subr.bf16.mxu0 0
      %1495 = vmatpush1.bf16.msra.mxu0 0
      %1496 = vmatprep.subr.bf16.mxu0 0
      %1497 = vmatpush1.bf16.msra.mxu0 0
      %1498 = vmatprep.subr.bf16.mxu0 0
      %1499 = vmatpush1.bf16.msra.mxu0 0
      %1500 = vmatprep.subr.bf16.mxu0 0
      %1501 = vmatpush1.bf16.msra.mxu0 0
      %1502 = vmatprep.subr.bf16.mxu0 0
      %1503 = vmatpush1.bf16.msra.mxu0 0
      %1504 = vmatprep.subr.bf16.mxu0 0
      %1505 = vmatpush1.bf16.msra.mxu0 0
      %1506 = vmatprep.subr.bf16.mxu0 0
      %1507 = vmatpush1.bf16.msra.mxu0 0
      %1508 = vmatprep.subr.bf16.mxu0 0
      %1509 = vmatpush1.bf16.msra.mxu0 0
      %1510 = vmatprep.subr.bf16.mxu0 0
      %1511 = vmatpush1.bf16.msra.mxu0 0
      %1512 = vmatprep.subr.bf16.mxu0 0
      %1513 = vmatpush1.bf16.msra.mxu0 0
      %1514 = vmatprep.subr.bf16.mxu0 0
      %1515 = vmatpush1.bf16.msra.mxu0 0
      %1516 = vmatprep.subr.bf16.mxu0 0
      %1517 = vmatpush1.bf16.msra.mxu0 0
      %1518 = vmatprep.subr.bf16.mxu0 0
      %1519 = vmatpush1.bf16.msra.mxu0 0
      %1520 = vmatprep.mubr.bf16.mxu0 0
      %1521 = vmatmul.mubr.bf16.gmra.mrb[0].mxu0 %v1438
      %v1522 = vpop.f32.mrb[0].mxu0
      %v1523 = vadd.f32 0.0, %v1522
      %v1524 = vpop.f32.mrb[0].mxu0
      %v1525 = vpop.f32.mrb[0].mxu0
      %v1526 = vadd.f32 0.0, %v1525
      %v1527 = vpop.f32.mrb[0].mxu0
      %1528 = vmatprep.mubr.bf16.mxu0 0
      %1529 = vmatmul.mubr.bf16.gmra.mrb[0].mxu0 %v1441
      %v1530 = vpop.f32.mrb[0].mxu0
      %v1531 = vadd.f32 0.0, %v1530
      %v1532 = vpop.f32.mrb[0].mxu0
      %v1533 = vpop.f32.mrb[0].mxu0
      %v1534 = vadd.f32 0.0, %v1533
      %v1535 = vpop.f32.mrb[0].mxu0
      %1536 = vmatprep.mubr.bf16.mxu0 0
      %1537 = vmatmul.mubr.bf16.gmra.mrb[0].mxu0 %v1444
      %v1538 = vpop.f32.mrb[0].mxu0
      %v1539 = vadd.f32 0.0, %v1538
      %v1540 = vpop.f32.mrb[0].mxu0
      %v1541 = vpop.f32.mrb[0].mxu0
      %v1542 = vadd.f32 0.0, %v1541
      %v1543 = vpop.f32.mrb[0].mxu0
      %1544 = vmatprep.mubr.bf16.mxu0 0
      %1545 = vmatmul.mubr.bf16.gmra.mrb[0].mxu0 %v1447
      %v1546 = vpop.f32.mrb[0].mxu0
      %v1547 = vadd.f32 0.0, %v1546
      %v1548 = vpop.f32.mrb[0].mxu0
      %v1549 = vpop.f32.mrb[0].mxu0
      %v1550 = vadd.f32 0.0, %v1549
      %v1551 = vpop.f32.mrb[0].mxu0
      %1552 = vmatprep.mubr.bf16.mxu0 0
      %1553 = vmatmul.mubr.bf16.gmra.mrb[0].mxu0 %v1450
      %v1554 = vpop.f32.mrb[0].mxu0
      %v1555 = vadd.f32 0.0, %v1554
      %v1556 = vpop.f32.mrb[0].mxu0
      %v1557 = vpop.f32.mrb[0].mxu0
      %v1558 = vadd.f32 0.0, %v1557
      %v1559 = vpop.f32.mrb[0].mxu0
      %1560 = vmatprep.mubr.bf16.mxu0 0
      %1561 = vmatmul.mubr.bf16.gmra.mrb[0].mxu0 %v1453
      %v1562 = vpop.f32.mrb[0].mxu0
      %v1563 = vadd.f32 0.0, %v1562
      %v1564 = vpop.f32.mrb[0].mxu0
      %v1565 = vpop.f32.mrb[0].mxu0
      %v1566 = vadd.f32 0.0, %v1565
      %v1567 = vpop.f32.mrb[0].mxu0
      %1568 = vmatprep.mubr.bf16.mxu0 0
      %1569 = vmatmul.mubr.bf16.gmra.mrb[0].mxu0 %v1456
      %v1570 = vpop.f32.mrb[0].mxu0
      %v1571 = vadd.f32 0.0, %v1570
      %v1572 = vpop.f32.mrb[0].mxu0
      %v1573 = vpop.f32.mrb[0].mxu0
      %v1574 = vadd.f32 0.0, %v1573
      %v1575 = vpop.f32.mrb[0].mxu0
      %1576 = vmatprep.mubr.bf16.mxu0 0
      %1577 = vmatmul.mubr.bf16.gmra.mrb[0].mxu0 %v1459
      %v1578 = vpop.f32.mrb[0].mxu0
      %v1579 = vadd.f32 0.0, %v1578
      %v1580 = vpop.f32.mrb[0].mxu0
      %v1581 = vpop.f32.mrb[0].mxu0
      %v1582 = vadd.f32 0.0, %v1581
      %v1583 = vpop.f32.mrb[0].mxu0
      %1584 = vmatprep.mubr.bf16.mxu0 0
      %1585 = vmatmul.mubr.bf16.gmra.mrb[0].mxu0 %v1462
      %v1586 = vpop.f32.mrb[0].mxu0
      %v1587 = vadd.f32 0.0, %v1586
      %v1588 = vpop.f32.mrb[0].mxu0
      %v1589 = vpop.f32.mrb[0].mxu0
      %v1590 = vadd.f32 0.0, %v1589
      %v1591 = vpop.f32.mrb[0].mxu0
      %1592 = vmatprep.mubr.bf16.mxu0 0
      %1593 = vmatmul.mubr.bf16.gmra.mrb[0].mxu0 %v1465
      %v1594 = vpop.f32.mrb[0].mxu0
      %v1595 = vadd.f32 0.0, %v1594
      %v1596 = vpop.f32.mrb[0].mxu0
      %v1597 = vpop.f32.mrb[0].mxu0
      %v1598 = vadd.f32 0.0, %v1597
      %v1599 = vpop.f32.mrb[0].mxu0
      %1600 = vmatprep.mubr.bf16.mxu0 0
      %1601 = vmatmul.mubr.bf16.gmra.mrb[0].mxu0 %v1468
      %v1602 = vpop.f32.mrb[0].mxu0
      %v1603 = vadd.f32 0.0, %v1602
      %v1604 = vpop.f32.mrb[0].mxu0
      %v1605 = vpop.f32.mrb[0].mxu0
      %v1606 = vadd.f32 0.0, %v1605
      %v1607 = vpop.f32.mrb[0].mxu0
      %1608 = vmatprep.mubr.bf16.mxu0 0
      %1609 = vmatmul.mubr.bf16.gmra.mrb[0].mxu0 %v1471
      %v1610 = vpop.f32.mrb[0].mxu0
      %v1611 = vadd.f32 0.0, %v1610
      %v1612 = vpop.f32.mrb[0].mxu0
      %v1613 = vpop.f32.mrb[0].mxu0
      %v1614 = vadd.f32 0.0, %v1613
      %v1615 = vpop.f32.mrb[0].mxu0
      %1616 = vmatprep.mubr.bf16.mxu0 0
      %1617 = vmatmul.mubr.bf16.gmra.mrb[0].mxu0 %v1474
      %v1618 = vpop.f32.mrb[0].mxu0
      %v1619 = vadd.f32 0.0, %v1618
      %v1620 = vpop.f32.mrb[0].mxu0
      %v1621 = vpop.f32.mrb[0].mxu0
      %v1622 = vadd.f32 0.0, %v1621
      %v1623 = vpop.f32.mrb[0].mxu0
      %1624 = vmatprep.mubr.bf16.mxu0 0
      %1625 = vmatmul.mubr.bf16.gmra.mrb[0].mxu0 %v1477
      %v1626 = vpop.f32.mrb[0].mxu0
      %v1627 = vadd.f32 0.0, %v1626
      %v1628 = vpop.f32.mrb[0].mxu0
      %v1629 = vpop.f32.mrb[0].mxu0
      %v1630 = vadd.f32 0.0, %v1629
      %v1631 = vpop.f32.mrb[0].mxu0
      %1632 = vmatprep.mubr.bf16.mxu0 0
      %1633 = vmatmul.mubr.bf16.gmra.mrb[0].mxu0 %v1480
      %v1634 = vpop.f32.mrb[0].mxu0
      %v1635 = vadd.f32 0.0, %v1634
      %v1636 = vpop.f32.mrb[0].mxu0
      %v1637 = vpop.f32.mrb[0].mxu0
      %v1638 = vadd.f32 0.0, %v1637
      %v1639 = vpop.f32.mrb[0].mxu0
      %1640 = vmatprep.mubr.bf16.mxu0 0
      %1641 = vmatmul.mubr.bf16.gmra.mrb[0].mxu0 %v1483
      %v1642 = vpop.f32.mrb[0].mxu0
      %v1643 = vadd.f32 0.0, %v1642
      %v1644 = vpop.f32.mrb[0].mxu0
      %v1645 = vpop.f32.mrb[0].mxu0
      %v1646 = vadd.f32 0.0, %v1645
      %v1647 = vpop.f32.mrb[0].mxu0
      %1648 = vdwg.mxu0
      %v1649 = vld [vmem:[#allocation4] sm:$0xff]
      %v1650 = vld [vmem:[#allocation4 + $0x8] sm:$0xff]
      %v1651 = vld [vmem:[#allocation4 + $0x10] sm:$0xff]
      %v1652 = vld [vmem:[#allocation4 + $0x18] sm:$0xff]
      %v1653 = vld [vmem:[#allocation4 + $0x20] sm:$0xff]
      %v1654 = vld [vmem:[#allocation4 + $0x28] sm:$0xff]
      %v1655 = vld [vmem:[#allocation4 + $0x30] sm:$0xff]
      %v1656 = vld [vmem:[#allocation4 + $0x38] sm:$0xff]
      %v1657 = vld [vmem:[#allocation4 + $0x40] sm:$0xff]
      %v1658 = vld [vmem:[#allocation4 + $0x48] sm:$0xff]
      %v1659 = vld [vmem:[#allocation4 + $0x50] sm:$0xff]
      %v1660 = vld [vmem:[#allocation4 + $0x58] sm:$0xff]
      %v1661 = vld [vmem:[#allocation4 + $0x60] sm:$0xff]
      %v1662 = vld [vmem:[#allocation4 + $0x68] sm:$0xff]
      %v1663 = vld [vmem:[#allocation4 + $0x70] sm:$0xff]
      %v1664 = vld [vmem:[#allocation4 + $0x78] sm:$0xff]
      %v1665 = vld [vmem:[#allocation4 + $0x80] sm:$0xff]
      %v1666 = vld [vmem:[#allocation4 + $0x88] sm:$0xff]
      %v1667 = vld [vmem:[#allocation4 + $0x90] sm:$0xff]
      %v1668 = vld [vmem:[#allocation4 + $0x98] sm:$0xff]
      %v1669 = vld [vmem:[#allocation4 + $0xa0] sm:$0xff]
      %v1670 = vld [vmem:[#allocation4 + $0xa8] sm:$0xff]
      %v1671 = vld [vmem:[#allocation4 + $0xb0] sm:$0xff]
      %v1672 = vld [vmem:[#allocation4 + $0xb8] sm:$0xff]
      %v1673 = vld [vmem:[#allocation4 + $0xc0] sm:$0xff]
      %v1674 = vld [vmem:[#allocation4 + $0xc8] sm:$0xff]
      %v1675 = vld [vmem:[#allocation4 + $0xd0] sm:$0xff]
      %v1676 = vld [vmem:[#allocation4 + $0xd8] sm:$0xff]
      %v1677 = vld [vmem:[#allocation4 + $0xe0] sm:$0xff]
      %v1678 = vld [vmem:[#allocation4 + $0xe8] sm:$0xff]
      %v1679 = vld [vmem:[#allocation4 + $0xf0] sm:$0xff]
      %v1680 = vld [vmem:[#allocation4 + $0xf8] sm:$0xff]
      %v1681 = vadd.f32 %v1649, %v1523
      %v1682 = vadd.f32 %v1650, %v1526
      %v1683 = vadd.f32 %v1651, %v1531
      %v1684 = vadd.f32 %v1652, %v1534
      %v1685 = vadd.f32 %v1653, %v1539
      %v1686 = vadd.f32 %v1654, %v1542
      %v1687 = vadd.f32 %v1655, %v1547
      %v1688 = vadd.f32 %v1656, %v1550
      %v1689 = vadd.f32 %v1657, %v1555
      %v1690 = vadd.f32 %v1658, %v1558
      %v1691 = vadd.f32 %v1659, %v1563
      %v1692 = vadd.f32 %v1660, %v1566
      %v1693 = vadd.f32 %v1661, %v1571
      %v1694 = vadd.f32 %v1662, %v1574
      %v1695 = vadd.f32 %v1663, %v1579
      %v1696 = vadd.f32 %v1664, %v1582
      %v1697 = vadd.f32 %v1665, %v1587
      %v1698 = vadd.f32 %v1666, %v1590
      %v1699 = vadd.f32 %v1667, %v1595
      %v1700 = vadd.f32 %v1668, %v1598
      %v1701 = vadd.f32 %v1669, %v1603
      %v1702 = vadd.f32 %v1670, %v1606
      %v1703 = vadd.f32 %v1671, %v1611
      %v1704 = vadd.f32 %v1672, %v1614
      %v1705 = vadd.f32 %v1673, %v1619
      %v1706 = vadd.f32 %v1674, %v1622
      %v1707 = vadd.f32 %v1675, %v1627
      %v1708 = vadd.f32 %v1676, %v1630
      %v1709 = vadd.f32 %v1677, %v1635
      %v1710 = vadd.f32 %v1678, %v1638
      %v1711 = vadd.f32 %v1679, %v1643
      %v1712 = vadd.f32 %v1680, %v1646
      %1713 = vst.msk [vmem:[#allocation4] sm:$0xff] %vm500, %v1681
      %1714 = vst.msk [vmem:[#allocation4 + $0x8] sm:$0xff] %vm500, %v1682
      %1715 = vst.msk [vmem:[#allocation4 + $0x10] sm:$0xff] %vm500, %v1683
      %1716 = vst.msk [vmem:[#allocation4 + $0x18] sm:$0xff] %vm500, %v1684
      %1717 = vst.msk [vmem:[#allocation4 + $0x20] sm:$0xff] %vm500, %v1685
      %1718 = vst.msk [vmem:[#allocation4 + $0x28] sm:$0xff] %vm500, %v1686
      %1719 = vst.msk [vmem:[#allocation4 + $0x30] sm:$0xff] %vm500, %v1687
      %1720 = vst.msk [vmem:[#allocation4 + $0x38] sm:$0xff] %vm500, %v1688
      %1721 = vst.msk [vmem:[#allocation4 + $0x40] sm:$0xff] %vm500, %v1689
      %1722 = vst.msk [vmem:[#allocation4 + $0x48] sm:$0xff] %vm500, %v1690
      %1723 = vst.msk [vmem:[#allocation4 + $0x50] sm:$0xff] %vm500, %v1691
      %1724 = vst.msk [vmem:[#allocation4 + $0x58] sm:$0xff] %vm500, %v1692
      %1725 = vst.msk [vmem:[#allocation4 + $0x60] sm:$0xff] %vm500, %v1693
      %1726 = vst.msk [vmem:[#allocation4 + $0x68] sm:$0xff] %vm500, %v1694
      %1727 = vst.msk [vmem:[#allocation4 + $0x70] sm:$0xff] %vm500, %v1695
      %1728 = vst.msk [vmem:[#allocation4 + $0x78] sm:$0xff] %vm500, %v1696
      %1729 = vst.msk [vmem:[#allocation4 + $0x80] sm:$0xff] %vm500, %v1697
      %1730 = vst.msk [vmem:[#allocation4 + $0x88] sm:$0xff] %vm500, %v1698
      %1731 = vst.msk [vmem:[#allocation4 + $0x90] sm:$0xff] %vm500, %v1699
      %1732 = vst.msk [vmem:[#allocation4 + $0x98] sm:$0xff] %vm500, %v1700
      %1733 = vst.msk [vmem:[#allocation4 + $0xa0] sm:$0xff] %vm500, %v1701
      %1734 = vst.msk [vmem:[#allocation4 + $0xa8] sm:$0xff] %vm500, %v1702
      %1735 = vst.msk [vmem:[#allocation4 + $0xb0] sm:$0xff] %vm500, %v1703
      %1736 = vst.msk [vmem:[#allocation4 + $0xb8] sm:$0xff] %vm500, %v1704
      %1737 = vst.msk [vmem:[#allocation4 + $0xc0] sm:$0xff] %vm500, %v1705
      %1738 = vst.msk [vmem:[#allocation4 + $0xc8] sm:$0xff] %vm500, %v1706
      %1739 = vst.msk [vmem:[#allocation4 + $0xd0] sm:$0xff] %vm500, %v1707
      %1740 = vst.msk [vmem:[#allocation4 + $0xd8] sm:$0xff] %vm500, %v1708
      %1741 = vst.msk [vmem:[#allocation4 + $0xe0] sm:$0xff] %vm500, %v1709
      %1742 = vst.msk [vmem:[#allocation4 + $0xe8] sm:$0xff] %vm500, %v1710
      %1743 = vst.msk [vmem:[#allocation4 + $0xf0] sm:$0xff] %vm500, %v1711
      %1744 = vst.msk [vmem:[#allocation4 + $0xf8] sm:$0xff] %vm500, %v1712
      %s1745 = scalar_lea.vmem [#allocation3], 288
      %v1746 = vld [vmem:[%s1745] sm:$0xff]
      %v1747 = vld [vmem:[%s1745 + $0x8] sm:$0xff]
      %v1748 = vld [vmem:[%s1745 + $0x10] sm:$0xff]
      %v1749 = vld [vmem:[%s1745 + $0x18] sm:$0xff]
      %v1750 = vld [vmem:[%s1745 + $0x20] sm:$0xff]
      %v1751 = vld [vmem:[%s1745 + $0x28] sm:$0xff]
      %v1752 = vld [vmem:[%s1745 + $0x30] sm:$0xff]
      %v1753 = vld [vmem:[%s1745 + $0x38] sm:$0xff]
      %v1754 = vld [vmem:[%s1745 + $0x40] sm:$0xff]
      %v1755 = vld [vmem:[%s1745 + $0x48] sm:$0xff]
      %v1756 = vld [vmem:[%s1745 + $0x50] sm:$0xff]
      %v1757 = vld [vmem:[%s1745 + $0x58] sm:$0xff]
      %v1758 = vld [vmem:[%s1745 + $0x60] sm:$0xff]
      %v1759 = vld [vmem:[%s1745 + $0x68] sm:$0xff]
      %v1760 = vld [vmem:[%s1745 + $0x70] sm:$0xff]
      %v1761 = vld [vmem:[%s1745 + $0x78] sm:$0xff]
      %s1762 = scalar_lea.vmem %s369, 2
      %v1763 = vld [vmem:[%s1762] sm:$0x1]
      %v1765 = vsel %vm824, %v1746, 0
      %v1768 = vsel %vm824, %v1747, 0
      %v1771 = vsel %vm824, %v1748, 0
      %v1774 = vsel %vm824, %v1749, 0
      %v1777 = vsel %vm824, %v1750, 0
      %v1780 = vsel %vm824, %v1751, 0
      %v1783 = vsel %vm824, %v1752, 0
      %v1786 = vsel %vm824, %v1753, 0
      %v1789 = vsel %vm824, %v1754, 0
      %v1792 = vsel %vm824, %v1755, 0
      %v1795 = vsel %vm824, %v1756, 0
      %v1798 = vsel %vm824, %v1757, 0
      %v1801 = vsel %vm824, %v1758, 0
      %v1804 = vsel %vm824, %v1759, 0
      %v1807 = vsel %vm824, %v1760, 0
      %v1810 = vsel %vm824, %v1761, 0
      %v1813 = vsel %vm864, %v1763, 0
      %1815 = vmatprep.subr.bf16.mxu0 0
      %1816 = vmatpush1.bf16.msra.mxu0 %v1813
      %1817 = vmatprep.subr.bf16.mxu0 0
      %1818 = vmatpush1.bf16.msra.mxu0 0
      %1819 = vmatprep.subr.bf16.mxu0 0
      %1820 = vmatpush1.bf16.msra.mxu0 0
      %1821 = vmatprep.subr.bf16.mxu0 0
      %1822 = vmatpush1.bf16.msra.mxu0 0
      %1823 = vmatprep.subr.bf16.mxu0 0
      %1824 = vmatpush1.bf16.msra.mxu0 0
      %1825 = vmatprep.subr.bf16.mxu0 0
      %1826 = vmatpush1.bf16.msra.mxu0 0
      %1827 = vmatprep.subr.bf16.mxu0 0
      %1828 = vmatpush1.bf16.msra.mxu0 0
      %1829 = vmatprep.subr.bf16.mxu0 0
      %1830 = vmatpush1.bf16.msra.mxu0 0
      %1831 = vmatprep.subr.bf16.mxu0 0
      %1832 = vmatpush1.bf16.msra.mxu0 0
      %1833 = vmatprep.subr.bf16.mxu0 0
      %1834 = vmatpush1.bf16.msra.mxu0 0
      %1835 = vmatprep.subr.bf16.mxu0 0
      %1836 = vmatpush1.bf16.msra.mxu0 0
      %1837 = vmatprep.subr.bf16.mxu0 0
      %1838 = vmatpush1.bf16.msra.mxu0 0
      %1839 = vmatprep.subr.bf16.mxu0 0
      %1840 = vmatpush1.bf16.msra.mxu0 0
      %1841 = vmatprep.subr.bf16.mxu0 0
      %1842 = vmatpush1.bf16.msra.mxu0 0
      %1843 = vmatprep.subr.bf16.mxu0 0
      %1844 = vmatpush1.bf16.msra.mxu0 0
      %1845 = vmatprep.subr.bf16.mxu0 0
      %1846 = vmatpush1.bf16.msra.mxu0 0
      %1847 = vmatprep.mubr.bf16.mxu0 0
      %1848 = vmatmul.mubr.bf16.gmra.mrb[0].mxu0 %v1765
      %v1849 = vpop.f32.mrb[0].mxu0
      %v1850 = vadd.f32 0.0, %v1849
      %v1851 = vpop.f32.mrb[0].mxu0
      %v1852 = vpop.f32.mrb[0].mxu0
      %v1853 = vadd.f32 0.0, %v1852
      %v1854 = vpop.f32.mrb[0].mxu0
      %1855 = vmatprep.mubr.bf16.mxu0 0
      %1856 = vmatmul.mubr.bf16.gmra.mrb[0].mxu0 %v1768
      %v1857 = vpop.f32.mrb[0].mxu0
      %v1858 = vadd.f32 0.0, %v1857
      %v1859 = vpop.f32.mrb[0].mxu0
      %v1860 = vpop.f32.mrb[0].mxu0
      %v1861 = vadd.f32 0.0, %v1860
      %v1862 = vpop.f32.mrb[0].mxu0
      %1863 = vmatprep.mubr.bf16.mxu0 0
      %1864 = vmatmul.mubr.bf16.gmra.mrb[0].mxu0 %v1771
      %v1865 = vpop.f32.mrb[0].mxu0
      %v1866 = vadd.f32 0.0, %v1865
      %v1867 = vpop.f32.mrb[0].mxu0
      %v1868 = vpop.f32.mrb[0].mxu0
      %v1869 = vadd.f32 0.0, %v1868
      %v1870 = vpop.f32.mrb[0].mxu0
      %1871 = vmatprep.mubr.bf16.mxu0 0
      %1872 = vmatmul.mubr.bf16.gmra.mrb[0].mxu0 %v1774
      %v1873 = vpop.f32.mrb[0].mxu0
      %v1874 = vadd.f32 0.0, %v1873
      %v1875 = vpop.f32.mrb[0].mxu0
      %v1876 = vpop.f32.mrb[0].mxu0
      %v1877 = vadd.f32 0.0, %v1876
      %v1878 = vpop.f32.mrb[0].mxu0
      %1879 = vmatprep.mubr.bf16.mxu0 0
      %1880 = vmatmul.mubr.bf16.gmra.mrb[0].mxu0 %v1777
      %v1881 = vpop.f32.mrb[0].mxu0
      %v1882 = vadd.f32 0.0, %v1881
      %v1883 = vpop.f32.mrb[0].mxu0
      %v1884 = vpop.f32.mrb[0].mxu0
      %v1885 = vadd.f32 0.0, %v1884
      %v1886 = vpop.f32.mrb[0].mxu0
      %1887 = vmatprep.mubr.bf16.mxu0 0
      %1888 = vmatmul.mubr.bf16.gmra.mrb[0].mxu0 %v1780
      %v1889 = vpop.f32.mrb[0].mxu0
      %v1890 = vadd.f32 0.0, %v1889
      %v1891 = vpop.f32.mrb[0].mxu0
      %v1892 = vpop.f32.mrb[0].mxu0
      %v1893 = vadd.f32 0.0, %v1892
      %v1894 = vpop.f32.mrb[0].mxu0
      %1895 = vmatprep.mubr.bf16.mxu0 0
      %1896 = vmatmul.mubr.bf16.gmra.mrb[0].mxu0 %v1783
      %v1897 = vpop.f32.mrb[0].mxu0
      %v1898 = vadd.f32 0.0, %v1897
      %v1899 = vpop.f32.mrb[0].mxu0
      %v1900 = vpop.f32.mrb[0].mxu0
      %v1901 = vadd.f32 0.0, %v1900
      %v1902 = vpop.f32.mrb[0].mxu0
      %1903 = vmatprep.mubr.bf16.mxu0 0
      %1904 = vmatmul.mubr.bf16.gmra.mrb[0].mxu0 %v1786
      %v1905 = vpop.f32.mrb[0].mxu0
      %v1906 = vadd.f32 0.0, %v1905
      %v1907 = vpop.f32.mrb[0].mxu0
      %v1908 = vpop.f32.mrb[0].mxu0
      %v1909 = vadd.f32 0.0, %v1908
      %v1910 = vpop.f32.mrb[0].mxu0
      %1911 = vmatprep.mubr.bf16.mxu0 0
      %1912 = vmatmul.mubr.bf16.gmra.mrb[0].mxu0 %v1789
      %v1913 = vpop.f32.mrb[0].mxu0
      %v1914 = vadd.f32 0.0, %v1913
      %v1915 = vpop.f32.mrb[0].mxu0
      %v1916 = vpop.f32.mrb[0].mxu0
      %v1917 = vadd.f32 0.0, %v1916
      %v1918 = vpop.f32.mrb[0].mxu0
      %1919 = vmatprep.mubr.bf16.mxu0 0
      %1920 = vmatmul.mubr.bf16.gmra.mrb[0].mxu0 %v1792
      %v1921 = vpop.f32.mrb[0].mxu0
      %v1922 = vadd.f32 0.0, %v1921
      %v1923 = vpop.f32.mrb[0].mxu0
      %v1924 = vpop.f32.mrb[0].mxu0
      %v1925 = vadd.f32 0.0, %v1924
      %v1926 = vpop.f32.mrb[0].mxu0
      %1927 = vmatprep.mubr.bf16.mxu0 0
      %1928 = vmatmul.mubr.bf16.gmra.mrb[0].mxu0 %v1795
      %v1929 = vpop.f32.mrb[0].mxu0
      %v1930 = vadd.f32 0.0, %v1929
      %v1931 = vpop.f32.mrb[0].mxu0
      %v1932 = vpop.f32.mrb[0].mxu0
      %v1933 = vadd.f32 0.0, %v1932
      %v1934 = vpop.f32.mrb[0].mxu0
      %1935 = vmatprep.mubr.bf16.mxu0 0
      %1936 = vmatmul.mubr.bf16.gmra.mrb[0].mxu0 %v1798
      %v1937 = vpop.f32.mrb[0].mxu0
      %v1938 = vadd.f32 0.0, %v1937
      %v1939 = vpop.f32.mrb[0].mxu0
      %v1940 = vpop.f32.mrb[0].mxu0
      %v1941 = vadd.f32 0.0, %v1940
      %v1942 = vpop.f32.mrb[0].mxu0
      %1943 = vmatprep.mubr.bf16.mxu0 0
      %1944 = vmatmul.mubr.bf16.gmra.mrb[0].mxu0 %v1801
      %v1945 = vpop.f32.mrb[0].mxu0
      %v1946 = vadd.f32 0.0, %v1945
      %v1947 = vpop.f32.mrb[0].mxu0
      %v1948 = vpop.f32.mrb[0].mxu0
      %v1949 = vadd.f32 0.0, %v1948
      %v1950 = vpop.f32.mrb[0].mxu0
      %1951 = vmatprep.mubr.bf16.mxu0 0
      %1952 = vmatmul.mubr.bf16.gmra.mrb[0].mxu0 %v1804
      %v1953 = vpop.f32.mrb[0].mxu0
      %v1954 = vadd.f32 0.0, %v1953
      %v1955 = vpop.f32.mrb[0].mxu0
      %v1956 = vpop.f32.mrb[0].mxu0
      %v1957 = vadd.f32 0.0, %v1956
      %v1958 = vpop.f32.mrb[0].mxu0
      %1959 = vmatprep.mubr.bf16.mxu0 0
      %1960 = vmatmul.mubr.bf16.gmra.mrb[0].mxu0 %v1807
      %v1961 = vpop.f32.mrb[0].mxu0
      %v1962 = vadd.f32 0.0, %v1961
      %v1963 = vpop.f32.mrb[0].mxu0
      %v1964 = vpop.f32.mrb[0].mxu0
      %v1965 = vadd.f32 0.0, %v1964
      %v1966 = vpop.f32.mrb[0].mxu0
      %1967 = vmatprep.mubr.bf16.mxu0 0
      %1968 = vmatmul.mubr.bf16.gmra.mrb[0].mxu0 %v1810
      %v1969 = vpop.f32.mrb[0].mxu0
      %v1970 = vadd.f32 0.0, %v1969
      %v1971 = vpop.f32.mrb[0].mxu0
      %v1972 = vpop.f32.mrb[0].mxu0
      %v1973 = vadd.f32 0.0, %v1972
      %v1974 = vpop.f32.mrb[0].mxu0
      %1975 = vdwg.mxu0
      %v1976 = vld [vmem:[#allocation4] sm:$0xff]
      %v1977 = vld [vmem:[#allocation4 + $0x8] sm:$0xff]
      %v1978 = vld [vmem:[#allocation4 + $0x10] sm:$0xff]
      %v1979 = vld [vmem:[#allocation4 + $0x18] sm:$0xff]
      %v1980 = vld [vmem:[#allocation4 + $0x20] sm:$0xff]
      %v1981 = vld [vmem:[#allocation4 + $0x28] sm:$0xff]
      %v1982 = vld [vmem:[#allocation4 + $0x30] sm:$0xff]
      %v1983 = vld [vmem:[#allocation4 + $0x38] sm:$0xff]
      %v1984 = vld [vmem:[#allocation4 + $0x40] sm:$0xff]
      %v1985 = vld [vmem:[#allocation4 + $0x48] sm:$0xff]
      %v1986 = vld [vmem:[#allocation4 + $0x50] sm:$0xff]
      %v1987 = vld [vmem:[#allocation4 + $0x58] sm:$0xff]
      %v1988 = vld [vmem:[#allocation4 + $0x60] sm:$0xff]
      %v1989 = vld [vmem:[#allocation4 + $0x68] sm:$0xff]
      %v1990 = vld [vmem:[#allocation4 + $0x70] sm:$0xff]
      %v1991 = vld [vmem:[#allocation4 + $0x78] sm:$0xff]
      %v1992 = vld [vmem:[#allocation4 + $0x80] sm:$0xff]
      %v1993 = vld [vmem:[#allocation4 + $0x88] sm:$0xff]
      %v1994 = vld [vmem:[#allocation4 + $0x90] sm:$0xff]
      %v1995 = vld [vmem:[#allocation4 + $0x98] sm:$0xff]
      %v1996 = vld [vmem:[#allocation4 + $0xa0] sm:$0xff]
      %v1997 = vld [vmem:[#allocation4 + $0xa8] sm:$0xff]
      %v1998 = vld [vmem:[#allocation4 + $0xb0] sm:$0xff]
      %v1999 = vld [vmem:[#allocation4 + $0xb8] sm:$0xff]
      %v2000 = vld [vmem:[#allocation4 + $0xc0] sm:$0xff]
      %v2001 = vld [vmem:[#allocation4 + $0xc8] sm:$0xff]
      %v2002 = vld [vmem:[#allocation4 + $0xd0] sm:$0xff]
      %v2003 = vld [vmem:[#allocation4 + $0xd8] sm:$0xff]
      %v2004 = vld [vmem:[#allocation4 + $0xe0] sm:$0xff]
      %v2005 = vld [vmem:[#allocation4 + $0xe8] sm:$0xff]
      %v2006 = vld [vmem:[#allocation4 + $0xf0] sm:$0xff]
      %v2007 = vld [vmem:[#allocation4 + $0xf8] sm:$0xff]
      %v2008 = vadd.f32 %v1976, %v1850
      %v2009 = vadd.f32 %v1977, %v1853
      %v2010 = vadd.f32 %v1978, %v1858
      %v2011 = vadd.f32 %v1979, %v1861
      %v2012 = vadd.f32 %v1980, %v1866
      %v2013 = vadd.f32 %v1981, %v1869
      %v2014 = vadd.f32 %v1982, %v1874
      %v2015 = vadd.f32 %v1983, %v1877
      %v2016 = vadd.f32 %v1984, %v1882
      %v2017 = vadd.f32 %v1985, %v1885
      %v2018 = vadd.f32 %v1986, %v1890
      %v2019 = vadd.f32 %v1987, %v1893
      %v2020 = vadd.f32 %v1988, %v1898
      %v2021 = vadd.f32 %v1989, %v1901
      %v2022 = vadd.f32 %v1990, %v1906
      %v2023 = vadd.f32 %v1991, %v1909
      %v2024 = vadd.f32 %v1992, %v1914
      %v2025 = vadd.f32 %v1993, %v1917
      %v2026 = vadd.f32 %v1994, %v1922
      %v2027 = vadd.f32 %v1995, %v1925
      %v2028 = vadd.f32 %v1996, %v1930
      %v2029 = vadd.f32 %v1997, %v1933
      %v2030 = vadd.f32 %v1998, %v1938
      %v2031 = vadd.f32 %v1999, %v1941
      %v2032 = vadd.f32 %v2000, %v1946
      %v2033 = vadd.f32 %v2001, %v1949
      %v2034 = vadd.f32 %v2002, %v1954
      %v2035 = vadd.f32 %v2003, %v1957
      %v2036 = vadd.f32 %v2004, %v1962
      %v2037 = vadd.f32 %v2005, %v1965
      %v2038 = vadd.f32 %v2006, %v1970
      %v2039 = vadd.f32 %v2007, %v1973
      %2040 = vst.msk [vmem:[#allocation4] sm:$0xff] %vm500, %v2008
      %2041 = vst.msk [vmem:[#allocation4 + $0x8] sm:$0xff] %vm500, %v2009
      %2042 = vst.msk [vmem:[#allocation4 + $0x10] sm:$0xff] %vm500, %v2010
      %2043 = vst.msk [vmem:[#allocation4 + $0x18] sm:$0xff] %vm500, %v2011
      %2044 = vst.msk [vmem:[#allocation4 + $0x20] sm:$0xff] %vm500, %v2012
      %2045 = vst.msk [vmem:[#allocation4 + $0x28] sm:$0xff] %vm500, %v2013
      %2046 = vst.msk [vmem:[#allocation4 + $0x30] sm:$0xff] %vm500, %v2014
      %2047 = vst.msk [vmem:[#allocation4 + $0x38] sm:$0xff] %vm500, %v2015
      %2048 = vst.msk [vmem:[#allocation4 + $0x40] sm:$0xff] %vm500, %v2016
      %2049 = vst.msk [vmem:[#allocation4 + $0x48] sm:$0xff] %vm500, %v2017
      %2050 = vst.msk [vmem:[#allocation4 + $0x50] sm:$0xff] %vm500, %v2018
      %2051 = vst.msk [vmem:[#allocation4 + $0x58] sm:$0xff] %vm500, %v2019
      %2052 = vst.msk [vmem:[#allocation4 + $0x60] sm:$0xff] %vm500, %v2020
      %2053 = vst.msk [vmem:[#allocation4 + $0x68] sm:$0xff] %vm500, %v2021
      %2054 = vst.msk [vmem:[#allocation4 + $0x70] sm:$0xff] %vm500, %v2022
      %2055 = vst.msk [vmem:[#allocation4 + $0x78] sm:$0xff] %vm500, %v2023
      %2056 = vst.msk [vmem:[#allocation4 + $0x80] sm:$0xff] %vm500, %v2024
      %2057 = vst.msk [vmem:[#allocation4 + $0x88] sm:$0xff] %vm500, %v2025
      %2058 = vst.msk [vmem:[#allocation4 + $0x90] sm:$0xff] %vm500, %v2026
      %2059 = vst.msk [vmem:[#allocation4 + $0x98] sm:$0xff] %vm500, %v2027
      %2060 = vst.msk [vmem:[#allocation4 + $0xa0] sm:$0xff] %vm500, %v2028
      %2061 = vst.msk [vmem:[#allocation4 + $0xa8] sm:$0xff] %vm500, %v2029
      %2062 = vst.msk [vmem:[#allocation4 + $0xb0] sm:$0xff] %vm500, %v2030
      %2063 = vst.msk [vmem:[#allocation4 + $0xb8] sm:$0xff] %vm500, %v2031
      %2064 = vst.msk [vmem:[#allocation4 + $0xc0] sm:$0xff] %vm500, %v2032
      %2065 = vst.msk [vmem:[#allocation4 + $0xc8] sm:$0xff] %vm500, %v2033
      %2066 = vst.msk [vmem:[#allocation4 + $0xd0] sm:$0xff] %vm500, %v2034
      %2067 = vst.msk [vmem:[#allocation4 + $0xd8] sm:$0xff] %vm500, %v2035
      %2068 = vst.msk [vmem:[#allocation4 + $0xe0] sm:$0xff] %vm500, %v2036
      %2069 = vst.msk [vmem:[#allocation4 + $0xe8] sm:$0xff] %vm500, %v2037
      %2070 = vst.msk [vmem:[#allocation4 + $0xf0] sm:$0xff] %vm500, %v2038
      %2071 = vst.msk [vmem:[#allocation4 + $0xf8] sm:$0xff] %vm500, %v2039
      %v2072 = vld [vmem:[%s1074] sm:$0xff]
      %v2073 = vld [vmem:[%s1074 + $0x8] sm:$0xff]
      %v2074 = vld [vmem:[%s1074 + $0x10] sm:$0xff]
      %v2075 = vld [vmem:[%s1074 + $0x18] sm:$0xff]
      %v2076 = vld [vmem:[%s1074 + $0x20] sm:$0xff]
      %v2077 = vld [vmem:[%s1074 + $0x28] sm:$0xff]
      %v2078 = vld [vmem:[%s1074 + $0x30] sm:$0xff]
      %v2079 = vld [vmem:[%s1074 + $0x38] sm:$0xff]
      %v2080 = vld [vmem:[%s1074 + $0x40] sm:$0xff]
      %v2081 = vld [vmem:[%s1074 + $0x48] sm:$0xff]
      %v2082 = vld [vmem:[%s1074 + $0x50] sm:$0xff]
      %v2083 = vld [vmem:[%s1074 + $0x58] sm:$0xff]
      %v2084 = vld [vmem:[%s1074 + $0x60] sm:$0xff]
      %v2085 = vld [vmem:[%s1074 + $0x68] sm:$0xff]
      %v2086 = vld [vmem:[%s1074 + $0x70] sm:$0xff]
      %v2087 = vld [vmem:[%s1074 + $0x78] sm:$0xff]
      %s2088 = scalar_lea.vmem %s369, 3
      %v2089 = vld [vmem:[%s2088] sm:$0x1]
      %v2091 = vsel %vm824, %v2072, 0
      %v2094 = vsel %vm824, %v2073, 0
      %v2097 = vsel %vm824, %v2074, 0
      %v2100 = vsel %vm824, %v2075, 0
      %v2103 = vsel %vm824, %v2076, 0
      %v2106 = vsel %vm824, %v2077, 0
      %v2109 = vsel %vm824, %v2078, 0
      %v2112 = vsel %vm824, %v2079, 0
      %v2115 = vsel %vm824, %v2080, 0
      %v2118 = vsel %vm824, %v2081, 0
      %v2121 = vsel %vm824, %v2082, 0
      %v2124 = vsel %vm824, %v2083, 0
      %v2127 = vsel %vm824, %v2084, 0
      %v2130 = vsel %vm824, %v2085, 0
      %v2133 = vsel %vm824, %v2086, 0
      %v2136 = vsel %vm824, %v2087, 0
      %v2139 = vsel %vm864, %v2089, 0
      %2141 = vmatprep.subr.bf16.mxu0 0
      %2142 = vmatpush1.bf16.msra.mxu0 %v2139
      %2143 = vmatprep.subr.bf16.mxu0 0
      %2144 = vmatpush1.bf16.msra.mxu0 0
      %2145 = vmatprep.subr.bf16.mxu0 0
      %2146 = vmatpush1.bf16.msra.mxu0 0
      %2147 = vmatprep.subr.bf16.mxu0 0
      %2148 = vmatpush1.bf16.msra.mxu0 0
      %2149 = vmatprep.subr.bf16.mxu0 0
      %2150 = vmatpush1.bf16.msra.mxu0 0
      %2151 = vmatprep.subr.bf16.mxu0 0
      %2152 = vmatpush1.bf16.msra.mxu0 0
      %2153 = vmatprep.subr.bf16.mxu0 0
      %2154 = vmatpush1.bf16.msra.mxu0 0
      %2155 = vmatprep.subr.bf16.mxu0 0
      %2156 = vmatpush1.bf16.msra.mxu0 0
      %2157 = vmatprep.subr.bf16.mxu0 0
      %2158 = vmatpush1.bf16.msra.mxu0 0
      %2159 = vmatprep.subr.bf16.mxu0 0
      %2160 = vmatpush1.bf16.msra.mxu0 0
      %2161 = vmatprep.subr.bf16.mxu0 0
      %2162 = vmatpush1.bf16.msra.mxu0 0
      %2163 = vmatprep.subr.bf16.mxu0 0
      %2164 = vmatpush1.bf16.msra.mxu0 0
      %2165 = vmatprep.subr.bf16.mxu0 0
      %2166 = vmatpush1.bf16.msra.mxu0 0
      %2167 = vmatprep.subr.bf16.mxu0 0
      %2168 = vmatpush1.bf16.msra.mxu0 0
      %2169 = vmatprep.subr.bf16.mxu0 0
      %2170 = vmatpush1.bf16.msra.mxu0 0
      %2171 = vmatprep.subr.bf16.mxu0 0
      %2172 = vmatpush1.bf16.msra.mxu0 0
      %2173 = vmatprep.mubr.bf16.mxu0 0
      %2174 = vmatmul.mubr.bf16.gmra.mrb[0].mxu0 %v2091
      %v2175 = vpop.f32.mrb[0].mxu0
      %v2176 = vadd.f32 0.0, %v2175
      %v2177 = vpop.f32.mrb[0].mxu0
      %v2178 = vpop.f32.mrb[0].mxu0
      %v2179 = vadd.f32 0.0, %v2178
      %v2180 = vpop.f32.mrb[0].mxu0
      %2181 = vmatprep.mubr.bf16.mxu0 0
      %2182 = vmatmul.mubr.bf16.gmra.mrb[0].mxu0 %v2094
      %v2183 = vpop.f32.mrb[0].mxu0
      %v2184 = vadd.f32 0.0, %v2183
      %v2185 = vpop.f32.mrb[0].mxu0
      %v2186 = vpop.f32.mrb[0].mxu0
      %v2187 = vadd.f32 0.0, %v2186
      %v2188 = vpop.f32.mrb[0].mxu0
      %2189 = vmatprep.mubr.bf16.mxu0 0
      %2190 = vmatmul.mubr.bf16.gmra.mrb[0].mxu0 %v2097
      %v2191 = vpop.f32.mrb[0].mxu0
      %v2192 = vadd.f32 0.0, %v2191
      %v2193 = vpop.f32.mrb[0].mxu0
      %v2194 = vpop.f32.mrb[0].mxu0
      %v2195 = vadd.f32 0.0, %v2194
      %v2196 = vpop.f32.mrb[0].mxu0
      %2197 = vmatprep.mubr.bf16.mxu0 0
      %2198 = vmatmul.mubr.bf16.gmra.mrb[0].mxu0 %v2100
      %v2199 = vpop.f32.mrb[0].mxu0
      %v2200 = vadd.f32 0.0, %v2199
      %v2201 = vpop.f32.mrb[0].mxu0
      %v2202 = vpop.f32.mrb[0].mxu0
      %v2203 = vadd.f32 0.0, %v2202
      %v2204 = vpop.f32.mrb[0].mxu0
      %2205 = vmatprep.mubr.bf16.mxu0 0
      %2206 = vmatmul.mubr.bf16.gmra.mrb[0].mxu0 %v2103
      %v2207 = vpop.f32.mrb[0].mxu0
      %v2208 = vadd.f32 0.0, %v2207
      %v2209 = vpop.f32.mrb[0].mxu0
      %v2210 = vpop.f32.mrb[0].mxu0
      %v2211 = vadd.f32 0.0, %v2210
      %v2212 = vpop.f32.mrb[0].mxu0
      %2213 = vmatprep.mubr.bf16.mxu0 0
      %2214 = vmatmul.mubr.bf16.gmra.mrb[0].mxu0 %v2106
      %v2215 = vpop.f32.mrb[0].mxu0
      %v2216 = vadd.f32 0.0, %v2215
      %v2217 = vpop.f32.mrb[0].mxu0
      %v2218 = vpop.f32.mrb[0].mxu0
      %v2219 = vadd.f32 0.0, %v2218
      %v2220 = vpop.f32.mrb[0].mxu0
      %2221 = vmatprep.mubr.bf16.mxu0 0
      %2222 = vmatmul.mubr.bf16.gmra.mrb[0].mxu0 %v2109
      %v2223 = vpop.f32.mrb[0].mxu0
      %v2224 = vadd.f32 0.0, %v2223
      %v2225 = vpop.f32.mrb[0].mxu0
      %v2226 = vpop.f32.mrb[0].mxu0
      %v2227 = vadd.f32 0.0, %v2226
      %v2228 = vpop.f32.mrb[0].mxu0
      %2229 = vmatprep.mubr.bf16.mxu0 0
      %2230 = vmatmul.mubr.bf16.gmra.mrb[0].mxu0 %v2112
      %v2231 = vpop.f32.mrb[0].mxu0
      %v2232 = vadd.f32 0.0, %v2231
      %v2233 = vpop.f32.mrb[0].mxu0
      %v2234 = vpop.f32.mrb[0].mxu0
      %v2235 = vadd.f32 0.0, %v2234
      %v2236 = vpop.f32.mrb[0].mxu0
      %2237 = vmatprep.mubr.bf16.mxu0 0
      %2238 = vmatmul.mubr.bf16.gmra.mrb[0].mxu0 %v2115
      %v2239 = vpop.f32.mrb[0].mxu0
      %v2240 = vadd.f32 0.0, %v2239
      %v2241 = vpop.f32.mrb[0].mxu0
      %v2242 = vpop.f32.mrb[0].mxu0
      %v2243 = vadd.f32 0.0, %v2242
      %v2244 = vpop.f32.mrb[0].mxu0
      %2245 = vmatprep.mubr.bf16.mxu0 0
      %2246 = vmatmul.mubr.bf16.gmra.mrb[0].mxu0 %v2118
      %v2247 = vpop.f32.mrb[0].mxu0
      %v2248 = vadd.f32 0.0, %v2247
      %v2249 = vpop.f32.mrb[0].mxu0
      %v2250 = vpop.f32.mrb[0].mxu0
      %v2251 = vadd.f32 0.0, %v2250
      %v2252 = vpop.f32.mrb[0].mxu0
      %2253 = vmatprep.mubr.bf16.mxu0 0
      %2254 = vmatmul.mubr.bf16.gmra.mrb[0].mxu0 %v2121
      %v2255 = vpop.f32.mrb[0].mxu0
      %v2256 = vadd.f32 0.0, %v2255
      %v2257 = vpop.f32.mrb[0].mxu0
      %v2258 = vpop.f32.mrb[0].mxu0
      %v2259 = vadd.f32 0.0, %v2258
      %v2260 = vpop.f32.mrb[0].mxu0
      %2261 = vmatprep.mubr.bf16.mxu0 0
      %2262 = vmatmul.mubr.bf16.gmra.mrb[0].mxu0 %v2124
      %v2263 = vpop.f32.mrb[0].mxu0
      %v2264 = vadd.f32 0.0, %v2263
      %v2265 = vpop.f32.mrb[0].mxu0
      %v2266 = vpop.f32.mrb[0].mxu0
      %v2267 = vadd.f32 0.0, %v2266
      %v2268 = vpop.f32.mrb[0].mxu0
      %2269 = vmatprep.mubr.bf16.mxu0 0
      %2270 = vmatmul.mubr.bf16.gmra.mrb[0].mxu0 %v2127
      %v2271 = vpop.f32.mrb[0].mxu0
      %v2272 = vadd.f32 0.0, %v2271
      %v2273 = vpop.f32.mrb[0].mxu0
      %v2274 = vpop.f32.mrb[0].mxu0
      %v2275 = vadd.f32 0.0, %v2274
      %v2276 = vpop.f32.mrb[0].mxu0
      %2277 = vmatprep.mubr.bf16.mxu0 0
      %2278 = vmatmul.mubr.bf16.gmra.mrb[0].mxu0 %v2130
      %v2279 = vpop.f32.mrb[0].mxu0
      %v2280 = vadd.f32 0.0, %v2279
      %v2281 = vpop.f32.mrb[0].mxu0
      %v2282 = vpop.f32.mrb[0].mxu0
      %v2283 = vadd.f32 0.0, %v2282
      %v2284 = vpop.f32.mrb[0].mxu0
      %2285 = vmatprep.mubr.bf16.mxu0 0
      %2286 = vmatmul.mubr.bf16.gmra.mrb[0].mxu0 %v2133
      %v2287 = vpop.f32.mrb[0].mxu0
      %v2288 = vadd.f32 0.0, %v2287
      %v2289 = vpop.f32.mrb[0].mxu0
      %v2290 = vpop.f32.mrb[0].mxu0
      %v2291 = vadd.f32 0.0, %v2290
      %v2292 = vpop.f32.mrb[0].mxu0
      %2293 = vmatprep.mubr.bf16.mxu0 0
      %2294 = vmatmul.mubr.bf16.gmra.mrb[0].mxu0 %v2136
      %v2295 = vpop.f32.mrb[0].mxu0
      %v2296 = vadd.f32 0.0, %v2295
      %v2297 = vpop.f32.mrb[0].mxu0
      %v2298 = vpop.f32.mrb[0].mxu0
      %v2299 = vadd.f32 0.0, %v2298
      %v2300 = vpop.f32.mrb[0].mxu0
      %2301 = vdwg.mxu0
      %v2302 = vld [vmem:[#allocation4] sm:$0xff]
      %v2303 = vld [vmem:[#allocation4 + $0x8] sm:$0xff]
      %v2304 = vld [vmem:[#allocation4 + $0x10] sm:$0xff]
      %v2305 = vld [vmem:[#allocation4 + $0x18] sm:$0xff]
      %v2306 = vld [vmem:[#allocation4 + $0x20] sm:$0xff]
      %v2307 = vld [vmem:[#allocation4 + $0x28] sm:$0xff]
      %v2308 = vld [vmem:[#allocation4 + $0x30] sm:$0xff]
      %v2309 = vld [vmem:[#allocation4 + $0x38] sm:$0xff]
      %v2310 = vld [vmem:[#allocation4 + $0x40] sm:$0xff]
      %v2311 = vld [vmem:[#allocation4 + $0x48] sm:$0xff]
      %v2312 = vld [vmem:[#allocation4 + $0x50] sm:$0xff]
      %v2313 = vld [vmem:[#allocation4 + $0x58] sm:$0xff]
      %v2314 = vld [vmem:[#allocation4 + $0x60] sm:$0xff]
      %v2315 = vld [vmem:[#allocation4 + $0x68] sm:$0xff]
      %v2316 = vld [vmem:[#allocation4 + $0x70] sm:$0xff]
      %v2317 = vld [vmem:[#allocation4 + $0x78] sm:$0xff]
      %v2318 = vld [vmem:[#allocation4 + $0x80] sm:$0xff]
      %v2319 = vld [vmem:[#allocation4 + $0x88] sm:$0xff]
      %v2320 = vld [vmem:[#allocation4 + $0x90] sm:$0xff]
      %v2321 = vld [vmem:[#allocation4 + $0x98] sm:$0xff]
      %v2322 = vld [vmem:[#allocation4 + $0xa0] sm:$0xff]
      %v2323 = vld [vmem:[#allocation4 + $0xa8] sm:$0xff]
      %v2324 = vld [vmem:[#allocation4 + $0xb0] sm:$0xff]
      %v2325 = vld [vmem:[#allocation4 + $0xb8] sm:$0xff]
      %v2326 = vld [vmem:[#allocation4 + $0xc0] sm:$0xff]
      %v2327 = vld [vmem:[#allocation4 + $0xc8] sm:$0xff]
      %v2328 = vld [vmem:[#allocation4 + $0xd0] sm:$0xff]
      %v2329 = vld [vmem:[#allocation4 + $0xd8] sm:$0xff]
      %v2330 = vld [vmem:[#allocation4 + $0xe0] sm:$0xff]
      %v2331 = vld [vmem:[#allocation4 + $0xe8] sm:$0xff]
      %v2332 = vld [vmem:[#allocation4 + $0xf0] sm:$0xff]
      %v2333 = vld [vmem:[#allocation4 + $0xf8] sm:$0xff]
      %v2334 = vadd.f32 %v2302, %v2176
      %v2335 = vadd.f32 %v2303, %v2179
      %v2336 = vadd.f32 %v2304, %v2184
      %v2337 = vadd.f32 %v2305, %v2187
      %v2338 = vadd.f32 %v2306, %v2192
      %v2339 = vadd.f32 %v2307, %v2195
      %v2340 = vadd.f32 %v2308, %v2200
      %v2341 = vadd.f32 %v2309, %v2203
      %v2342 = vadd.f32 %v2310, %v2208
      %v2343 = vadd.f32 %v2311, %v2211
      %v2344 = vadd.f32 %v2312, %v2216
      %v2345 = vadd.f32 %v2313, %v2219
      %v2346 = vadd.f32 %v2314, %v2224
      %v2347 = vadd.f32 %v2315, %v2227
      %v2348 = vadd.f32 %v2316, %v2232
      %v2349 = vadd.f32 %v2317, %v2235
      %v2350 = vadd.f32 %v2318, %v2240
      %v2351 = vadd.f32 %v2319, %v2243
      %v2352 = vadd.f32 %v2320, %v2248
      %v2353 = vadd.f32 %v2321, %v2251
      %v2354 = vadd.f32 %v2322, %v2256
      %v2355 = vadd.f32 %v2323, %v2259
      %v2356 = vadd.f32 %v2324, %v2264
      %v2357 = vadd.f32 %v2325, %v2267
      %v2358 = vadd.f32 %v2326, %v2272
      %v2359 = vadd.f32 %v2327, %v2275
      %v2360 = vadd.f32 %v2328, %v2280
      %v2361 = vadd.f32 %v2329, %v2283
      %v2362 = vadd.f32 %v2330, %v2288
      %v2363 = vadd.f32 %v2331, %v2291
      %v2364 = vadd.f32 %v2332, %v2296
      %v2365 = vadd.f32 %v2333, %v2299
      %2366 = vst.msk [vmem:[#allocation4] sm:$0xff] %vm500, %v2334
      %2367 = vst.msk [vmem:[#allocation4 + $0x8] sm:$0xff] %vm500, %v2335
      %2368 = vst.msk [vmem:[#allocation4 + $0x10] sm:$0xff] %vm500, %v2336
      %2369 = vst.msk [vmem:[#allocation4 + $0x18] sm:$0xff] %vm500, %v2337
      %2370 = vst.msk [vmem:[#allocation4 + $0x20] sm:$0xff] %vm500, %v2338
      %2371 = vst.msk [vmem:[#allocation4 + $0x28] sm:$0xff] %vm500, %v2339
      %2372 = vst.msk [vmem:[#allocation4 + $0x30] sm:$0xff] %vm500, %v2340
      %2373 = vst.msk [vmem:[#allocation4 + $0x38] sm:$0xff] %vm500, %v2341
      %2374 = vst.msk [vmem:[#allocation4 + $0x40] sm:$0xff] %vm500, %v2342
      %2375 = vst.msk [vmem:[#allocation4 + $0x48] sm:$0xff] %vm500, %v2343
      %2376 = vst.msk [vmem:[#allocation4 + $0x50] sm:$0xff] %vm500, %v2344
      %2377 = vst.msk [vmem:[#allocation4 + $0x58] sm:$0xff] %vm500, %v2345
      %2378 = vst.msk [vmem:[#allocation4 + $0x60] sm:$0xff] %vm500, %v2346
      %2379 = vst.msk [vmem:[#allocation4 + $0x68] sm:$0xff] %vm500, %v2347
      %2380 = vst.msk [vmem:[#allocation4 + $0x70] sm:$0xff] %vm500, %v2348
      %2381 = vst.msk [vmem:[#allocation4 + $0x78] sm:$0xff] %vm500, %v2349
      %2382 = vst.msk [vmem:[#allocation4 + $0x80] sm:$0xff] %vm500, %v2350
      %2383 = vst.msk [vmem:[#allocation4 + $0x88] sm:$0xff] %vm500, %v2351
      %2384 = vst.msk [vmem:[#allocation4 + $0x90] sm:$0xff] %vm500, %v2352
      %2385 = vst.msk [vmem:[#allocation4 + $0x98] sm:$0xff] %vm500, %v2353
      %2386 = vst.msk [vmem:[#allocation4 + $0xa0] sm:$0xff] %vm500, %v2354
      %2387 = vst.msk [vmem:[#allocation4 + $0xa8] sm:$0xff] %vm500, %v2355
      %2388 = vst.msk [vmem:[#allocation4 + $0xb0] sm:$0xff] %vm500, %v2356
      %2389 = vst.msk [vmem:[#allocation4 + $0xb8] sm:$0xff] %vm500, %v2357
      %2390 = vst.msk [vmem:[#allocation4 + $0xc0] sm:$0xff] %vm500, %v2358
      %2391 = vst.msk [vmem:[#allocation4 + $0xc8] sm:$0xff] %vm500, %v2359
      %2392 = vst.msk [vmem:[#allocation4 + $0xd0] sm:$0xff] %vm500, %v2360
      %2393 = vst.msk [vmem:[#allocation4 + $0xd8] sm:$0xff] %vm500, %v2361
      %2394 = vst.msk [vmem:[#allocation4 + $0xe0] sm:$0xff] %vm500, %v2362
      %2395 = vst.msk [vmem:[#allocation4 + $0xe8] sm:$0xff] %vm500, %v2363
      %2396 = vst.msk [vmem:[#allocation4 + $0xf0] sm:$0xff] %vm500, %v2364
      %2397 = vst.msk [vmem:[#allocation4 + $0xf8] sm:$0xff] %vm500, %v2365
      %v2398 = vld [vmem:[%s1107] sm:$0xff]
      %v2399 = vld [vmem:[%s1107 + $0x8] sm:$0xff]
      %v2400 = vld [vmem:[%s1107 + $0x10] sm:$0xff]
      %v2401 = vld [vmem:[%s1107 + $0x18] sm:$0xff]
      %v2402 = vld [vmem:[%s1107 + $0x20] sm:$0xff]
      %v2403 = vld [vmem:[%s1107 + $0x28] sm:$0xff]
      %v2404 = vld [vmem:[%s1107 + $0x30] sm:$0xff]
      %v2405 = vld [vmem:[%s1107 + $0x38] sm:$0xff]
      %v2406 = vld [vmem:[%s1107 + $0x40] sm:$0xff]
      %v2407 = vld [vmem:[%s1107 + $0x48] sm:$0xff]
      %v2408 = vld [vmem:[%s1107 + $0x50] sm:$0xff]
      %v2409 = vld [vmem:[%s1107 + $0x58] sm:$0xff]
      %v2410 = vld [vmem:[%s1107 + $0x60] sm:$0xff]
      %v2411 = vld [vmem:[%s1107 + $0x68] sm:$0xff]
      %v2412 = vld [vmem:[%s1107 + $0x70] sm:$0xff]
      %v2413 = vld [vmem:[%s1107 + $0x78] sm:$0xff]
      %s2414 = scalar_lea.vmem %s369, 4
      %v2415 = vld [vmem:[%s2414] sm:$0x1]
      %v2417 = vsel %vm824, %v2398, 0
      %v2420 = vsel %vm824, %v2399, 0
      %v2423 = vsel %vm824, %v2400, 0
      %v2426 = vsel %vm824, %v2401, 0
      %v2429 = vsel %vm824, %v2402, 0
      %v2432 = vsel %vm824, %v2403, 0
      %v2435 = vsel %vm824, %v2404, 0
      %v2438 = vsel %vm824, %v2405, 0
      %v2441 = vsel %vm824, %v2406, 0
      %v2444 = vsel %vm824, %v2407, 0
      %v2447 = vsel %vm824, %v2408, 0
      %v2450 = vsel %vm824, %v2409, 0
      %v2453 = vsel %vm824, %v2410, 0
      %v2456 = vsel %vm824, %v2411, 0
      %v2459 = vsel %vm824, %v2412, 0
      %v2462 = vsel %vm824, %v2413, 0
      %v2465 = vsel %vm864, %v2415, 0
      %2467 = vmatprep.subr.bf16.mxu0 0
      %2468 = vmatpush1.bf16.msra.mxu0 %v2465
      %2469 = vmatprep.subr.bf16.mxu0 0
      %2470 = vmatpush1.bf16.msra.mxu0 0
      %2471 = vmatprep.subr.bf16.mxu0 0
      %2472 = vmatpush1.bf16.msra.mxu0 0
      %2473 = vmatprep.subr.bf16.mxu0 0
      %2474 = vmatpush1.bf16.msra.mxu0 0
      %2475 = vmatprep.subr.bf16.mxu0 0
      %2476 = vmatpush1.bf16.msra.mxu0 0
      %2477 = vmatprep.subr.bf16.mxu0 0
      %2478 = vmatpush1.bf16.msra.mxu0 0
      %2479 = vmatprep.subr.bf16.mxu0 0
      %2480 = vmatpush1.bf16.msra.mxu0 0
      %2481 = vmatprep.subr.bf16.mxu0 0
      %2482 = vmatpush1.bf16.msra.mxu0 0
      %2483 = vmatprep.subr.bf16.mxu0 0
      %2484 = vmatpush1.bf16.msra.mxu0 0
      %2485 = vmatprep.subr.bf16.mxu0 0
      %2486 = vmatpush1.bf16.msra.mxu0 0
      %2487 = vmatprep.subr.bf16.mxu0 0
      %2488 = vmatpush1.bf16.msra.mxu0 0
      %2489 = vmatprep.subr.bf16.mxu0 0
      %2490 = vmatpush1.bf16.msra.mxu0 0
      %2491 = vmatprep.subr.bf16.mxu0 0
      %2492 = vmatpush1.bf16.msra.mxu0 0
      %2493 = vmatprep.subr.bf16.mxu0 0
      %2494 = vmatpush1.bf16.msra.mxu0 0
      %2495 = vmatprep.subr.bf16.mxu0 0
      %2496 = vmatpush1.bf16.msra.mxu0 0
      %2497 = vmatprep.subr.bf16.mxu0 0
      %2498 = vmatpush1.bf16.msra.mxu0 0
      %2499 = vmatprep.mubr.bf16.mxu0 0
      %2500 = vmatmul.mubr.bf16.gmra.mrb[0].mxu0 %v2417
      %v2501 = vpop.f32.mrb[0].mxu0
      %v2502 = vadd.f32 0.0, %v2501
      %v2503 = vpop.f32.mrb[0].mxu0
      %v2504 = vpop.f32.mrb[0].mxu0
      %v2505 = vadd.f32 0.0, %v2504
      %v2506 = vpop.f32.mrb[0].mxu0
      %2507 = vmatprep.mubr.bf16.mxu0 0
      %2508 = vmatmul.mubr.bf16.gmra.mrb[0].mxu0 %v2420
      %v2509 = vpop.f32.mrb[0].mxu0
      %v2510 = vadd.f32 0.0, %v2509
      %v2511 = vpop.f32.mrb[0].mxu0
      %v2512 = vpop.f32.mrb[0].mxu0
      %v2513 = vadd.f32 0.0, %v2512
      %v2514 = vpop.f32.mrb[0].mxu0
      %2515 = vmatprep.mubr.bf16.mxu0 0
      %2516 = vmatmul.mubr.bf16.gmra.mrb[0].mxu0 %v2423
      %v2517 = vpop.f32.mrb[0].mxu0
      %v2518 = vadd.f32 0.0, %v2517
      %v2519 = vpop.f32.mrb[0].mxu0
      %v2520 = vpop.f32.mrb[0].mxu0
      %v2521 = vadd.f32 0.0, %v2520
      %v2522 = vpop.f32.mrb[0].mxu0
      %2523 = vmatprep.mubr.bf16.mxu0 0
      %2524 = vmatmul.mubr.bf16.gmra.mrb[0].mxu0 %v2426
      %v2525 = vpop.f32.mrb[0].mxu0
      %v2526 = vadd.f32 0.0, %v2525
      %v2527 = vpop.f32.mrb[0].mxu0
      %v2528 = vpop.f32.mrb[0].mxu0
      %v2529 = vadd.f32 0.0, %v2528
      %v2530 = vpop.f32.mrb[0].mxu0
      %2531 = vmatprep.mubr.bf16.mxu0 0
      %2532 = vmatmul.mubr.bf16.gmra.mrb[0].mxu0 %v2429
      %v2533 = vpop.f32.mrb[0].mxu0
      %v2534 = vadd.f32 0.0, %v2533
      %v2535 = vpop.f32.mrb[0].mxu0
      %v2536 = vpop.f32.mrb[0].mxu0
      %v2537 = vadd.f32 0.0, %v2536
      %v2538 = vpop.f32.mrb[0].mxu0
      %2539 = vmatprep.mubr.bf16.mxu0 0
      %2540 = vmatmul.mubr.bf16.gmra.mrb[0].mxu0 %v2432
      %v2541 = vpop.f32.mrb[0].mxu0
      %v2542 = vadd.f32 0.0, %v2541
      %v2543 = vpop.f32.mrb[0].mxu0
      %v2544 = vpop.f32.mrb[0].mxu0
      %v2545 = vadd.f32 0.0, %v2544
      %v2546 = vpop.f32.mrb[0].mxu0
      %2547 = vmatprep.mubr.bf16.mxu0 0
      %2548 = vmatmul.mubr.bf16.gmra.mrb[0].mxu0 %v2435
      %v2549 = vpop.f32.mrb[0].mxu0
      %v2550 = vadd.f32 0.0, %v2549
      %v2551 = vpop.f32.mrb[0].mxu0
      %v2552 = vpop.f32.mrb[0].mxu0
      %v2553 = vadd.f32 0.0, %v2552
      %v2554 = vpop.f32.mrb[0].mxu0
      %2555 = vmatprep.mubr.bf16.mxu0 0
      %2556 = vmatmul.mubr.bf16.gmra.mrb[0].mxu0 %v2438
      %v2557 = vpop.f32.mrb[0].mxu0
      %v2558 = vadd.f32 0.0, %v2557
      %v2559 = vpop.f32.mrb[0].mxu0
      %v2560 = vpop.f32.mrb[0].mxu0
      %v2561 = vadd.f32 0.0, %v2560
      %v2562 = vpop.f32.mrb[0].mxu0
      %2563 = vmatprep.mubr.bf16.mxu0 0
      %2564 = vmatmul.mubr.bf16.gmra.mrb[0].mxu0 %v2441
      %v2565 = vpop.f32.mrb[0].mxu0
      %v2566 = vadd.f32 0.0, %v2565
      %v2567 = vpop.f32.mrb[0].mxu0
      %v2568 = vpop.f32.mrb[0].mxu0
      %v2569 = vadd.f32 0.0, %v2568
      %v2570 = vpop.f32.mrb[0].mxu0
      %2571 = vmatprep.mubr.bf16.mxu0 0
      %2572 = vmatmul.mubr.bf16.gmra.mrb[0].mxu0 %v2444
      %v2573 = vpop.f32.mrb[0].mxu0
      %v2574 = vadd.f32 0.0, %v2573
      %v2575 = vpop.f32.mrb[0].mxu0
      %v2576 = vpop.f32.mrb[0].mxu0
      %v2577 = vadd.f32 0.0, %v2576
      %v2578 = vpop.f32.mrb[0].mxu0
      %2579 = vmatprep.mubr.bf16.mxu0 0
      %2580 = vmatmul.mubr.bf16.gmra.mrb[0].mxu0 %v2447
      %v2581 = vpop.f32.mrb[0].mxu0
      %v2582 = vadd.f32 0.0, %v2581
      %v2583 = vpop.f32.mrb[0].mxu0
      %v2584 = vpop.f32.mrb[0].mxu0
      %v2585 = vadd.f32 0.0, %v2584
      %v2586 = vpop.f32.mrb[0].mxu0
      %2587 = vmatprep.mubr.bf16.mxu0 0
      %2588 = vmatmul.mubr.bf16.gmra.mrb[0].mxu0 %v2450
      %v2589 = vpop.f32.mrb[0].mxu0
      %v2590 = vadd.f32 0.0, %v2589
      %v2591 = vpop.f32.mrb[0].mxu0
      %v2592 = vpop.f32.mrb[0].mxu0
      %v2593 = vadd.f32 0.0, %v2592
      %v2594 = vpop.f32.mrb[0].mxu0
      %2595 = vmatprep.mubr.bf16.mxu0 0
      %2596 = vmatmul.mubr.bf16.gmra.mrb[0].mxu0 %v2453
      %v2597 = vpop.f32.mrb[0].mxu0
      %v2598 = vadd.f32 0.0, %v2597
      %v2599 = vpop.f32.mrb[0].mxu0
      %v2600 = vpop.f32.mrb[0].mxu0
      %v2601 = vadd.f32 0.0, %v2600
      %v2602 = vpop.f32.mrb[0].mxu0
      %2603 = vmatprep.mubr.bf16.mxu0 0
      %2604 = vmatmul.mubr.bf16.gmra.mrb[0].mxu0 %v2456
      %v2605 = vpop.f32.mrb[0].mxu0
      %v2606 = vadd.f32 0.0, %v2605
      %v2607 = vpop.f32.mrb[0].mxu0
      %v2608 = vpop.f32.mrb[0].mxu0
      %v2609 = vadd.f32 0.0, %v2608
      %v2610 = vpop.f32.mrb[0].mxu0
      %2611 = vmatprep.mubr.bf16.mxu0 0
      %2612 = vmatmul.mubr.bf16.gmra.mrb[0].mxu0 %v2459
      %v2613 = vpop.f32.mrb[0].mxu0
      %v2614 = vadd.f32 0.0, %v2613
      %v2615 = vpop.f32.mrb[0].mxu0
      %v2616 = vpop.f32.mrb[0].mxu0
      %v2617 = vadd.f32 0.0, %v2616
      %v2618 = vpop.f32.mrb[0].mxu0
      %2619 = vmatprep.mubr.bf16.mxu0 0
      %2620 = vmatmul.mubr.bf16.gmra.mrb[0].mxu0 %v2462
      %v2621 = vpop.f32.mrb[0].mxu0
      %v2622 = vadd.f32 0.0, %v2621
      %v2623 = vpop.f32.mrb[0].mxu0
      %v2624 = vpop.f32.mrb[0].mxu0
      %v2625 = vadd.f32 0.0, %v2624
      %v2626 = vpop.f32.mrb[0].mxu0
      %2627 = vdwg.mxu0
      %v2628 = vld [vmem:[#allocation4] sm:$0xff]
      %v2629 = vld [vmem:[#allocation4 + $0x8] sm:$0xff]
      %v2630 = vld [vmem:[#allocation4 + $0x10] sm:$0xff]
      %v2631 = vld [vmem:[#allocation4 + $0x18] sm:$0xff]
      %v2632 = vld [vmem:[#allocation4 + $0x20] sm:$0xff]
      %v2633 = vld [vmem:[#allocation4 + $0x28] sm:$0xff]
      %v2634 = vld [vmem:[#allocation4 + $0x30] sm:$0xff]
      %v2635 = vld [vmem:[#allocation4 + $0x38] sm:$0xff]
      %v2636 = vld [vmem:[#allocation4 + $0x40] sm:$0xff]
      %v2637 = vld [vmem:[#allocation4 + $0x48] sm:$0xff]
      %v2638 = vld [vmem:[#allocation4 + $0x50] sm:$0xff]
      %v2639 = vld [vmem:[#allocation4 + $0x58] sm:$0xff]
      %v2640 = vld [vmem:[#allocation4 + $0x60] sm:$0xff]
      %v2641 = vld [vmem:[#allocation4 + $0x68] sm:$0xff]
      %v2642 = vld [vmem:[#allocation4 + $0x70] sm:$0xff]
      %v2643 = vld [vmem:[#allocation4 + $0x78] sm:$0xff]
      %v2644 = vld [vmem:[#allocation4 + $0x80] sm:$0xff]
      %v2645 = vld [vmem:[#allocation4 + $0x88] sm:$0xff]
      %v2646 = vld [vmem:[#allocation4 + $0x90] sm:$0xff]
      %v2647 = vld [vmem:[#allocation4 + $0x98] sm:$0xff]
      %v2648 = vld [vmem:[#allocation4 + $0xa0] sm:$0xff]
      %v2649 = vld [vmem:[#allocation4 + $0xa8] sm:$0xff]
      %v2650 = vld [vmem:[#allocation4 + $0xb0] sm:$0xff]
      %v2651 = vld [vmem:[#allocation4 + $0xb8] sm:$0xff]
      %v2652 = vld [vmem:[#allocation4 + $0xc0] sm:$0xff]
      %v2653 = vld [vmem:[#allocation4 + $0xc8] sm:$0xff]
      %v2654 = vld [vmem:[#allocation4 + $0xd0] sm:$0xff]
      %v2655 = vld [vmem:[#allocation4 + $0xd8] sm:$0xff]
      %v2656 = vld [vmem:[#allocation4 + $0xe0] sm:$0xff]
      %v2657 = vld [vmem:[#allocation4 + $0xe8] sm:$0xff]
      %v2658 = vld [vmem:[#allocation4 + $0xf0] sm:$0xff]
      %v2659 = vld [vmem:[#allocation4 + $0xf8] sm:$0xff]
      %v2660 = vadd.f32 %v2628, %v2502
      %v2661 = vadd.f32 %v2629, %v2505
      %v2662 = vadd.f32 %v2630, %v2510
      %v2663 = vadd.f32 %v2631, %v2513
      %v2664 = vadd.f32 %v2632, %v2518
      %v2665 = vadd.f32 %v2633, %v2521
      %v2666 = vadd.f32 %v2634, %v2526
      %v2667 = vadd.f32 %v2635, %v2529
      %v2668 = vadd.f32 %v2636, %v2534
      %v2669 = vadd.f32 %v2637, %v2537
      %v2670 = vadd.f32 %v2638, %v2542
      %v2671 = vadd.f32 %v2639, %v2545
      %v2672 = vadd.f32 %v2640, %v2550
      %v2673 = vadd.f32 %v2641, %v2553
      %v2674 = vadd.f32 %v2642, %v2558
      %v2675 = vadd.f32 %v2643, %v2561
      %v2676 = vadd.f32 %v2644, %v2566
      %v2677 = vadd.f32 %v2645, %v2569
      %v2678 = vadd.f32 %v2646, %v2574
      %v2679 = vadd.f32 %v2647, %v2577
      %v2680 = vadd.f32 %v2648, %v2582
      %v2681 = vadd.f32 %v2649, %v2585
      %v2682 = vadd.f32 %v2650, %v2590
      %v2683 = vadd.f32 %v2651, %v2593
      %v2684 = vadd.f32 %v2652, %v2598
      %v2685 = vadd.f32 %v2653, %v2601
      %v2686 = vadd.f32 %v2654, %v2606
      %v2687 = vadd.f32 %v2655, %v2609
      %v2688 = vadd.f32 %v2656, %v2614
      %v2689 = vadd.f32 %v2657, %v2617
      %v2690 = vadd.f32 %v2658, %v2622
      %v2691 = vadd.f32 %v2659, %v2625
      %2692 = vst.msk [vmem:[#allocation4] sm:$0xff] %vm500, %v2660
      %2693 = vst.msk [vmem:[#allocation4 + $0x8] sm:$0xff] %vm500, %v2661
      %2694 = vst.msk [vmem:[#allocation4 + $0x10] sm:$0xff] %vm500, %v2662
      %2695 = vst.msk [vmem:[#allocation4 + $0x18] sm:$0xff] %vm500, %v2663
      %2696 = vst.msk [vmem:[#allocation4 + $0x20] sm:$0xff] %vm500, %v2664
      %2697 = vst.msk [vmem:[#allocation4 + $0x28] sm:$0xff] %vm500, %v2665
      %2698 = vst.msk [vmem:[#allocation4 + $0x30] sm:$0xff] %vm500, %v2666
      %2699 = vst.msk [vmem:[#allocation4 + $0x38] sm:$0xff] %vm500, %v2667
      %2700 = vst.msk [vmem:[#allocation4 + $0x40] sm:$0xff] %vm500, %v2668
      %2701 = vst.msk [vmem:[#allocation4 + $0x48] sm:$0xff] %vm500, %v2669
      %2702 = vst.msk [vmem:[#allocation4 + $0x50] sm:$0xff] %vm500, %v2670
      %2703 = vst.msk [vmem:[#allocation4 + $0x58] sm:$0xff] %vm500, %v2671
      %2704 = vst.msk [vmem:[#allocation4 + $0x60] sm:$0xff] %vm500, %v2672
      %2705 = vst.msk [vmem:[#allocation4 + $0x68] sm:$0xff] %vm500, %v2673
      %2706 = vst.msk [vmem:[#allocation4 + $0x70] sm:$0xff] %vm500, %v2674
      %2707 = vst.msk [vmem:[#allocation4 + $0x78] sm:$0xff] %vm500, %v2675
      %2708 = vst.msk [vmem:[#allocation4 + $0x80] sm:$0xff] %vm500, %v2676
      %2709 = vst.msk [vmem:[#allocation4 + $0x88] sm:$0xff] %vm500, %v2677
      %2710 = vst.msk [vmem:[#allocation4 + $0x90] sm:$0xff] %vm500, %v2678
      %2711 = vst.msk [vmem:[#allocation4 + $0x98] sm:$0xff] %vm500, %v2679
      %2712 = vst.msk [vmem:[#allocation4 + $0xa0] sm:$0xff] %vm500, %v2680
      %2713 = vst.msk [vmem:[#allocation4 + $0xa8] sm:$0xff] %vm500, %v2681
      %2714 = vst.msk [vmem:[#allocation4 + $0xb0] sm:$0xff] %vm500, %v2682
      %2715 = vst.msk [vmem:[#allocation4 + $0xb8] sm:$0xff] %vm500, %v2683
      %2716 = vst.msk [vmem:[#allocation4 + $0xc0] sm:$0xff] %vm500, %v2684
      %2717 = vst.msk [vmem:[#allocation4 + $0xc8] sm:$0xff] %vm500, %v2685
      %2718 = vst.msk [vmem:[#allocation4 + $0xd0] sm:$0xff] %vm500, %v2686
      %2719 = vst.msk [vmem:[#allocation4 + $0xd8] sm:$0xff] %vm500, %v2687
      %2720 = vst.msk [vmem:[#allocation4 + $0xe0] sm:$0xff] %vm500, %v2688
      %2721 = vst.msk [vmem:[#allocation4 + $0xe8] sm:$0xff] %vm500, %v2689
      %2722 = vst.msk [vmem:[#allocation4 + $0xf0] sm:$0xff] %vm500, %v2690
      %2723 = vst.msk [vmem:[#allocation4 + $0xf8] sm:$0xff] %vm500, %v2691
      %v2724 = vld [vmem:[%s1140] sm:$0xff]
      %v2725 = vld [vmem:[%s1140 + $0x8] sm:$0xff]
      %v2726 = vld [vmem:[%s1140 + $0x10] sm:$0xff]
      %v2727 = vld [vmem:[%s1140 + $0x18] sm:$0xff]
      %v2728 = vld [vmem:[%s1140 + $0x20] sm:$0xff]
      %v2729 = vld [vmem:[%s1140 + $0x28] sm:$0xff]
      %v2730 = vld [vmem:[%s1140 + $0x30] sm:$0xff]
      %v2731 = vld [vmem:[%s1140 + $0x38] sm:$0xff]
      %v2732 = vld [vmem:[%s1140 + $0x40] sm:$0xff]
      %v2733 = vld [vmem:[%s1140 + $0x48] sm:$0xff]
      %v2734 = vld [vmem:[%s1140 + $0x50] sm:$0xff]
      %v2735 = vld [vmem:[%s1140 + $0x58] sm:$0xff]
      %v2736 = vld [vmem:[%s1140 + $0x60] sm:$0xff]
      %v2737 = vld [vmem:[%s1140 + $0x68] sm:$0xff]
      %v2738 = vld [vmem:[%s1140 + $0x70] sm:$0xff]
      %v2739 = vld [vmem:[%s1140 + $0x78] sm:$0xff]
      %s2740 = scalar_lea.vmem %s369, 5
      %v2741 = vld [vmem:[%s2740] sm:$0x1]
      %v2743 = vsel %vm824, %v2724, 0
      %v2746 = vsel %vm824, %v2725, 0
      %v2749 = vsel %vm824, %v2726, 0
      %v2752 = vsel %vm824, %v2727, 0
      %v2755 = vsel %vm824, %v2728, 0
      %v2758 = vsel %vm824, %v2729, 0
      %v2761 = vsel %vm824, %v2730, 0
      %v2764 = vsel %vm824, %v2731, 0
      %v2767 = vsel %vm824, %v2732, 0
      %v2770 = vsel %vm824, %v2733, 0
      %v2773 = vsel %vm824, %v2734, 0
      %v2776 = vsel %vm824, %v2735, 0
      %v2779 = vsel %vm824, %v2736, 0
      %v2782 = vsel %vm824, %v2737, 0
      %v2785 = vsel %vm824, %v2738, 0
      %v2788 = vsel %vm824, %v2739, 0
      %v2791 = vsel %vm864, %v2741, 0
      %2793 = vmatprep.subr.bf16.mxu0 0
      %2794 = vmatpush1.bf16.msra.mxu0 %v2791
      %2795 = vmatprep.subr.bf16.mxu0 0
      %2796 = vmatpush1.bf16.msra.mxu0 0
      %2797 = vmatprep.subr.bf16.mxu0 0
      %2798 = vmatpush1.bf16.msra.mxu0 0
      %2799 = vmatprep.subr.bf16.mxu0 0
      %2800 = vmatpush1.bf16.msra.mxu0 0
      %2801 = vmatprep.subr.bf16.mxu0 0
      %2802 = vmatpush1.bf16.msra.mxu0 0
      %2803 = vmatprep.subr.bf16.mxu0 0
      %2804 = vmatpush1.bf16.msra.mxu0 0
      %2805 = vmatprep.subr.bf16.mxu0 0
      %2806 = vmatpush1.bf16.msra.mxu0 0
      %2807 = vmatprep.subr.bf16.mxu0 0
      %2808 = vmatpush1.bf16.msra.mxu0 0
      %2809 = vmatprep.subr.bf16.mxu0 0
      %2810 = vmatpush1.bf16.msra.mxu0 0
      %2811 = vmatprep.subr.bf16.mxu0 0
      %2812 = vmatpush1.bf16.msra.mxu0 0
      %2813 = vmatprep.subr.bf16.mxu0 0
      %2814 = vmatpush1.bf16.msra.mxu0 0
      %2815 = vmatprep.subr.bf16.mxu0 0
      %2816 = vmatpush1.bf16.msra.mxu0 0
      %2817 = vmatprep.subr.bf16.mxu0 0
      %2818 = vmatpush1.bf16.msra.mxu0 0
      %2819 = vmatprep.subr.bf16.mxu0 0
      %2820 = vmatpush1.bf16.msra.mxu0 0
      %2821 = vmatprep.subr.bf16.mxu0 0
      %2822 = vmatpush1.bf16.msra.mxu0 0
      %2823 = vmatprep.subr.bf16.mxu0 0
      %2824 = vmatpush1.bf16.msra.mxu0 0
      %2825 = vmatprep.mubr.bf16.mxu0 0
      %2826 = vmatmul.mubr.bf16.gmra.mrb[0].mxu0 %v2743
      %v2827 = vpop.f32.mrb[0].mxu0
      %v2828 = vadd.f32 0.0, %v2827
      %v2829 = vpop.f32.mrb[0].mxu0
      %v2830 = vpop.f32.mrb[0].mxu0
      %v2831 = vadd.f32 0.0, %v2830
      %v2832 = vpop.f32.mrb[0].mxu0
      %2833 = vmatprep.mubr.bf16.mxu0 0
      %2834 = vmatmul.mubr.bf16.gmra.mrb[0].mxu0 %v2746
      %v2835 = vpop.f32.mrb[0].mxu0
      %v2836 = vadd.f32 0.0, %v2835
      %v2837 = vpop.f32.mrb[0].mxu0
      %v2838 = vpop.f32.mrb[0].mxu0
      %v2839 = vadd.f32 0.0, %v2838
      %v2840 = vpop.f32.mrb[0].mxu0
      %2841 = vmatprep.mubr.bf16.mxu0 0
      %2842 = vmatmul.mubr.bf16.gmra.mrb[0].mxu0 %v2749
      %v2843 = vpop.f32.mrb[0].mxu0
      %v2844 = vadd.f32 0.0, %v2843
      %v2845 = vpop.f32.mrb[0].mxu0
      %v2846 = vpop.f32.mrb[0].mxu0
      %v2847 = vadd.f32 0.0, %v2846
      %v2848 = vpop.f32.mrb[0].mxu0
      %2849 = vmatprep.mubr.bf16.mxu0 0
      %2850 = vmatmul.mubr.bf16.gmra.mrb[0].mxu0 %v2752
      %v2851 = vpop.f32.mrb[0].mxu0
      %v2852 = vadd.f32 0.0, %v2851
      %v2853 = vpop.f32.mrb[0].mxu0
      %v2854 = vpop.f32.mrb[0].mxu0
      %v2855 = vadd.f32 0.0, %v2854
      %v2856 = vpop.f32.mrb[0].mxu0
      %2857 = vmatprep.mubr.bf16.mxu0 0
      %2858 = vmatmul.mubr.bf16.gmra.mrb[0].mxu0 %v2755
      %v2859 = vpop.f32.mrb[0].mxu0
      %v2860 = vadd.f32 0.0, %v2859
      %v2861 = vpop.f32.mrb[0].mxu0
      %v2862 = vpop.f32.mrb[0].mxu0
      %v2863 = vadd.f32 0.0, %v2862
      %v2864 = vpop.f32.mrb[0].mxu0
      %2865 = vmatprep.mubr.bf16.mxu0 0
      %2866 = vmatmul.mubr.bf16.gmra.mrb[0].mxu0 %v2758
      %v2867 = vpop.f32.mrb[0].mxu0
      %v2868 = vadd.f32 0.0, %v2867
      %v2869 = vpop.f32.mrb[0].mxu0
      %v2870 = vpop.f32.mrb[0].mxu0
      %v2871 = vadd.f32 0.0, %v2870
      %v2872 = vpop.f32.mrb[0].mxu0
      %2873 = vmatprep.mubr.bf16.mxu0 0
      %2874 = vmatmul.mubr.bf16.gmra.mrb[0].mxu0 %v2761
      %v2875 = vpop.f32.mrb[0].mxu0
      %v2876 = vadd.f32 0.0, %v2875
      %v2877 = vpop.f32.mrb[0].mxu0
      %v2878 = vpop.f32.mrb[0].mxu0
      %v2879 = vadd.f32 0.0, %v2878
      %v2880 = vpop.f32.mrb[0].mxu0
      %2881 = vmatprep.mubr.bf16.mxu0 0
      %2882 = vmatmul.mubr.bf16.gmra.mrb[0].mxu0 %v2764
      %v2883 = vpop.f32.mrb[0].mxu0
      %v2884 = vadd.f32 0.0, %v2883
      %v2885 = vpop.f32.mrb[0].mxu0
      %v2886 = vpop.f32.mrb[0].mxu0
      %v2887 = vadd.f32 0.0, %v2886
      %v2888 = vpop.f32.mrb[0].mxu0
      %2889 = vmatprep.mubr.bf16.mxu0 0
      %2890 = vmatmul.mubr.bf16.gmra.mrb[0].mxu0 %v2767
      %v2891 = vpop.f32.mrb[0].mxu0
      %v2892 = vadd.f32 0.0, %v2891
      %v2893 = vpop.f32.mrb[0].mxu0
      %v2894 = vpop.f32.mrb[0].mxu0
      %v2895 = vadd.f32 0.0, %v2894
      %v2896 = vpop.f32.mrb[0].mxu0
      %2897 = vmatprep.mubr.bf16.mxu0 0
      %2898 = vmatmul.mubr.bf16.gmra.mrb[0].mxu0 %v2770
      %v2899 = vpop.f32.mrb[0].mxu0
      %v2900 = vadd.f32 0.0, %v2899
      %v2901 = vpop.f32.mrb[0].mxu0
      %v2902 = vpop.f32.mrb[0].mxu0
      %v2903 = vadd.f32 0.0, %v2902
      %v2904 = vpop.f32.mrb[0].mxu0
      %2905 = vmatprep.mubr.bf16.mxu0 0
      %2906 = vmatmul.mubr.bf16.gmra.mrb[0].mxu0 %v2773
      %v2907 = vpop.f32.mrb[0].mxu0
      %v2908 = vadd.f32 0.0, %v2907
      %v2909 = vpop.f32.mrb[0].mxu0
      %v2910 = vpop.f32.mrb[0].mxu0
      %v2911 = vadd.f32 0.0, %v2910
      %v2912 = vpop.f32.mrb[0].mxu0
      %2913 = vmatprep.mubr.bf16.mxu0 0
      %2914 = vmatmul.mubr.bf16.gmra.mrb[0].mxu0 %v2776
      %v2915 = vpop.f32.mrb[0].mxu0
      %v2916 = vadd.f32 0.0, %v2915
      %v2917 = vpop.f32.mrb[0].mxu0
      %v2918 = vpop.f32.mrb[0].mxu0
      %v2919 = vadd.f32 0.0, %v2918
      %v2920 = vpop.f32.mrb[0].mxu0
      %2921 = vmatprep.mubr.bf16.mxu0 0
      %2922 = vmatmul.mubr.bf16.gmra.mrb[0].mxu0 %v2779
      %v2923 = vpop.f32.mrb[0].mxu0
      %v2924 = vadd.f32 0.0, %v2923
      %v2925 = vpop.f32.mrb[0].mxu0
      %v2926 = vpop.f32.mrb[0].mxu0
      %v2927 = vadd.f32 0.0, %v2926
      %v2928 = vpop.f32.mrb[0].mxu0
      %2929 = vmatprep.mubr.bf16.mxu0 0
      %2930 = vmatmul.mubr.bf16.gmra.mrb[0].mxu0 %v2782
      %v2931 = vpop.f32.mrb[0].mxu0
      %v2932 = vadd.f32 0.0, %v2931
      %v2933 = vpop.f32.mrb[0].mxu0
      %v2934 = vpop.f32.mrb[0].mxu0
      %v2935 = vadd.f32 0.0, %v2934
      %v2936 = vpop.f32.mrb[0].mxu0
      %2937 = vmatprep.mubr.bf16.mxu0 0
      %2938 = vmatmul.mubr.bf16.gmra.mrb[0].mxu0 %v2785
      %v2939 = vpop.f32.mrb[0].mxu0
      %v2940 = vadd.f32 0.0, %v2939
      %v2941 = vpop.f32.mrb[0].mxu0
      %v2942 = vpop.f32.mrb[0].mxu0
      %v2943 = vadd.f32 0.0, %v2942
      %v2944 = vpop.f32.mrb[0].mxu0
      %2945 = vmatprep.mubr.bf16.mxu0 0
      %2946 = vmatmul.mubr.bf16.gmra.mrb[0].mxu0 %v2788
      %v2947 = vpop.f32.mrb[0].mxu0
      %v2948 = vadd.f32 0.0, %v2947
      %v2949 = vpop.f32.mrb[0].mxu0
      %v2950 = vpop.f32.mrb[0].mxu0
      %v2951 = vadd.f32 0.0, %v2950
      %v2952 = vpop.f32.mrb[0].mxu0
      %2953 = vdwg.mxu0
      %v2954 = vld [vmem:[#allocation4] sm:$0xff]
      %v2955 = vld [vmem:[#allocation4 + $0x8] sm:$0xff]
      %v2956 = vld [vmem:[#allocation4 + $0x10] sm:$0xff]
      %v2957 = vld [vmem:[#allocation4 + $0x18] sm:$0xff]
      %v2958 = vld [vmem:[#allocation4 + $0x20] sm:$0xff]
      %v2959 = vld [vmem:[#allocation4 + $0x28] sm:$0xff]
      %v2960 = vld [vmem:[#allocation4 + $0x30] sm:$0xff]
      %v2961 = vld [vmem:[#allocation4 + $0x38] sm:$0xff]
      %v2962 = vld [vmem:[#allocation4 + $0x40] sm:$0xff]
      %v2963 = vld [vmem:[#allocation4 + $0x48] sm:$0xff]
      %v2964 = vld [vmem:[#allocation4 + $0x50] sm:$0xff]
      %v2965 = vld [vmem:[#allocation4 + $0x58] sm:$0xff]
      %v2966 = vld [vmem:[#allocation4 + $0x60] sm:$0xff]
      %v2967 = vld [vmem:[#allocation4 + $0x68] sm:$0xff]
      %v2968 = vld [vmem:[#allocation4 + $0x70] sm:$0xff]
      %v2969 = vld [vmem:[#allocation4 + $0x78] sm:$0xff]
      %v2970 = vld [vmem:[#allocation4 + $0x80] sm:$0xff]
      %v2971 = vld [vmem:[#allocation4 + $0x88] sm:$0xff]
      %v2972 = vld [vmem:[#allocation4 + $0x90] sm:$0xff]
      %v2973 = vld [vmem:[#allocation4 + $0x98] sm:$0xff]
      %v2974 = vld [vmem:[#allocation4 + $0xa0] sm:$0xff]
      %v2975 = vld [vmem:[#allocation4 + $0xa8] sm:$0xff]
      %v2976 = vld [vmem:[#allocation4 + $0xb0] sm:$0xff]
      %v2977 = vld [vmem:[#allocation4 + $0xb8] sm:$0xff]
      %v2978 = vld [vmem:[#allocation4 + $0xc0] sm:$0xff]
      %v2979 = vld [vmem:[#allocation4 + $0xc8] sm:$0xff]
      %v2980 = vld [vmem:[#allocation4 + $0xd0] sm:$0xff]
      %v2981 = vld [vmem:[#allocation4 + $0xd8] sm:$0xff]
      %v2982 = vld [vmem:[#allocation4 + $0xe0] sm:$0xff]
      %v2983 = vld [vmem:[#allocation4 + $0xe8] sm:$0xff]
      %v2984 = vld [vmem:[#allocation4 + $0xf0] sm:$0xff]
      %v2985 = vld [vmem:[#allocation4 + $0xf8] sm:$0xff]
      %v2986 = vadd.f32 %v2954, %v2828
      %v2987 = vadd.f32 %v2955, %v2831
      %v2988 = vadd.f32 %v2956, %v2836
      %v2989 = vadd.f32 %v2957, %v2839
      %v2990 = vadd.f32 %v2958, %v2844
      %v2991 = vadd.f32 %v2959, %v2847
      %v2992 = vadd.f32 %v2960, %v2852
      %v2993 = vadd.f32 %v2961, %v2855
      %v2994 = vadd.f32 %v2962, %v2860
      %v2995 = vadd.f32 %v2963, %v2863
      %v2996 = vadd.f32 %v2964, %v2868
      %v2997 = vadd.f32 %v2965, %v2871
      %v2998 = vadd.f32 %v2966, %v2876
      %v2999 = vadd.f32 %v2967, %v2879
      %v3000 = vadd.f32 %v2968, %v2884
      %v3001 = vadd.f32 %v2969, %v2887
      %v3002 = vadd.f32 %v2970, %v2892
      %v3003 = vadd.f32 %v2971, %v2895
      %v3004 = vadd.f32 %v2972, %v2900
      %v3005 = vadd.f32 %v2973, %v2903
      %v3006 = vadd.f32 %v2974, %v2908
      %v3007 = vadd.f32 %v2975, %v2911
      %v3008 = vadd.f32 %v2976, %v2916
      %v3009 = vadd.f32 %v2977, %v2919
      %v3010 = vadd.f32 %v2978, %v2924
      %v3011 = vadd.f32 %v2979, %v2927
      %v3012 = vadd.f32 %v2980, %v2932
      %v3013 = vadd.f32 %v2981, %v2935
      %v3014 = vadd.f32 %v2982, %v2940
      %v3015 = vadd.f32 %v2983, %v2943
      %v3016 = vadd.f32 %v2984, %v2948
      %v3017 = vadd.f32 %v2985, %v2951
      %3018 = vst.msk [vmem:[#allocation4] sm:$0xff] %vm500, %v2986
      %3019 = vst.msk [vmem:[#allocation4 + $0x8] sm:$0xff] %vm500, %v2987
      %3020 = vst.msk [vmem:[#allocation4 + $0x10] sm:$0xff] %vm500, %v2988
      %3021 = vst.msk [vmem:[#allocation4 + $0x18] sm:$0xff] %vm500, %v2989
      %3022 = vst.msk [vmem:[#allocation4 + $0x20] sm:$0xff] %vm500, %v2990
      %3023 = vst.msk [vmem:[#allocation4 + $0x28] sm:$0xff] %vm500, %v2991
      %3024 = vst.msk [vmem:[#allocation4 + $0x30] sm:$0xff] %vm500, %v2992
      %3025 = vst.msk [vmem:[#allocation4 + $0x38] sm:$0xff] %vm500, %v2993
      %3026 = vst.msk [vmem:[#allocation4 + $0x40] sm:$0xff] %vm500, %v2994
      %3027 = vst.msk [vmem:[#allocation4 + $0x48] sm:$0xff] %vm500, %v2995
      %3028 = vst.msk [vmem:[#allocation4 + $0x50] sm:$0xff] %vm500, %v2996
      %3029 = vst.msk [vmem:[#allocation4 + $0x58] sm:$0xff] %vm500, %v2997
      %3030 = vst.msk [vmem:[#allocation4 + $0x60] sm:$0xff] %vm500, %v2998
      %3031 = vst.msk [vmem:[#allocation4 + $0x68] sm:$0xff] %vm500, %v2999
      %3032 = vst.msk [vmem:[#allocation4 + $0x70] sm:$0xff] %vm500, %v3000
      %3033 = vst.msk [vmem:[#allocation4 + $0x78] sm:$0xff] %vm500, %v3001
      %3034 = vst.msk [vmem:[#allocation4 + $0x80] sm:$0xff] %vm500, %v3002
      %3035 = vst.msk [vmem:[#allocation4 + $0x88] sm:$0xff] %vm500, %v3003
      %3036 = vst.msk [vmem:[#allocation4 + $0x90] sm:$0xff] %vm500, %v3004
      %3037 = vst.msk [vmem:[#allocation4 + $0x98] sm:$0xff] %vm500, %v3005
      %3038 = vst.msk [vmem:[#allocation4 + $0xa0] sm:$0xff] %vm500, %v3006
      %3039 = vst.msk [vmem:[#allocation4 + $0xa8] sm:$0xff] %vm500, %v3007
      %3040 = vst.msk [vmem:[#allocation4 + $0xb0] sm:$0xff] %vm500, %v3008
      %3041 = vst.msk [vmem:[#allocation4 + $0xb8] sm:$0xff] %vm500, %v3009
      %3042 = vst.msk [vmem:[#allocation4 + $0xc0] sm:$0xff] %vm500, %v3010
      %3043 = vst.msk [vmem:[#allocation4 + $0xc8] sm:$0xff] %vm500, %v3011
      %3044 = vst.msk [vmem:[#allocation4 + $0xd0] sm:$0xff] %vm500, %v3012
      %3045 = vst.msk [vmem:[#allocation4 + $0xd8] sm:$0xff] %vm500, %v3013
      %3046 = vst.msk [vmem:[#allocation4 + $0xe0] sm:$0xff] %vm500, %v3014
      %3047 = vst.msk [vmem:[#allocation4 + $0xe8] sm:$0xff] %vm500, %v3015
      %3048 = vst.msk [vmem:[#allocation4 + $0xf0] sm:$0xff] %vm500, %v3016
      %3049 = vst.msk [vmem:[#allocation4 + $0xf8] sm:$0xff] %vm500, %v3017
      %s3050 = scalar_lea.vmem [#allocation3], 16
      %v3051 = vld [vmem:[%s3050] sm:$0xff]
      %v3052 = vld [vmem:[%s3050 + $0x8] sm:$0xff]
      %v3053 = vld [vmem:[%s3050 + $0x10] sm:$0xff]
      %v3054 = vld [vmem:[%s3050 + $0x18] sm:$0xff]
      %v3055 = vld [vmem:[%s3050 + $0x20] sm:$0xff]
      %v3056 = vld [vmem:[%s3050 + $0x28] sm:$0xff]
      %v3057 = vld [vmem:[%s3050 + $0x30] sm:$0xff]
      %v3058 = vld [vmem:[%s3050 + $0x38] sm:$0xff]
      %v3059 = vld [vmem:[%s3050 + $0x40] sm:$0xff]
      %v3060 = vld [vmem:[%s3050 + $0x48] sm:$0xff]
      %v3061 = vld [vmem:[%s3050 + $0x50] sm:$0xff]
      %v3062 = vld [vmem:[%s3050 + $0x58] sm:$0xff]
      %v3063 = vld [vmem:[%s3050 + $0x60] sm:$0xff]
      %v3064 = vld [vmem:[%s3050 + $0x68] sm:$0xff]
      %v3065 = vld [vmem:[%s3050 + $0x70] sm:$0xff]
      %v3066 = vld [vmem:[%s3050 + $0x78] sm:$0xff]
      %s3067 = scalar_lea.vmem %s369, 6
      %v3068 = vld [vmem:[%s3067] sm:$0x1]
      %v3070 = vsel %vm824, %v3051, 0
      %v3073 = vsel %vm824, %v3052, 0
      %v3076 = vsel %vm824, %v3053, 0
      %v3079 = vsel %vm824, %v3054, 0
      %v3082 = vsel %vm824, %v3055, 0
      %v3085 = vsel %vm824, %v3056, 0
      %v3088 = vsel %vm824, %v3057, 0
      %v3091 = vsel %vm824, %v3058, 0
      %v3094 = vsel %vm824, %v3059, 0
      %v3097 = vsel %vm824, %v3060, 0
      %v3100 = vsel %vm824, %v3061, 0
      %v3103 = vsel %vm824, %v3062, 0
      %v3106 = vsel %vm824, %v3063, 0
      %v3109 = vsel %vm824, %v3064, 0
      %v3112 = vsel %vm824, %v3065, 0
      %v3115 = vsel %vm824, %v3066, 0
      %v3118 = vsel %vm864, %v3068, 0
      %3120 = vmatprep.subr.bf16.mxu0 0
      %3121 = vmatpush1.bf16.msra.mxu0 %v3118
      %3122 = vmatprep.subr.bf16.mxu0 0
      %3123 = vmatpush1.bf16.msra.mxu0 0
      %3124 = vmatprep.subr.bf16.mxu0 0
      %3125 = vmatpush1.bf16.msra.mxu0 0
      %3126 = vmatprep.subr.bf16.mxu0 0
      %3127 = vmatpush1.bf16.msra.mxu0 0
      %3128 = vmatprep.subr.bf16.mxu0 0
      %3129 = vmatpush1.bf16.msra.mxu0 0
      %3130 = vmatprep.subr.bf16.mxu0 0
      %3131 = vmatpush1.bf16.msra.mxu0 0
      %3132 = vmatprep.subr.bf16.mxu0 0
      %3133 = vmatpush1.bf16.msra.mxu0 0
      %3134 = vmatprep.subr.bf16.mxu0 0
      %3135 = vmatpush1.bf16.msra.mxu0 0
      %3136 = vmatprep.subr.bf16.mxu0 0
      %3137 = vmatpush1.bf16.msra.mxu0 0
      %3138 = vmatprep.subr.bf16.mxu0 0
      %3139 = vmatpush1.bf16.msra.mxu0 0
      %3140 = vmatprep.subr.bf16.mxu0 0
      %3141 = vmatpush1.bf16.msra.mxu0 0
      %3142 = vmatprep.subr.bf16.mxu0 0
      %3143 = vmatpush1.bf16.msra.mxu0 0
      %3144 = vmatprep.subr.bf16.mxu0 0
      %3145 = vmatpush1.bf16.msra.mxu0 0
      %3146 = vmatprep.subr.bf16.mxu0 0
      %3147 = vmatpush1.bf16.msra.mxu0 0
      %3148 = vmatprep.subr.bf16.mxu0 0
      %3149 = vmatpush1.bf16.msra.mxu0 0
      %3150 = vmatprep.subr.bf16.mxu0 0
      %3151 = vmatpush1.bf16.msra.mxu0 0
      %3152 = vmatprep.mubr.bf16.mxu0 0
      %3153 = vmatmul.mubr.bf16.gmra.mrb[0].mxu0 %v3070
      %v3154 = vpop.f32.mrb[0].mxu0
      %v3155 = vadd.f32 0.0, %v3154
      %v3156 = vpop.f32.mrb[0].mxu0
      %v3157 = vpop.f32.mrb[0].mxu0
      %v3158 = vadd.f32 0.0, %v3157
      %v3159 = vpop.f32.mrb[0].mxu0
      %3160 = vmatprep.mubr.bf16.mxu0 0
      %3161 = vmatmul.mubr.bf16.gmra.mrb[0].mxu0 %v3073
      %v3162 = vpop.f32.mrb[0].mxu0
      %v3163 = vadd.f32 0.0, %v3162
      %v3164 = vpop.f32.mrb[0].mxu0
      %v3165 = vpop.f32.mrb[0].mxu0
      %v3166 = vadd.f32 0.0, %v3165
      %v3167 = vpop.f32.mrb[0].mxu0
      %3168 = vmatprep.mubr.bf16.mxu0 0
      %3169 = vmatmul.mubr.bf16.gmra.mrb[0].mxu0 %v3076
      %v3170 = vpop.f32.mrb[0].mxu0
      %v3171 = vadd.f32 0.0, %v3170
      %v3172 = vpop.f32.mrb[0].mxu0
      %v3173 = vpop.f32.mrb[0].mxu0
      %v3174 = vadd.f32 0.0, %v3173
      %v3175 = vpop.f32.mrb[0].mxu0
      %3176 = vmatprep.mubr.bf16.mxu0 0
      %3177 = vmatmul.mubr.bf16.gmra.mrb[0].mxu0 %v3079
      %v3178 = vpop.f32.mrb[0].mxu0
      %v3179 = vadd.f32 0.0, %v3178
      %v3180 = vpop.f32.mrb[0].mxu0
      %v3181 = vpop.f32.mrb[0].mxu0
      %v3182 = vadd.f32 0.0, %v3181
      %v3183 = vpop.f32.mrb[0].mxu0
      %3184 = vmatprep.mubr.bf16.mxu0 0
      %3185 = vmatmul.mubr.bf16.gmra.mrb[0].mxu0 %v3082
      %v3186 = vpop.f32.mrb[0].mxu0
      %v3187 = vadd.f32 0.0, %v3186
      %v3188 = vpop.f32.mrb[0].mxu0
      %v3189 = vpop.f32.mrb[0].mxu0
      %v3190 = vadd.f32 0.0, %v3189
      %v3191 = vpop.f32.mrb[0].mxu0
      %3192 = vmatprep.mubr.bf16.mxu0 0
      %3193 = vmatmul.mubr.bf16.gmra.mrb[0].mxu0 %v3085
      %v3194 = vpop.f32.mrb[0].mxu0
      %v3195 = vadd.f32 0.0, %v3194
      %v3196 = vpop.f32.mrb[0].mxu0
      %v3197 = vpop.f32.mrb[0].mxu0
      %v3198 = vadd.f32 0.0, %v3197
      %v3199 = vpop.f32.mrb[0].mxu0
      %3200 = vmatprep.mubr.bf16.mxu0 0
      %3201 = vmatmul.mubr.bf16.gmra.mrb[0].mxu0 %v3088
      %v3202 = vpop.f32.mrb[0].mxu0
      %v3203 = vadd.f32 0.0, %v3202
      %v3204 = vpop.f32.mrb[0].mxu0
      %v3205 = vpop.f32.mrb[0].mxu0
      %v3206 = vadd.f32 0.0, %v3205
      %v3207 = vpop.f32.mrb[0].mxu0
      %3208 = vmatprep.mubr.bf16.mxu0 0
      %3209 = vmatmul.mubr.bf16.gmra.mrb[0].mxu0 %v3091
      %v3210 = vpop.f32.mrb[0].mxu0
      %v3211 = vadd.f32 0.0, %v3210
      %v3212 = vpop.f32.mrb[0].mxu0
      %v3213 = vpop.f32.mrb[0].mxu0
      %v3214 = vadd.f32 0.0, %v3213
      %v3215 = vpop.f32.mrb[0].mxu0
      %3216 = vmatprep.mubr.bf16.mxu0 0
      %3217 = vmatmul.mubr.bf16.gmra.mrb[0].mxu0 %v3094
      %v3218 = vpop.f32.mrb[0].mxu0
      %v3219 = vadd.f32 0.0, %v3218
      %v3220 = vpop.f32.mrb[0].mxu0
      %v3221 = vpop.f32.mrb[0].mxu0
      %v3222 = vadd.f32 0.0, %v3221
      %v3223 = vpop.f32.mrb[0].mxu0
      %3224 = vmatprep.mubr.bf16.mxu0 0
      %3225 = vmatmul.mubr.bf16.gmra.mrb[0].mxu0 %v3097
      %v3226 = vpop.f32.mrb[0].mxu0
      %v3227 = vadd.f32 0.0, %v3226
      %v3228 = vpop.f32.mrb[0].mxu0
      %v3229 = vpop.f32.mrb[0].mxu0
      %v3230 = vadd.f32 0.0, %v3229
      %v3231 = vpop.f32.mrb[0].mxu0
      %3232 = vmatprep.mubr.bf16.mxu0 0
      %3233 = vmatmul.mubr.bf16.gmra.mrb[0].mxu0 %v3100
      %v3234 = vpop.f32.mrb[0].mxu0
      %v3235 = vadd.f32 0.0, %v3234
      %v3236 = vpop.f32.mrb[0].mxu0
      %v3237 = vpop.f32.mrb[0].mxu0
      %v3238 = vadd.f32 0.0, %v3237
      %v3239 = vpop.f32.mrb[0].mxu0
      %3240 = vmatprep.mubr.bf16.mxu0 0
      %3241 = vmatmul.mubr.bf16.gmra.mrb[0].mxu0 %v3103
      %v3242 = vpop.f32.mrb[0].mxu0
      %v3243 = vadd.f32 0.0, %v3242
      %v3244 = vpop.f32.mrb[0].mxu0
      %v3245 = vpop.f32.mrb[0].mxu0
      %v3246 = vadd.f32 0.0, %v3245
      %v3247 = vpop.f32.mrb[0].mxu0
      %3248 = vmatprep.mubr.bf16.mxu0 0
      %3249 = vmatmul.mubr.bf16.gmra.mrb[0].mxu0 %v3106
      %v3250 = vpop.f32.mrb[0].mxu0
      %v3251 = vadd.f32 0.0, %v3250
      %v3252 = vpop.f32.mrb[0].mxu0
      %v3253 = vpop.f32.mrb[0].mxu0
      %v3254 = vadd.f32 0.0, %v3253
      %v3255 = vpop.f32.mrb[0].mxu0
      %3256 = vmatprep.mubr.bf16.mxu0 0
      %3257 = vmatmul.mubr.bf16.gmra.mrb[0].mxu0 %v3109
      %v3258 = vpop.f32.mrb[0].mxu0
      %v3259 = vadd.f32 0.0, %v3258
      %v3260 = vpop.f32.mrb[0].mxu0
      %v3261 = vpop.f32.mrb[0].mxu0
      %v3262 = vadd.f32 0.0, %v3261
      %v3263 = vpop.f32.mrb[0].mxu0
      %3264 = vmatprep.mubr.bf16.mxu0 0
      %3265 = vmatmul.mubr.bf16.gmra.mrb[0].mxu0 %v3112
      %v3266 = vpop.f32.mrb[0].mxu0
      %v3267 = vadd.f32 0.0, %v3266
      %v3268 = vpop.f32.mrb[0].mxu0
      %v3269 = vpop.f32.mrb[0].mxu0
      %v3270 = vadd.f32 0.0, %v3269
      %v3271 = vpop.f32.mrb[0].mxu0
      %3272 = vmatprep.mubr.bf16.mxu0 0
      %3273 = vmatmul.mubr.bf16.gmra.mrb[0].mxu0 %v3115
      %v3274 = vpop.f32.mrb[0].mxu0
      %v3275 = vadd.f32 0.0, %v3274
      %v3276 = vpop.f32.mrb[0].mxu0
      %v3277 = vpop.f32.mrb[0].mxu0
      %v3278 = vadd.f32 0.0, %v3277
      %v3279 = vpop.f32.mrb[0].mxu0
      %3280 = vdwg.mxu0
      %v3281 = vld [vmem:[#allocation4] sm:$0xff]
      %v3282 = vld [vmem:[#allocation4 + $0x8] sm:$0xff]
      %v3283 = vld [vmem:[#allocation4 + $0x10] sm:$0xff]
      %v3284 = vld [vmem:[#allocation4 + $0x18] sm:$0xff]
      %v3285 = vld [vmem:[#allocation4 + $0x20] sm:$0xff]
      %v3286 = vld [vmem:[#allocation4 + $0x28] sm:$0xff]
      %v3287 = vld [vmem:[#allocation4 + $0x30] sm:$0xff]
      %v3288 = vld [vmem:[#allocation4 + $0x38] sm:$0xff]
      %v3289 = vld [vmem:[#allocation4 + $0x40] sm:$0xff]
      %v3290 = vld [vmem:[#allocation4 + $0x48] sm:$0xff]
      %v3291 = vld [vmem:[#allocation4 + $0x50] sm:$0xff]
      %v3292 = vld [vmem:[#allocation4 + $0x58] sm:$0xff]
      %v3293 = vld [vmem:[#allocation4 + $0x60] sm:$0xff]
      %v3294 = vld [vmem:[#allocation4 + $0x68] sm:$0xff]
      %v3295 = vld [vmem:[#allocation4 + $0x70] sm:$0xff]
      %v3296 = vld [vmem:[#allocation4 + $0x78] sm:$0xff]
      %v3297 = vld [vmem:[#allocation4 + $0x80] sm:$0xff]
      %v3298 = vld [vmem:[#allocation4 + $0x88] sm:$0xff]
      %v3299 = vld [vmem:[#allocation4 + $0x90] sm:$0xff]
      %v3300 = vld [vmem:[#allocation4 + $0x98] sm:$0xff]
      %v3301 = vld [vmem:[#allocation4 + $0xa0] sm:$0xff]
      %v3302 = vld [vmem:[#allocation4 + $0xa8] sm:$0xff]
      %v3303 = vld [vmem:[#allocation4 + $0xb0] sm:$0xff]
      %v3304 = vld [vmem:[#allocation4 + $0xb8] sm:$0xff]
      %v3305 = vld [vmem:[#allocation4 + $0xc0] sm:$0xff]
      %v3306 = vld [vmem:[#allocation4 + $0xc8] sm:$0xff]
      %v3307 = vld [vmem:[#allocation4 + $0xd0] sm:$0xff]
      %v3308 = vld [vmem:[#allocation4 + $0xd8] sm:$0xff]
      %v3309 = vld [vmem:[#allocation4 + $0xe0] sm:$0xff]
      %v3310 = vld [vmem:[#allocation4 + $0xe8] sm:$0xff]
      %v3311 = vld [vmem:[#allocation4 + $0xf0] sm:$0xff]
      %v3312 = vld [vmem:[#allocation4 + $0xf8] sm:$0xff]
      %v3313 = vadd.f32 %v3281, %v3155
      %v3314 = vadd.f32 %v3282, %v3158
      %v3315 = vadd.f32 %v3283, %v3163
      %v3316 = vadd.f32 %v3284, %v3166
      %v3317 = vadd.f32 %v3285, %v3171
      %v3318 = vadd.f32 %v3286, %v3174
      %v3319 = vadd.f32 %v3287, %v3179
      %v3320 = vadd.f32 %v3288, %v3182
      %v3321 = vadd.f32 %v3289, %v3187
      %v3322 = vadd.f32 %v3290, %v3190
      %v3323 = vadd.f32 %v3291, %v3195
      %v3324 = vadd.f32 %v3292, %v3198
      %v3325 = vadd.f32 %v3293, %v3203
      %v3326 = vadd.f32 %v3294, %v3206
      %v3327 = vadd.f32 %v3295, %v3211
      %v3328 = vadd.f32 %v3296, %v3214
      %v3329 = vadd.f32 %v3297, %v3219
      %v3330 = vadd.f32 %v3298, %v3222
      %v3331 = vadd.f32 %v3299, %v3227
      %v3332 = vadd.f32 %v3300, %v3230
      %v3333 = vadd.f32 %v3301, %v3235
      %v3334 = vadd.f32 %v3302, %v3238
      %v3335 = vadd.f32 %v3303, %v3243
      %v3336 = vadd.f32 %v3304, %v3246
      %v3337 = vadd.f32 %v3305, %v3251
      %v3338 = vadd.f32 %v3306, %v3254
      %v3339 = vadd.f32 %v3307, %v3259
      %v3340 = vadd.f32 %v3308, %v3262
      %v3341 = vadd.f32 %v3309, %v3267
      %v3342 = vadd.f32 %v3310, %v3270
      %v3343 = vadd.f32 %v3311, %v3275
      %v3344 = vadd.f32 %v3312, %v3278
      %3345 = vst.msk [vmem:[#allocation4] sm:$0xff] %vm500, %v3313
      %3346 = vst.msk [vmem:[#allocation4 + $0x8] sm:$0xff] %vm500, %v3314
      %3347 = vst.msk [vmem:[#allocation4 + $0x10] sm:$0xff] %vm500, %v3315
      %3348 = vst.msk [vmem:[#allocation4 + $0x18] sm:$0xff] %vm500, %v3316
      %3349 = vst.msk [vmem:[#allocation4 + $0x20] sm:$0xff] %vm500, %v3317
      %3350 = vst.msk [vmem:[#allocation4 + $0x28] sm:$0xff] %vm500, %v3318
      %3351 = vst.msk [vmem:[#allocation4 + $0x30] sm:$0xff] %vm500, %v3319
      %3352 = vst.msk [vmem:[#allocation4 + $0x38] sm:$0xff] %vm500, %v3320
      %3353 = vst.msk [vmem:[#allocation4 + $0x40] sm:$0xff] %vm500, %v3321
      %3354 = vst.msk [vmem:[#allocation4 + $0x48] sm:$0xff] %vm500, %v3322
      %3355 = vst.msk [vmem:[#allocation4 + $0x50] sm:$0xff] %vm500, %v3323
      %3356 = vst.msk [vmem:[#allocation4 + $0x58] sm:$0xff] %vm500, %v3324
      %3357 = vst.msk [vmem:[#allocation4 + $0x60] sm:$0xff] %vm500, %v3325
      %3358 = vst.msk [vmem:[#allocation4 + $0x68] sm:$0xff] %vm500, %v3326
      %3359 = vst.msk [vmem:[#allocation4 + $0x70] sm:$0xff] %vm500, %v3327
      %3360 = vst.msk [vmem:[#allocation4 + $0x78] sm:$0xff] %vm500, %v3328
      %3361 = vst.msk [vmem:[#allocation4 + $0x80] sm:$0xff] %vm500, %v3329
      %3362 = vst.msk [vmem:[#allocation4 + $0x88] sm:$0xff] %vm500, %v3330
      %3363 = vst.msk [vmem:[#allocation4 + $0x90] sm:$0xff] %vm500, %v3331
      %3364 = vst.msk [vmem:[#allocation4 + $0x98] sm:$0xff] %vm500, %v3332
      %3365 = vst.msk [vmem:[#allocation4 + $0xa0] sm:$0xff] %vm500, %v3333
      %3366 = vst.msk [vmem:[#allocation4 + $0xa8] sm:$0xff] %vm500, %v3334
      %3367 = vst.msk [vmem:[#allocation4 + $0xb0] sm:$0xff] %vm500, %v3335
      %3368 = vst.msk [vmem:[#allocation4 + $0xb8] sm:$0xff] %vm500, %v3336
      %3369 = vst.msk [vmem:[#allocation4 + $0xc0] sm:$0xff] %vm500, %v3337
      %3370 = vst.msk [vmem:[#allocation4 + $0xc8] sm:$0xff] %vm500, %v3338
      %3371 = vst.msk [vmem:[#allocation4 + $0xd0] sm:$0xff] %vm500, %v3339
      %3372 = vst.msk [vmem:[#allocation4 + $0xd8] sm:$0xff] %vm500, %v3340
      %3373 = vst.msk [vmem:[#allocation4 + $0xe0] sm:$0xff] %vm500, %v3341
      %3374 = vst.msk [vmem:[#allocation4 + $0xe8] sm:$0xff] %vm500, %v3342
      %3375 = vst.msk [vmem:[#allocation4 + $0xf0] sm:$0xff] %vm500, %v3343
      %3376 = vst.msk [vmem:[#allocation4 + $0xf8] sm:$0xff] %vm500, %v3344
      %s3377 = scalar_lea.vmem [#allocation3], 160
      %v3378 = vld [vmem:[%s3377] sm:$0xff]
      %v3379 = vld [vmem:[%s3377 + $0x8] sm:$0xff]
      %v3380 = vld [vmem:[%s3377 + $0x10] sm:$0xff]
      %v3381 = vld [vmem:[%s3377 + $0x18] sm:$0xff]
      %v3382 = vld [vmem:[%s3377 + $0x20] sm:$0xff]
      %v3383 = vld [vmem:[%s3377 + $0x28] sm:$0xff]
      %v3384 = vld [vmem:[%s3377 + $0x30] sm:$0xff]
      %v3385 = vld [vmem:[%s3377 + $0x38] sm:$0xff]
      %v3386 = vld [vmem:[%s3377 + $0x40] sm:$0xff]
      %v3387 = vld [vmem:[%s3377 + $0x48] sm:$0xff]
      %v3388 = vld [vmem:[%s3377 + $0x50] sm:$0xff]
      %v3389 = vld [vmem:[%s3377 + $0x58] sm:$0xff]
      %v3390 = vld [vmem:[%s3377 + $0x60] sm:$0xff]
      %v3391 = vld [vmem:[%s3377 + $0x68] sm:$0xff]
      %v3392 = vld [vmem:[%s3377 + $0x70] sm:$0xff]
      %v3393 = vld [vmem:[%s3377 + $0x78] sm:$0xff]
      %s3394 = scalar_lea.vmem %s369, 7
      %v3395 = vld [vmem:[%s3394] sm:$0x1]
      %v3397 = vsel %vm824, %v3378, 0
      %v3400 = vsel %vm824, %v3379, 0
      %v3403 = vsel %vm824, %v3380, 0
      %v3406 = vsel %vm824, %v3381, 0
      %v3409 = vsel %vm824, %v3382, 0
      %v3412 = vsel %vm824, %v3383, 0
      %v3415 = vsel %vm824, %v3384, 0
      %v3418 = vsel %vm824, %v3385, 0
      %v3421 = vsel %vm824, %v3386, 0
      %v3424 = vsel %vm824, %v3387, 0
      %v3427 = vsel %vm824, %v3388, 0
      %v3430 = vsel %vm824, %v3389, 0
      %v3433 = vsel %vm824, %v3390, 0
      %v3436 = vsel %vm824, %v3391, 0
      %v3439 = vsel %vm824, %v3392, 0
      %v3442 = vsel %vm824, %v3393, 0
      %v3445 = vsel %vm864, %v3395, 0
      %3447 = vmatprep.subr.bf16.mxu0 0
      %3448 = vmatpush1.bf16.msra.mxu0 %v3445
      %3449 = vmatprep.subr.bf16.mxu0 0
      %3450 = vmatpush1.bf16.msra.mxu0 0
      %3451 = vmatprep.subr.bf16.mxu0 0
      %3452 = vmatpush1.bf16.msra.mxu0 0
      %3453 = vmatprep.subr.bf16.mxu0 0
      %3454 = vmatpush1.bf16.msra.mxu0 0
      %3455 = vmatprep.subr.bf16.mxu0 0
      %3456 = vmatpush1.bf16.msra.mxu0 0
      %3457 = vmatprep.subr.bf16.mxu0 0
      %3458 = vmatpush1.bf16.msra.mxu0 0
      %3459 = vmatprep.subr.bf16.mxu0 0
      %3460 = vmatpush1.bf16.msra.mxu0 0
      %3461 = vmatprep.subr.bf16.mxu0 0
      %3462 = vmatpush1.bf16.msra.mxu0 0
      %3463 = vmatprep.subr.bf16.mxu0 0
      %3464 = vmatpush1.bf16.msra.mxu0 0
      %3465 = vmatprep.subr.bf16.mxu0 0
      %3466 = vmatpush1.bf16.msra.mxu0 0
      %3467 = vmatprep.subr.bf16.mxu0 0
      %3468 = vmatpush1.bf16.msra.mxu0 0
      %3469 = vmatprep.subr.bf16.mxu0 0
      %3470 = vmatpush1.bf16.msra.mxu0 0
      %3471 = vmatprep.subr.bf16.mxu0 0
      %3472 = vmatpush1.bf16.msra.mxu0 0
      %3473 = vmatprep.subr.bf16.mxu0 0
      %3474 = vmatpush1.bf16.msra.mxu0 0
      %3475 = vmatprep.subr.bf16.mxu0 0
      %3476 = vmatpush1.bf16.msra.mxu0 0
      %3477 = vmatprep.subr.bf16.mxu0 0
      %3478 = vmatpush1.bf16.msra.mxu0 0
      %3479 = vmatprep.mubr.bf16.mxu0 0
      %3480 = vmatmul.mubr.bf16.gmra.mrb[0].mxu0 %v3397
      %v3481 = vpop.f32.mrb[0].mxu0
      %v3482 = vadd.f32 0.0, %v3481
      %v3483 = vpop.f32.mrb[0].mxu0
      %v3484 = vpop.f32.mrb[0].mxu0
      %v3485 = vadd.f32 0.0, %v3484
      %v3486 = vpop.f32.mrb[0].mxu0
      %3487 = vmatprep.mubr.bf16.mxu0 0
      %3488 = vmatmul.mubr.bf16.gmra.mrb[0].mxu0 %v3400
      %v3489 = vpop.f32.mrb[0].mxu0
      %v3490 = vadd.f32 0.0, %v3489
      %v3491 = vpop.f32.mrb[0].mxu0
      %v3492 = vpop.f32.mrb[0].mxu0
      %v3493 = vadd.f32 0.0, %v3492
      %v3494 = vpop.f32.mrb[0].mxu0
      %3495 = vmatprep.mubr.bf16.mxu0 0
      %3496 = vmatmul.mubr.bf16.gmra.mrb[0].mxu0 %v3403
      %v3497 = vpop.f32.mrb[0].mxu0
      %v3498 = vadd.f32 0.0, %v3497
      %v3499 = vpop.f32.mrb[0].mxu0
      %v3500 = vpop.f32.mrb[0].mxu0
      %v3501 = vadd.f32 0.0, %v3500
      %v3502 = vpop.f32.mrb[0].mxu0
      %3503 = vmatprep.mubr.bf16.mxu0 0
      %3504 = vmatmul.mubr.bf16.gmra.mrb[0].mxu0 %v3406
      %v3505 = vpop.f32.mrb[0].mxu0
      %v3506 = vadd.f32 0.0, %v3505
      %v3507 = vpop.f32.mrb[0].mxu0
      %v3508 = vpop.f32.mrb[0].mxu0
      %v3509 = vadd.f32 0.0, %v3508
      %v3510 = vpop.f32.mrb[0].mxu0
      %3511 = vmatprep.mubr.bf16.mxu0 0
      %3512 = vmatmul.mubr.bf16.gmra.mrb[0].mxu0 %v3409
      %v3513 = vpop.f32.mrb[0].mxu0
      %v3514 = vadd.f32 0.0, %v3513
      %v3515 = vpop.f32.mrb[0].mxu0
      %v3516 = vpop.f32.mrb[0].mxu0
      %v3517 = vadd.f32 0.0, %v3516
      %v3518 = vpop.f32.mrb[0].mxu0
      %3519 = vmatprep.mubr.bf16.mxu0 0
      %3520 = vmatmul.mubr.bf16.gmra.mrb[0].mxu0 %v3412
      %v3521 = vpop.f32.mrb[0].mxu0
      %v3522 = vadd.f32 0.0, %v3521
      %v3523 = vpop.f32.mrb[0].mxu0
      %v3524 = vpop.f32.mrb[0].mxu0
      %v3525 = vadd.f32 0.0, %v3524
      %v3526 = vpop.f32.mrb[0].mxu0
      %3527 = vmatprep.mubr.bf16.mxu0 0
      %3528 = vmatmul.mubr.bf16.gmra.mrb[0].mxu0 %v3415
      %v3529 = vpop.f32.mrb[0].mxu0
      %v3530 = vadd.f32 0.0, %v3529
      %v3531 = vpop.f32.mrb[0].mxu0
      %v3532 = vpop.f32.mrb[0].mxu0
      %v3533 = vadd.f32 0.0, %v3532
      %v3534 = vpop.f32.mrb[0].mxu0
      %3535 = vmatprep.mubr.bf16.mxu0 0
      %3536 = vmatmul.mubr.bf16.gmra.mrb[0].mxu0 %v3418
      %v3537 = vpop.f32.mrb[0].mxu0
      %v3538 = vadd.f32 0.0, %v3537
      %v3539 = vpop.f32.mrb[0].mxu0
      %v3540 = vpop.f32.mrb[0].mxu0
      %v3541 = vadd.f32 0.0, %v3540
      %v3542 = vpop.f32.mrb[0].mxu0
      %3543 = vmatprep.mubr.bf16.mxu0 0
      %3544 = vmatmul.mubr.bf16.gmra.mrb[0].mxu0 %v3421
      %v3545 = vpop.f32.mrb[0].mxu0
      %v3546 = vadd.f32 0.0, %v3545
      %v3547 = vpop.f32.mrb[0].mxu0
      %v3548 = vpop.f32.mrb[0].mxu0
      %v3549 = vadd.f32 0.0, %v3548
      %v3550 = vpop.f32.mrb[0].mxu0
      %3551 = vmatprep.mubr.bf16.mxu0 0
      %3552 = vmatmul.mubr.bf16.gmra.mrb[0].mxu0 %v3424
      %v3553 = vpop.f32.mrb[0].mxu0
      %v3554 = vadd.f32 0.0, %v3553
      %v3555 = vpop.f32.mrb[0].mxu0
      %v3556 = vpop.f32.mrb[0].mxu0
      %v3557 = vadd.f32 0.0, %v3556
      %v3558 = vpop.f32.mrb[0].mxu0
      %3559 = vmatprep.mubr.bf16.mxu0 0
      %3560 = vmatmul.mubr.bf16.gmra.mrb[0].mxu0 %v3427
      %v3561 = vpop.f32.mrb[0].mxu0
      %v3562 = vadd.f32 0.0, %v3561
      %v3563 = vpop.f32.mrb[0].mxu0
      %v3564 = vpop.f32.mrb[0].mxu0
      %v3565 = vadd.f32 0.0, %v3564
      %v3566 = vpop.f32.mrb[0].mxu0
      %3567 = vmatprep.mubr.bf16.mxu0 0
      %3568 = vmatmul.mubr.bf16.gmra.mrb[0].mxu0 %v3430
      %v3569 = vpop.f32.mrb[0].mxu0
      %v3570 = vadd.f32 0.0, %v3569
      %v3571 = vpop.f32.mrb[0].mxu0
      %v3572 = vpop.f32.mrb[0].mxu0
      %v3573 = vadd.f32 0.0, %v3572
      %v3574 = vpop.f32.mrb[0].mxu0
      %3575 = vmatprep.mubr.bf16.mxu0 0
      %3576 = vmatmul.mubr.bf16.gmra.mrb[0].mxu0 %v3433
      %v3577 = vpop.f32.mrb[0].mxu0
      %v3578 = vadd.f32 0.0, %v3577
      %v3579 = vpop.f32.mrb[0].mxu0
      %v3580 = vpop.f32.mrb[0].mxu0
      %v3581 = vadd.f32 0.0, %v3580
      %v3582 = vpop.f32.mrb[0].mxu0
      %3583 = vmatprep.mubr.bf16.mxu0 0
      %3584 = vmatmul.mubr.bf16.gmra.mrb[0].mxu0 %v3436
      %v3585 = vpop.f32.mrb[0].mxu0
      %v3586 = vadd.f32 0.0, %v3585
      %v3587 = vpop.f32.mrb[0].mxu0
      %v3588 = vpop.f32.mrb[0].mxu0
      %v3589 = vadd.f32 0.0, %v3588
      %v3590 = vpop.f32.mrb[0].mxu0
      %3591 = vmatprep.mubr.bf16.mxu0 0
      %3592 = vmatmul.mubr.bf16.gmra.mrb[0].mxu0 %v3439
      %v3593 = vpop.f32.mrb[0].mxu0
      %v3594 = vadd.f32 0.0, %v3593
      %v3595 = vpop.f32.mrb[0].mxu0
      %v3596 = vpop.f32.mrb[0].mxu0
      %v3597 = vadd.f32 0.0, %v3596
      %v3598 = vpop.f32.mrb[0].mxu0
      %3599 = vmatprep.mubr.bf16.mxu0 0
      %3600 = vmatmul.mubr.bf16.gmra.mrb[0].mxu0 %v3442
      %v3601 = vpop.f32.mrb[0].mxu0
      %v3602 = vadd.f32 0.0, %v3601
      %v3603 = vpop.f32.mrb[0].mxu0
      %v3604 = vpop.f32.mrb[0].mxu0
      %v3605 = vadd.f32 0.0, %v3604
      %v3606 = vpop.f32.mrb[0].mxu0
      %3607 = vdwg.mxu0
      %v3608 = vld [vmem:[#allocation4] sm:$0xff]
      %v3609 = vld [vmem:[#allocation4 + $0x8] sm:$0xff]
      %v3610 = vld [vmem:[#allocation4 + $0x10] sm:$0xff]
      %v3611 = vld [vmem:[#allocation4 + $0x18] sm:$0xff]
      %v3612 = vld [vmem:[#allocation4 + $0x20] sm:$0xff]
      %v3613 = vld [vmem:[#allocation4 + $0x28] sm:$0xff]
      %v3614 = vld [vmem:[#allocation4 + $0x30] sm:$0xff]
      %v3615 = vld [vmem:[#allocation4 + $0x38] sm:$0xff]
      %v3616 = vld [vmem:[#allocation4 + $0x40] sm:$0xff]
      %v3617 = vld [vmem:[#allocation4 + $0x48] sm:$0xff]
      %v3618 = vld [vmem:[#allocation4 + $0x50] sm:$0xff]
      %v3619 = vld [vmem:[#allocation4 + $0x58] sm:$0xff]
      %v3620 = vld [vmem:[#allocation4 + $0x60] sm:$0xff]
      %v3621 = vld [vmem:[#allocation4 + $0x68] sm:$0xff]
      %v3622 = vld [vmem:[#allocation4 + $0x70] sm:$0xff]
      %v3623 = vld [vmem:[#allocation4 + $0x78] sm:$0xff]
      %v3624 = vld [vmem:[#allocation4 + $0x80] sm:$0xff]
      %v3625 = vld [vmem:[#allocation4 + $0x88] sm:$0xff]
      %v3626 = vld [vmem:[#allocation4 + $0x90] sm:$0xff]
      %v3627 = vld [vmem:[#allocation4 + $0x98] sm:$0xff]
      %v3628 = vld [vmem:[#allocation4 + $0xa0] sm:$0xff]
      %v3629 = vld [vmem:[#allocation4 + $0xa8] sm:$0xff]
      %v3630 = vld [vmem:[#allocation4 + $0xb0] sm:$0xff]
      %v3631 = vld [vmem:[#allocation4 + $0xb8] sm:$0xff]
      %v3632 = vld [vmem:[#allocation4 + $0xc0] sm:$0xff]
      %v3633 = vld [vmem:[#allocation4 + $0xc8] sm:$0xff]
      %v3634 = vld [vmem:[#allocation4 + $0xd0] sm:$0xff]
      %v3635 = vld [vmem:[#allocation4 + $0xd8] sm:$0xff]
      %v3636 = vld [vmem:[#allocation4 + $0xe0] sm:$0xff]
      %v3637 = vld [vmem:[#allocation4 + $0xe8] sm:$0xff]
      %v3638 = vld [vmem:[#allocation4 + $0xf0] sm:$0xff]
      %v3639 = vld [vmem:[#allocation4 + $0xf8] sm:$0xff]
      %v3640 = vadd.f32 %v3608, %v3482
      %v3641 = vadd.f32 %v3609, %v3485
      %v3642 = vadd.f32 %v3610, %v3490
      %v3643 = vadd.f32 %v3611, %v3493
      %v3644 = vadd.f32 %v3612, %v3498
      %v3645 = vadd.f32 %v3613, %v3501
      %v3646 = vadd.f32 %v3614, %v3506
      %v3647 = vadd.f32 %v3615, %v3509
      %v3648 = vadd.f32 %v3616, %v3514
      %v3649 = vadd.f32 %v3617, %v3517
      %v3650 = vadd.f32 %v3618, %v3522
      %v3651 = vadd.f32 %v3619, %v3525
      %v3652 = vadd.f32 %v3620, %v3530
      %v3653 = vadd.f32 %v3621, %v3533
      %v3654 = vadd.f32 %v3622, %v3538
      %v3655 = vadd.f32 %v3623, %v3541
      %v3656 = vadd.f32 %v3624, %v3546
      %v3657 = vadd.f32 %v3625, %v3549
      %v3658 = vadd.f32 %v3626, %v3554
      %v3659 = vadd.f32 %v3627, %v3557
      %v3660 = vadd.f32 %v3628, %v3562
      %v3661 = vadd.f32 %v3629, %v3565
      %v3662 = vadd.f32 %v3630, %v3570
      %v3663 = vadd.f32 %v3631, %v3573
      %v3664 = vadd.f32 %v3632, %v3578
      %v3665 = vadd.f32 %v3633, %v3581
      %v3666 = vadd.f32 %v3634, %v3586
      %v3667 = vadd.f32 %v3635, %v3589
      %v3668 = vadd.f32 %v3636, %v3594
      %v3669 = vadd.f32 %v3637, %v3597
      %v3670 = vadd.f32 %v3638, %v3602
      %v3671 = vadd.f32 %v3639, %v3605
      %3672 = vst.msk [vmem:[#allocation4] sm:$0xff] %vm500, %v3640
      %3673 = vst.msk [vmem:[#allocation4 + $0x8] sm:$0xff] %vm500, %v3641
      %3674 = vst.msk [vmem:[#allocation4 + $0x10] sm:$0xff] %vm500, %v3642
      %3675 = vst.msk [vmem:[#allocation4 + $0x18] sm:$0xff] %vm500, %v3643
      %3676 = vst.msk [vmem:[#allocation4 + $0x20] sm:$0xff] %vm500, %v3644
      %3677 = vst.msk [vmem:[#allocation4 + $0x28] sm:$0xff] %vm500, %v3645
      %3678 = vst.msk [vmem:[#allocation4 + $0x30] sm:$0xff] %vm500, %v3646
      %3679 = vst.msk [vmem:[#allocation4 + $0x38] sm:$0xff] %vm500, %v3647
      %3680 = vst.msk [vmem:[#allocation4 + $0x40] sm:$0xff] %vm500, %v3648
      %3681 = vst.msk [vmem:[#allocation4 + $0x48] sm:$0xff] %vm500, %v3649
      %3682 = vst.msk [vmem:[#allocation4 + $0x50] sm:$0xff] %vm500, %v3650
      %3683 = vst.msk [vmem:[#allocation4 + $0x58] sm:$0xff] %vm500, %v3651
      %3684 = vst.msk [vmem:[#allocation4 + $0x60] sm:$0xff] %vm500, %v3652
      %3685 = vst.msk [vmem:[#allocation4 + $0x68] sm:$0xff] %vm500, %v3653
      %3686 = vst.msk [vmem:[#allocation4 + $0x70] sm:$0xff] %vm500, %v3654
      %3687 = vst.msk [vmem:[#allocation4 + $0x78] sm:$0xff] %vm500, %v3655
      %3688 = vst.msk [vmem:[#allocation4 + $0x80] sm:$0xff] %vm500, %v3656
      %3689 = vst.msk [vmem:[#allocation4 + $0x88] sm:$0xff] %vm500, %v3657
      %3690 = vst.msk [vmem:[#allocation4 + $0x90] sm:$0xff] %vm500, %v3658
      %3691 = vst.msk [vmem:[#allocation4 + $0x98] sm:$0xff] %vm500, %v3659
      %3692 = vst.msk [vmem:[#allocation4 + $0xa0] sm:$0xff] %vm500, %v3660
      %3693 = vst.msk [vmem:[#allocation4 + $0xa8] sm:$0xff] %vm500, %v3661
      %3694 = vst.msk [vmem:[#allocation4 + $0xb0] sm:$0xff] %vm500, %v3662
      %3695 = vst.msk [vmem:[#allocation4 + $0xb8] sm:$0xff] %vm500, %v3663
      %3696 = vst.msk [vmem:[#allocation4 + $0xc0] sm:$0xff] %vm500, %v3664
      %3697 = vst.msk [vmem:[#allocation4 + $0xc8] sm:$0xff] %vm500, %v3665
      %3698 = vst.msk [vmem:[#allocation4 + $0xd0] sm:$0xff] %vm500, %v3666
      %3699 = vst.msk [vmem:[#allocation4 + $0xd8] sm:$0xff] %vm500, %v3667
      %3700 = vst.msk [vmem:[#allocation4 + $0xe0] sm:$0xff] %vm500, %v3668
      %3701 = vst.msk [vmem:[#allocation4 + $0xe8] sm:$0xff] %vm500, %v3669
      %3702 = vst.msk [vmem:[#allocation4 + $0xf0] sm:$0xff] %vm500, %v3670
      %3703 = vst.msk [vmem:[#allocation4 + $0xf8] sm:$0xff] %vm500, %v3671
      %s3704 = scalar_lea.vmem [#allocation3], 304
      %v3705 = vld [vmem:[%s3704] sm:$0xff]
      %v3706 = vld [vmem:[%s3704 + $0x8] sm:$0xff]
      %v3707 = vld [vmem:[%s3704 + $0x10] sm:$0xff]
      %v3708 = vld [vmem:[%s3704 + $0x18] sm:$0xff]
      %v3709 = vld [vmem:[%s3704 + $0x20] sm:$0xff]
      %v3710 = vld [vmem:[%s3704 + $0x28] sm:$0xff]
      %v3711 = vld [vmem:[%s3704 + $0x30] sm:$0xff]
      %v3712 = vld [vmem:[%s3704 + $0x38] sm:$0xff]
      %v3713 = vld [vmem:[%s3704 + $0x40] sm:$0xff]
      %v3714 = vld [vmem:[%s3704 + $0x48] sm:$0xff]
      %v3715 = vld [vmem:[%s3704 + $0x50] sm:$0xff]
      %v3716 = vld [vmem:[%s3704 + $0x58] sm:$0xff]
      %v3717 = vld [vmem:[%s3704 + $0x60] sm:$0xff]
      %v3718 = vld [vmem:[%s3704 + $0x68] sm:$0xff]
      %v3719 = vld [vmem:[%s3704 + $0x70] sm:$0xff]
      %v3720 = vld [vmem:[%s3704 + $0x78] sm:$0xff]
      %s3721 = scalar_lea.vmem %s369, 8
      %v3722 = vld [vmem:[%s3721] sm:$0x1]
      %v3724 = vsel %vm824, %v3705, 0
      %v3727 = vsel %vm824, %v3706, 0
      %v3730 = vsel %vm824, %v3707, 0
      %v3733 = vsel %vm824, %v3708, 0
      %v3736 = vsel %vm824, %v3709, 0
      %v3739 = vsel %vm824, %v3710, 0
      %v3742 = vsel %vm824, %v3711, 0
      %v3745 = vsel %vm824, %v3712, 0
      %v3748 = vsel %vm824, %v3713, 0
      %v3751 = vsel %vm824, %v3714, 0
      %v3754 = vsel %vm824, %v3715, 0
      %v3757 = vsel %vm824, %v3716, 0
      %v3760 = vsel %vm824, %v3717, 0
      %v3763 = vsel %vm824, %v3718, 0
      %v3766 = vsel %vm824, %v3719, 0
      %v3769 = vsel %vm824, %v3720, 0
      %v3772 = vsel %vm864, %v3722, 0
      %3774 = vmatprep.subr.bf16.mxu0 0
      %3775 = vmatpush1.bf16.msra.mxu0 %v3772
      %3776 = vmatprep.subr.bf16.mxu0 0
      %3777 = vmatpush1.bf16.msra.mxu0 0
      %3778 = vmatprep.subr.bf16.mxu0 0
      %3779 = vmatpush1.bf16.msra.mxu0 0
      %3780 = vmatprep.subr.bf16.mxu0 0
      %3781 = vmatpush1.bf16.msra.mxu0 0
      %3782 = vmatprep.subr.bf16.mxu0 0
      %3783 = vmatpush1.bf16.msra.mxu0 0
      %3784 = vmatprep.subr.bf16.mxu0 0
      %3785 = vmatpush1.bf16.msra.mxu0 0
      %3786 = vmatprep.subr.bf16.mxu0 0
      %3787 = vmatpush1.bf16.msra.mxu0 0
      %3788 = vmatprep.subr.bf16.mxu0 0
      %3789 = vmatpush1.bf16.msra.mxu0 0
      %3790 = vmatprep.subr.bf16.mxu0 0
      %3791 = vmatpush1.bf16.msra.mxu0 0
      %3792 = vmatprep.subr.bf16.mxu0 0
      %3793 = vmatpush1.bf16.msra.mxu0 0
      %3794 = vmatprep.subr.bf16.mxu0 0
      %3795 = vmatpush1.bf16.msra.mxu0 0
      %3796 = vmatprep.subr.bf16.mxu0 0
      %3797 = vmatpush1.bf16.msra.mxu0 0
      %3798 = vmatprep.subr.bf16.mxu0 0
      %3799 = vmatpush1.bf16.msra.mxu0 0
      %3800 = vmatprep.subr.bf16.mxu0 0
      %3801 = vmatpush1.bf16.msra.mxu0 0
      %3802 = vmatprep.subr.bf16.mxu0 0
      %3803 = vmatpush1.bf16.msra.mxu0 0
      %3804 = vmatprep.subr.bf16.mxu0 0
      %3805 = vmatpush1.bf16.msra.mxu0 0
      %3806 = vmatprep.mubr.bf16.mxu0 0
      %3807 = vmatmul.mubr.bf16.gmra.mrb[0].mxu0 %v3724
      %v3808 = vpop.f32.mrb[0].mxu0
      %v3809 = vadd.f32 0.0, %v3808
      %v3810 = vpop.f32.mrb[0].mxu0
      %v3811 = vpop.f32.mrb[0].mxu0
      %v3812 = vadd.f32 0.0, %v3811
      %v3813 = vpop.f32.mrb[0].mxu0
      %3814 = vmatprep.mubr.bf16.mxu0 0
      %3815 = vmatmul.mubr.bf16.gmra.mrb[0].mxu0 %v3727
      %v3816 = vpop.f32.mrb[0].mxu0
      %v3817 = vadd.f32 0.0, %v3816
      %v3818 = vpop.f32.mrb[0].mxu0
      %v3819 = vpop.f32.mrb[0].mxu0
      %v3820 = vadd.f32 0.0, %v3819
      %v3821 = vpop.f32.mrb[0].mxu0
      %3822 = vmatprep.mubr.bf16.mxu0 0
      %3823 = vmatmul.mubr.bf16.gmra.mrb[0].mxu0 %v3730
      %v3824 = vpop.f32.mrb[0].mxu0
      %v3825 = vadd.f32 0.0, %v3824
      %v3826 = vpop.f32.mrb[0].mxu0
      %v3827 = vpop.f32.mrb[0].mxu0
      %v3828 = vadd.f32 0.0, %v3827
      %v3829 = vpop.f32.mrb[0].mxu0
      %3830 = vmatprep.mubr.bf16.mxu0 0
      %3831 = vmatmul.mubr.bf16.gmra.mrb[0].mxu0 %v3733
      %v3832 = vpop.f32.mrb[0].mxu0
      %v3833 = vadd.f32 0.0, %v3832
      %v3834 = vpop.f32.mrb[0].mxu0
      %v3835 = vpop.f32.mrb[0].mxu0
      %v3836 = vadd.f32 0.0, %v3835
      %v3837 = vpop.f32.mrb[0].mxu0
      %3838 = vmatprep.mubr.bf16.mxu0 0
      %3839 = vmatmul.mubr.bf16.gmra.mrb[0].mxu0 %v3736
      %v3840 = vpop.f32.mrb[0].mxu0
      %v3841 = vadd.f32 0.0, %v3840
      %v3842 = vpop.f32.mrb[0].mxu0
      %v3843 = vpop.f32.mrb[0].mxu0
      %v3844 = vadd.f32 0.0, %v3843
      %v3845 = vpop.f32.mrb[0].mxu0
      %3846 = vmatprep.mubr.bf16.mxu0 0
      %3847 = vmatmul.mubr.bf16.gmra.mrb[0].mxu0 %v3739
      %v3848 = vpop.f32.mrb[0].mxu0
      %v3849 = vadd.f32 0.0, %v3848
      %v3850 = vpop.f32.mrb[0].mxu0
      %v3851 = vpop.f32.mrb[0].mxu0
      %v3852 = vadd.f32 0.0, %v3851
      %v3853 = vpop.f32.mrb[0].mxu0
      %3854 = vmatprep.mubr.bf16.mxu0 0
      %3855 = vmatmul.mubr.bf16.gmra.mrb[0].mxu0 %v3742
      %v3856 = vpop.f32.mrb[0].mxu0
      %v3857 = vadd.f32 0.0, %v3856
      %v3858 = vpop.f32.mrb[0].mxu0
      %v3859 = vpop.f32.mrb[0].mxu0
      %v3860 = vadd.f32 0.0, %v3859
      %v3861 = vpop.f32.mrb[0].mxu0
      %3862 = vmatprep.mubr.bf16.mxu0 0
      %3863 = vmatmul.mubr.bf16.gmra.mrb[0].mxu0 %v3745
      %v3864 = vpop.f32.mrb[0].mxu0
      %v3865 = vadd.f32 0.0, %v3864
      %v3866 = vpop.f32.mrb[0].mxu0
      %v3867 = vpop.f32.mrb[0].mxu0
      %v3868 = vadd.f32 0.0, %v3867
      %v3869 = vpop.f32.mrb[0].mxu0
      %3870 = vmatprep.mubr.bf16.mxu0 0
      %3871 = vmatmul.mubr.bf16.gmra.mrb[0].mxu0 %v3748
      %v3872 = vpop.f32.mrb[0].mxu0
      %v3873 = vadd.f32 0.0, %v3872
      %v3874 = vpop.f32.mrb[0].mxu0
      %v3875 = vpop.f32.mrb[0].mxu0
      %v3876 = vadd.f32 0.0, %v3875
      %v3877 = vpop.f32.mrb[0].mxu0
      %3878 = vmatprep.mubr.bf16.mxu0 0
      %3879 = vmatmul.mubr.bf16.gmra.mrb[0].mxu0 %v3751
      %v3880 = vpop.f32.mrb[0].mxu0
      %v3881 = vadd.f32 0.0, %v3880
      %v3882 = vpop.f32.mrb[0].mxu0
      %v3883 = vpop.f32.mrb[0].mxu0
      %v3884 = vadd.f32 0.0, %v3883
      %v3885 = vpop.f32.mrb[0].mxu0
      %3886 = vmatprep.mubr.bf16.mxu0 0
      %3887 = vmatmul.mubr.bf16.gmra.mrb[0].mxu0 %v3754
      %v3888 = vpop.f32.mrb[0].mxu0
      %v3889 = vadd.f32 0.0, %v3888
      %v3890 = vpop.f32.mrb[0].mxu0
      %v3891 = vpop.f32.mrb[0].mxu0
      %v3892 = vadd.f32 0.0, %v3891
      %v3893 = vpop.f32.mrb[0].mxu0
      %3894 = vmatprep.mubr.bf16.mxu0 0
      %3895 = vmatmul.mubr.bf16.gmra.mrb[0].mxu0 %v3757
      %v3896 = vpop.f32.mrb[0].mxu0
      %v3897 = vadd.f32 0.0, %v3896
      %v3898 = vpop.f32.mrb[0].mxu0
      %v3899 = vpop.f32.mrb[0].mxu0
      %v3900 = vadd.f32 0.0, %v3899
      %v3901 = vpop.f32.mrb[0].mxu0
      %3902 = vmatprep.mubr.bf16.mxu0 0
      %3903 = vmatmul.mubr.bf16.gmra.mrb[0].mxu0 %v3760
      %v3904 = vpop.f32.mrb[0].mxu0
      %v3905 = vadd.f32 0.0, %v3904
      %v3906 = vpop.f32.mrb[0].mxu0
      %v3907 = vpop.f32.mrb[0].mxu0
      %v3908 = vadd.f32 0.0, %v3907
      %v3909 = vpop.f32.mrb[0].mxu0
      %3910 = vmatprep.mubr.bf16.mxu0 0
      %3911 = vmatmul.mubr.bf16.gmra.mrb[0].mxu0 %v3763
      %v3912 = vpop.f32.mrb[0].mxu0
      %v3913 = vadd.f32 0.0, %v3912
      %v3914 = vpop.f32.mrb[0].mxu0
      %v3915 = vpop.f32.mrb[0].mxu0
      %v3916 = vadd.f32 0.0, %v3915
      %v3917 = vpop.f32.mrb[0].mxu0
      %3918 = vmatprep.mubr.bf16.mxu0 0
      %3919 = vmatmul.mubr.bf16.gmra.mrb[0].mxu0 %v3766
      %v3920 = vpop.f32.mrb[0].mxu0
      %v3921 = vadd.f32 0.0, %v3920
      %v3922 = vpop.f32.mrb[0].mxu0
      %v3923 = vpop.f32.mrb[0].mxu0
      %v3924 = vadd.f32 0.0, %v3923
      %v3925 = vpop.f32.mrb[0].mxu0
      %3926 = vmatprep.mubr.bf16.mxu0 0
      %3927 = vmatmul.mubr.bf16.gmra.mrb[0].mxu0 %v3769
      %v3928 = vpop.f32.mrb[0].mxu0
      %v3929 = vadd.f32 0.0, %v3928
      %v3930 = vpop.f32.mrb[0].mxu0
      %v3931 = vpop.f32.mrb[0].mxu0
      %v3932 = vadd.f32 0.0, %v3931
      %v3933 = vpop.f32.mrb[0].mxu0
      %3934 = vdwg.mxu0
      %v3935 = vld [vmem:[#allocation4] sm:$0xff]
      %v3936 = vld [vmem:[#allocation4 + $0x8] sm:$0xff]
      %v3937 = vld [vmem:[#allocation4 + $0x10] sm:$0xff]
      %v3938 = vld [vmem:[#allocation4 + $0x18] sm:$0xff]
      %v3939 = vld [vmem:[#allocation4 + $0x20] sm:$0xff]
      %v3940 = vld [vmem:[#allocation4 + $0x28] sm:$0xff]
      %v3941 = vld [vmem:[#allocation4 + $0x30] sm:$0xff]
      %v3942 = vld [vmem:[#allocation4 + $0x38] sm:$0xff]
      %v3943 = vld [vmem:[#allocation4 + $0x40] sm:$0xff]
      %v3944 = vld [vmem:[#allocation4 + $0x48] sm:$0xff]
      %v3945 = vld [vmem:[#allocation4 + $0x50] sm:$0xff]
      %v3946 = vld [vmem:[#allocation4 + $0x58] sm:$0xff]
      %v3947 = vld [vmem:[#allocation4 + $0x60] sm:$0xff]
      %v3948 = vld [vmem:[#allocation4 + $0x68] sm:$0xff]
      %v3949 = vld [vmem:[#allocation4 + $0x70] sm:$0xff]
      %v3950 = vld [vmem:[#allocation4 + $0x78] sm:$0xff]
      %v3951 = vld [vmem:[#allocation4 + $0x80] sm:$0xff]
      %v3952 = vld [vmem:[#allocation4 + $0x88] sm:$0xff]
      %v3953 = vld [vmem:[#allocation4 + $0x90] sm:$0xff]
      %v3954 = vld [vmem:[#allocation4 + $0x98] sm:$0xff]
      %v3955 = vld [vmem:[#allocation4 + $0xa0] sm:$0xff]
      %v3956 = vld [vmem:[#allocation4 + $0xa8] sm:$0xff]
      %v3957 = vld [vmem:[#allocation4 + $0xb0] sm:$0xff]
      %v3958 = vld [vmem:[#allocation4 + $0xb8] sm:$0xff]
      %v3959 = vld [vmem:[#allocation4 + $0xc0] sm:$0xff]
      %v3960 = vld [vmem:[#allocation4 + $0xc8] sm:$0xff]
      %v3961 = vld [vmem:[#allocation4 + $0xd0] sm:$0xff]
      %v3962 = vld [vmem:[#allocation4 + $0xd8] sm:$0xff]
      %v3963 = vld [vmem:[#allocation4 + $0xe0] sm:$0xff]
      %v3964 = vld [vmem:[#allocation4 + $0xe8] sm:$0xff]
      %v3965 = vld [vmem:[#allocation4 + $0xf0] sm:$0xff]
      %v3966 = vld [vmem:[#allocation4 + $0xf8] sm:$0xff]
      %v3967 = vadd.f32 %v3935, %v3809
      %v3968 = vadd.f32 %v3936, %v3812
      %v3969 = vadd.f32 %v3937, %v3817
      %v3970 = vadd.f32 %v3938, %v3820
      %v3971 = vadd.f32 %v3939, %v3825
      %v3972 = vadd.f32 %v3940, %v3828
      %v3973 = vadd.f32 %v3941, %v3833
      %v3974 = vadd.f32 %v3942, %v3836
      %v3975 = vadd.f32 %v3943, %v3841
      %v3976 = vadd.f32 %v3944, %v3844
      %v3977 = vadd.f32 %v3945, %v3849
      %v3978 = vadd.f32 %v3946, %v3852
      %v3979 = vadd.f32 %v3947, %v3857
      %v3980 = vadd.f32 %v3948, %v3860
      %v3981 = vadd.f32 %v3949, %v3865
      %v3982 = vadd.f32 %v3950, %v3868
      %v3983 = vadd.f32 %v3951, %v3873
      %v3984 = vadd.f32 %v3952, %v3876
      %v3985 = vadd.f32 %v3953, %v3881
      %v3986 = vadd.f32 %v3954, %v3884
      %v3987 = vadd.f32 %v3955, %v3889
      %v3988 = vadd.f32 %v3956, %v3892
      %v3989 = vadd.f32 %v3957, %v3897
      %v3990 = vadd.f32 %v3958, %v3900
      %v3991 = vadd.f32 %v3959, %v3905
      %v3992 = vadd.f32 %v3960, %v3908
      %v3993 = vadd.f32 %v3961, %v3913
      %v3994 = vadd.f32 %v3962, %v3916
      %v3995 = vadd.f32 %v3963, %v3921
      %v3996 = vadd.f32 %v3964, %v3924
      %v3997 = vadd.f32 %v3965, %v3929
      %v3998 = vadd.f32 %v3966, %v3932
      %3999 = vst.msk [vmem:[#allocation4] sm:$0xff] %vm500, %v3967
      %4000 = vst.msk [vmem:[#allocation4 + $0x8] sm:$0xff] %vm500, %v3968
      %4001 = vst.msk [vmem:[#allocation4 + $0x10] sm:$0xff] %vm500, %v3969
      %4002 = vst.msk [vmem:[#allocation4 + $0x18] sm:$0xff] %vm500, %v3970
      %4003 = vst.msk [vmem:[#allocation4 + $0x20] sm:$0xff] %vm500, %v3971
      %4004 = vst.msk [vmem:[#allocation4 + $0x28] sm:$0xff] %vm500, %v3972
      %4005 = vst.msk [vmem:[#allocation4 + $0x30] sm:$0xff] %vm500, %v3973
      %4006 = vst.msk [vmem:[#allocation4 + $0x38] sm:$0xff] %vm500, %v3974
      %4007 = vst.msk [vmem:[#allocation4 + $0x40] sm:$0xff] %vm500, %v3975
      %4008 = vst.msk [vmem:[#allocation4 + $0x48] sm:$0xff] %vm500, %v3976
      %4009 = vst.msk [vmem:[#allocation4 + $0x50] sm:$0xff] %vm500, %v3977
      %4010 = vst.msk [vmem:[#allocation4 + $0x58] sm:$0xff] %vm500, %v3978
      %4011 = vst.msk [vmem:[#allocation4 + $0x60] sm:$0xff] %vm500, %v3979
      %4012 = vst.msk [vmem:[#allocation4 + $0x68] sm:$0xff] %vm500, %v3980
      %4013 = vst.msk [vmem:[#allocation4 + $0x70] sm:$0xff] %vm500, %v3981
      %4014 = vst.msk [vmem:[#allocation4 + $0x78] sm:$0xff] %vm500, %v3982
      %4015 = vst.msk [vmem:[#allocation4 + $0x80] sm:$0xff] %vm500, %v3983
      %4016 = vst.msk [vmem:[#allocation4 + $0x88] sm:$0xff] %vm500, %v3984
      %4017 = vst.msk [vmem:[#allocation4 + $0x90] sm:$0xff] %vm500, %v3985
      %4018 = vst.msk [vmem:[#allocation4 + $0x98] sm:$0xff] %vm500, %v3986
      %4019 = vst.msk [vmem:[#allocation4 + $0xa0] sm:$0xff] %vm500, %v3987
      %4020 = vst.msk [vmem:[#allocation4 + $0xa8] sm:$0xff] %vm500, %v3988
      %4021 = vst.msk [vmem:[#allocation4 + $0xb0] sm:$0xff] %vm500, %v3989
      %4022 = vst.msk [vmem:[#allocation4 + $0xb8] sm:$0xff] %vm500, %v3990
      %4023 = vst.msk [vmem:[#allocation4 + $0xc0] sm:$0xff] %vm500, %v3991
      %4024 = vst.msk [vmem:[#allocation4 + $0xc8] sm:$0xff] %vm500, %v3992
      %4025 = vst.msk [vmem:[#allocation4 + $0xd0] sm:$0xff] %vm500, %v3993
      %4026 = vst.msk [vmem:[#allocation4 + $0xd8] sm:$0xff] %vm500, %v3994
      %4027 = vst.msk [vmem:[#allocation4 + $0xe0] sm:$0xff] %vm500, %v3995
      %4028 = vst.msk [vmem:[#allocation4 + $0xe8] sm:$0xff] %vm500, %v3996
      %4029 = vst.msk [vmem:[#allocation4 + $0xf0] sm:$0xff] %vm500, %v3997
      %4030 = vst.msk [vmem:[#allocation4 + $0xf8] sm:$0xff] %vm500, %v3998
      %v4031 = vld [vmem:[#allocation4] sm:$0xff]
      %v4032 = vld [vmem:[#allocation4 + $0x8] sm:$0xff]
      %v4033 = vld [vmem:[#allocation4 + $0x10] sm:$0xff]
      %v4034 = vld [vmem:[#allocation4 + $0x18] sm:$0xff]
      %v4035 = vld [vmem:[#allocation4 + $0x20] sm:$0xff]
      %v4036 = vld [vmem:[#allocation4 + $0x28] sm:$0xff]
      %v4037 = vld [vmem:[#allocation4 + $0x30] sm:$0xff]
      %v4038 = vld [vmem:[#allocation4 + $0x38] sm:$0xff]
      %v4039 = vld [vmem:[#allocation4 + $0x40] sm:$0xff]
      %v4040 = vld [vmem:[#allocation4 + $0x48] sm:$0xff]
      %v4041 = vld [vmem:[#allocation4 + $0x50] sm:$0xff]
      %v4042 = vld [vmem:[#allocation4 + $0x58] sm:$0xff]
      %v4043 = vld [vmem:[#allocation4 + $0x60] sm:$0xff]
      %v4044 = vld [vmem:[#allocation4 + $0x68] sm:$0xff]
      %v4045 = vld [vmem:[#allocation4 + $0x70] sm:$0xff]
      %v4046 = vld [vmem:[#allocation4 + $0x78] sm:$0xff]
      %v4047 = vld [vmem:[#allocation4 + $0x80] sm:$0xff]
      %v4048 = vld [vmem:[#allocation4 + $0x88] sm:$0xff]
      %v4049 = vld [vmem:[#allocation4 + $0x90] sm:$0xff]
      %v4050 = vld [vmem:[#allocation4 + $0x98] sm:$0xff]
      %v4051 = vld [vmem:[#allocation4 + $0xa0] sm:$0xff]
      %v4052 = vld [vmem:[#allocation4 + $0xa8] sm:$0xff]
      %v4053 = vld [vmem:[#allocation4 + $0xb0] sm:$0xff]
      %v4054 = vld [vmem:[#allocation4 + $0xb8] sm:$0xff]
      %v4055 = vld [vmem:[#allocation4 + $0xc0] sm:$0xff]
      %v4056 = vld [vmem:[#allocation4 + $0xc8] sm:$0xff]
      %v4057 = vld [vmem:[#allocation4 + $0xd0] sm:$0xff]
      %v4058 = vld [vmem:[#allocation4 + $0xd8] sm:$0xff]
      %v4059 = vld [vmem:[#allocation4 + $0xe0] sm:$0xff]
      %v4060 = vld [vmem:[#allocation4 + $0xe8] sm:$0xff]
      %v4061 = vld [vmem:[#allocation4 + $0xf0] sm:$0xff]
      %v4062 = vld [vmem:[#allocation4 + $0xf8] sm:$0xff]
      %v4063 = vld [vmem:[%s372] sm:$0x1]
      %v4065 = vlaneseq
      %v4066 = vshrl.u32 %v4065, 7
      %v4067 = vsub.s32 0, %v4066
      %v4068 = vrot.slane %v4063, %v4067
      %v4070 = vmul.f32 %v4031, %v4068
      %v4071 = vmul.f32 %v4032, %v4068
      %v4072 = vmul.f32 %v4033, %v4068
      %v4073 = vmul.f32 %v4034, %v4068
      %v4074 = vmul.f32 %v4035, %v4068
      %v4075 = vmul.f32 %v4036, %v4068
      %v4076 = vmul.f32 %v4037, %v4068
      %v4077 = vmul.f32 %v4038, %v4068
      %v4078 = vmul.f32 %v4039, %v4068
      %v4079 = vmul.f32 %v4040, %v4068
      %v4080 = vmul.f32 %v4041, %v4068
      %v4081 = vmul.f32 %v4042, %v4068
      %v4082 = vmul.f32 %v4043, %v4068
      %v4083 = vmul.f32 %v4044, %v4068
      %v4084 = vmul.f32 %v4045, %v4068
      %v4085 = vmul.f32 %v4046, %v4068
      %v4086 = vmul.f32 %v4047, %v4068
      %v4087 = vmul.f32 %v4048, %v4068
      %v4088 = vmul.f32 %v4049, %v4068
      %v4089 = vmul.f32 %v4050, %v4068
      %v4090 = vmul.f32 %v4051, %v4068
      %v4091 = vmul.f32 %v4052, %v4068
      %v4092 = vmul.f32 %v4053, %v4068
      %v4093 = vmul.f32 %v4054, %v4068
      %v4094 = vmul.f32 %v4055, %v4068
      %v4095 = vmul.f32 %v4056, %v4068
      %v4096 = vmul.f32 %v4057, %v4068
      %v4097 = vmul.f32 %v4058, %v4068
      %v4098 = vmul.f32 %v4059, %v4068
      %v4099 = vmul.f32 %v4060, %v4068
      %v4100 = vmul.f32 %v4061, %v4068
      %v4101 = vmul.f32 %v4062, %v4068
      %v4102 = vld [vmem:[%s375] sm:$0x1]
      %v4104 = vlaneseq
      %v4105 = vshrl.u32 %v4104, 7
      %v4106 = vsub.s32 0, %v4105
      %v4107 = vrot.slane %v4102, %v4106
      %v4109 = vadd.f32 %v4070, %v4107
      %v4110 = vadd.f32 %v4071, %v4107
      %v4111 = vadd.f32 %v4072, %v4107
      %v4112 = vadd.f32 %v4073, %v4107
      %v4113 = vadd.f32 %v4074, %v4107
      %v4114 = vadd.f32 %v4075, %v4107
      %v4115 = vadd.f32 %v4076, %v4107
      %v4116 = vadd.f32 %v4077, %v4107
      %v4117 = vadd.f32 %v4078, %v4107
      %v4118 = vadd.f32 %v4079, %v4107
      %v4119 = vadd.f32 %v4080, %v4107
      %v4120 = vadd.f32 %v4081, %v4107
      %v4121 = vadd.f32 %v4082, %v4107
      %v4122 = vadd.f32 %v4083, %v4107
      %v4123 = vadd.f32 %v4084, %v4107
      %v4124 = vadd.f32 %v4085, %v4107
      %v4125 = vadd.f32 %v4086, %v4107
      %v4126 = vadd.f32 %v4087, %v4107
      %v4127 = vadd.f32 %v4088, %v4107
      %v4128 = vadd.f32 %v4089, %v4107
      %v4129 = vadd.f32 %v4090, %v4107
      %v4130 = vadd.f32 %v4091, %v4107
      %v4131 = vadd.f32 %v4092, %v4107
      %v4132 = vadd.f32 %v4093, %v4107
      %v4133 = vadd.f32 %v4094, %v4107
      %v4134 = vadd.f32 %v4095, %v4107
      %v4135 = vadd.f32 %v4096, %v4107
      %v4136 = vadd.f32 %v4097, %v4107
      %v4137 = vadd.f32 %v4098, %v4107
      %v4138 = vadd.f32 %v4099, %v4107
      %v4139 = vadd.f32 %v4100, %v4107
      %v4140 = vadd.f32 %v4101, %v4107
      %v4141 = vmax.f32 %v4109, 0.0
      %v4142 = vmax.f32 %v4110, 0.0
      %v4143 = vmax.f32 %v4111, 0.0
      %v4144 = vmax.f32 %v4112, 0.0
      %v4145 = vmax.f32 %v4113, 0.0
      %v4146 = vmax.f32 %v4114, 0.0
      %v4147 = vmax.f32 %v4115, 0.0
      %v4148 = vmax.f32 %v4116, 0.0
      %v4149 = vmax.f32 %v4117, 0.0
      %v4150 = vmax.f32 %v4118, 0.0
      %v4151 = vmax.f32 %v4119, 0.0
      %v4152 = vmax.f32 %v4120, 0.0
      %v4153 = vmax.f32 %v4121, 0.0
      %v4154 = vmax.f32 %v4122, 0.0
      %v4155 = vmax.f32 %v4123, 0.0
      %v4156 = vmax.f32 %v4124, 0.0
      %v4157 = vmax.f32 %v4125, 0.0
      %v4158 = vmax.f32 %v4126, 0.0
      %v4159 = vmax.f32 %v4127, 0.0
      %v4160 = vmax.f32 %v4128, 0.0
      %v4161 = vmax.f32 %v4129, 0.0
      %v4162 = vmax.f32 %v4130, 0.0
      %v4163 = vmax.f32 %v4131, 0.0
      %v4164 = vmax.f32 %v4132, 0.0
      %v4165 = vmax.f32 %v4133, 0.0
      %v4166 = vmax.f32 %v4134, 0.0
      %v4167 = vmax.f32 %v4135, 0.0
      %v4168 = vmax.f32 %v4136, 0.0
      %v4169 = vmax.f32 %v4137, 0.0
      %v4170 = vmax.f32 %v4138, 0.0
      %v4171 = vmax.f32 %v4139, 0.0
      %v4172 = vmax.f32 %v4140, 0.0
      %v4173 = vld [vmem:[#allocation2] sm:$0xff]
      %v4174 = vld [vmem:[#allocation2 + $0x8] sm:$0xff]
      %v4175 = vld [vmem:[#allocation2 + $0x10] sm:$0xff]
      %v4176 = vld [vmem:[#allocation2 + $0x18] sm:$0xff]
      %v4177 = vld [vmem:[#allocation2 + $0x20] sm:$0xff]
      %v4178 = vld [vmem:[#allocation2 + $0x28] sm:$0xff]
      %v4179 = vld [vmem:[#allocation2 + $0x30] sm:$0xff]
      %v4180 = vld [vmem:[#allocation2 + $0x38] sm:$0xff]
      %v4181 = vld [vmem:[#allocation2 + $0x40] sm:$0xff]
      %v4182 = vld [vmem:[#allocation2 + $0x48] sm:$0xff]
      %v4183 = vld [vmem:[#allocation2 + $0x50] sm:$0xff]
      %v4184 = vld [vmem:[#allocation2 + $0x58] sm:$0xff]
      %v4185 = vld [vmem:[#allocation2 + $0x60] sm:$0xff]
      %v4186 = vld [vmem:[#allocation2 + $0x68] sm:$0xff]
      %v4187 = vld [vmem:[#allocation2 + $0x70] sm:$0xff]
      %v4188 = vld [vmem:[#allocation2 + $0x78] sm:$0xff]
      %v4189 = vld [vmem:[#allocation2 + $0x80] sm:$0xff]
      %v4190 = vld [vmem:[#allocation2 + $0x88] sm:$0xff]
      %v4191 = vld [vmem:[#allocation2 + $0x90] sm:$0xff]
      %v4192 = vld [vmem:[#allocation2 + $0x98] sm:$0xff]
      %v4193 = vld [vmem:[#allocation2 + $0xa0] sm:$0xff]
      %v4194 = vld [vmem:[#allocation2 + $0xa8] sm:$0xff]
      %v4195 = vld [vmem:[#allocation2 + $0xb0] sm:$0xff]
      %v4196 = vld [vmem:[#allocation2 + $0xb8] sm:$0xff]
      %v4197 = vld [vmem:[#allocation2 + $0xc0] sm:$0xff]
      %v4198 = vld [vmem:[#allocation2 + $0xc8] sm:$0xff]
      %v4199 = vld [vmem:[#allocation2 + $0xd0] sm:$0xff]
      %v4200 = vld [vmem:[#allocation2 + $0xd8] sm:$0xff]
      %v4201 = vld [vmem:[#allocation2 + $0xe0] sm:$0xff]
      %v4202 = vld [vmem:[#allocation2 + $0xe8] sm:$0xff]
      %v4203 = vld [vmem:[#allocation2 + $0xf0] sm:$0xff]
      %v4204 = vld [vmem:[#allocation2 + $0xf8] sm:$0xff]
      %v4205 = vadd.f32 %v4173, %v4141
      %v4206 = vadd.f32 %v4174, %v4142
      %v4207 = vadd.f32 %v4175, %v4143
      %v4208 = vadd.f32 %v4176, %v4144
      %v4209 = vadd.f32 %v4177, %v4145
      %v4210 = vadd.f32 %v4178, %v4146
      %v4211 = vadd.f32 %v4179, %v4147
      %v4212 = vadd.f32 %v4180, %v4148
      %v4213 = vadd.f32 %v4181, %v4149
      %v4214 = vadd.f32 %v4182, %v4150
      %v4215 = vadd.f32 %v4183, %v4151
      %v4216 = vadd.f32 %v4184, %v4152
      %v4217 = vadd.f32 %v4185, %v4153
      %v4218 = vadd.f32 %v4186, %v4154
      %v4219 = vadd.f32 %v4187, %v4155
      %v4220 = vadd.f32 %v4188, %v4156
      %v4221 = vadd.f32 %v4189, %v4157
      %v4222 = vadd.f32 %v4190, %v4158
      %v4223 = vadd.f32 %v4191, %v4159
      %v4224 = vadd.f32 %v4192, %v4160
      %v4225 = vadd.f32 %v4193, %v4161
      %v4226 = vadd.f32 %v4194, %v4162
      %v4227 = vadd.f32 %v4195, %v4163
      %v4228 = vadd.f32 %v4196, %v4164
      %v4229 = vadd.f32 %v4197, %v4165
      %v4230 = vadd.f32 %v4198, %v4166
      %v4231 = vadd.f32 %v4199, %v4167
      %v4232 = vadd.f32 %v4200, %v4168
      %v4233 = vadd.f32 %v4201, %v4169
      %v4234 = vadd.f32 %v4202, %v4170
      %v4235 = vadd.f32 %v4203, %v4171
      %v4236 = vadd.f32 %v4204, %v4172
      %4237 = vst.msk [vmem:[#allocation2] sm:$0xff] %vm500, %v4205
      %4238 = vst.msk [vmem:[#allocation2 + $0x8] sm:$0xff] %vm500, %v4206
      %4239 = vst.msk [vmem:[#allocation2 + $0x10] sm:$0xff] %vm500, %v4207
      %4240 = vst.msk [vmem:[#allocation2 + $0x18] sm:$0xff] %vm500, %v4208
      %4241 = vst.msk [vmem:[#allocation2 + $0x20] sm:$0xff] %vm500, %v4209
      %4242 = vst.msk [vmem:[#allocation2 + $0x28] sm:$0xff] %vm500, %v4210
      %4243 = vst.msk [vmem:[#allocation2 + $0x30] sm:$0xff] %vm500, %v4211
      %4244 = vst.msk [vmem:[#allocation2 + $0x38] sm:$0xff] %vm500, %v4212
      %4245 = vst.msk [vmem:[#allocation2 + $0x40] sm:$0xff] %vm500, %v4213
      %4246 = vst.msk [vmem:[#allocation2 + $0x48] sm:$0xff] %vm500, %v4214
      %4247 = vst.msk [vmem:[#allocation2 + $0x50] sm:$0xff] %vm500, %v4215
      %4248 = vst.msk [vmem:[#allocation2 + $0x58] sm:$0xff] %vm500, %v4216
      %4249 = vst.msk [vmem:[#allocation2 + $0x60] sm:$0xff] %vm500, %v4217
      %4250 = vst.msk [vmem:[#allocation2 + $0x68] sm:$0xff] %vm500, %v4218
      %4251 = vst.msk [vmem:[#allocation2 + $0x70] sm:$0xff] %vm500, %v4219
      %4252 = vst.msk [vmem:[#allocation2 + $0x78] sm:$0xff] %vm500, %v4220
      %4253 = vst.msk [vmem:[#allocation2 + $0x80] sm:$0xff] %vm500, %v4221
      %4254 = vst.msk [vmem:[#allocation2 + $0x88] sm:$0xff] %vm500, %v4222
      %4255 = vst.msk [vmem:[#allocation2 + $0x90] sm:$0xff] %vm500, %v4223
      %4256 = vst.msk [vmem:[#allocation2 + $0x98] sm:$0xff] %vm500, %v4224
      %4257 = vst.msk [vmem:[#allocation2 + $0xa0] sm:$0xff] %vm500, %v4225
      %4258 = vst.msk [vmem:[#allocation2 + $0xa8] sm:$0xff] %vm500, %v4226
      %4259 = vst.msk [vmem:[#allocation2 + $0xb0] sm:$0xff] %vm500, %v4227
      %4260 = vst.msk [vmem:[#allocation2 + $0xb8] sm:$0xff] %vm500, %v4228
      %4261 = vst.msk [vmem:[#allocation2 + $0xc0] sm:$0xff] %vm500, %v4229
      %4262 = vst.msk [vmem:[#allocation2 + $0xc8] sm:$0xff] %vm500, %v4230
      %4263 = vst.msk [vmem:[#allocation2 + $0xd0] sm:$0xff] %vm500, %v4231
      %4264 = vst.msk [vmem:[#allocation2 + $0xd8] sm:$0xff] %vm500, %v4232
      %4265 = vst.msk [vmem:[#allocation2 + $0xe0] sm:$0xff] %vm500, %v4233
      %4266 = vst.msk [vmem:[#allocation2 + $0xe8] sm:$0xff] %vm500, %v4234
      %4267 = vst.msk [vmem:[#allocation2 + $0xf0] sm:$0xff] %vm500, %v4235
      %4268 = vst.msk [vmem:[#allocation2 + $0xf8] sm:$0xff] %vm500, %v4236
      %p4269 = scmp.eq.s32.totalorder %s23, 1
      // Predicated region
      $region53: #{tpu_custom_call.1} parent=47 // pred_check
        %p4270 = pneg %p4269
      $region54: #{tpu_custom_call.1} parent=47 // pred_check_branch
        %4272 = sbr.rel (%p4270) target = $region56
      $region55: #{tpu_custom_call.1} parent=47 // pred_region
        %4273 = vst.msk [vmem:[%s380] sm:$0xff] %vm500, %v4205
        %4274 = vst.msk [vmem:[%s380 + $0x8] sm:$0xff] %vm500, %v4206
        %4275 = vst.msk [vmem:[%s380 + $0x10] sm:$0xff] %vm500, %v4207
        %4276 = vst.msk [vmem:[%s380 + $0x18] sm:$0xff] %vm500, %v4208
        %4277 = vst.msk [vmem:[%s380 + $0x20] sm:$0xff] %vm500, %v4209
        %4278 = vst.msk [vmem:[%s380 + $0x28] sm:$0xff] %vm500, %v4210
        %4279 = vst.msk [vmem:[%s380 + $0x30] sm:$0xff] %vm500, %v4211
        %4280 = vst.msk [vmem:[%s380 + $0x38] sm:$0xff] %vm500, %v4212
        %4281 = vst.msk [vmem:[%s380 + $0x40] sm:$0xff] %vm500, %v4213
        %4282 = vst.msk [vmem:[%s380 + $0x48] sm:$0xff] %vm500, %v4214
        %4283 = vst.msk [vmem:[%s380 + $0x50] sm:$0xff] %vm500, %v4215
        %4284 = vst.msk [vmem:[%s380 + $0x58] sm:$0xff] %vm500, %v4216
        %4285 = vst.msk [vmem:[%s380 + $0x60] sm:$0xff] %vm500, %v4217
        %4286 = vst.msk [vmem:[%s380 + $0x68] sm:$0xff] %vm500, %v4218
        %4287 = vst.msk [vmem:[%s380 + $0x70] sm:$0xff] %vm500, %v4219
        %4288 = vst.msk [vmem:[%s380 + $0x78] sm:$0xff] %vm500, %v4220
        %4289 = vst.msk [vmem:[%s380 + $0x80] sm:$0xff] %vm500, %v4221
        %4290 = vst.msk [vmem:[%s380 + $0x88] sm:$0xff] %vm500, %v4222
        %4291 = vst.msk [vmem:[%s380 + $0x90] sm:$0xff] %vm500, %v4223
        %4292 = vst.msk [vmem:[%s380 + $0x98] sm:$0xff] %vm500, %v4224
        %4293 = vst.msk [vmem:[%s380 + $0xa0] sm:$0xff] %vm500, %v4225
        %4294 = vst.msk [vmem:[%s380 + $0xa8] sm:$0xff] %vm500, %v4226
        %4295 = vst.msk [vmem:[%s380 + $0xb0] sm:$0xff] %vm500, %v4227
        %4296 = vst.msk [vmem:[%s380 + $0xb8] sm:$0xff] %vm500, %v4228
        %4297 = vst.msk [vmem:[%s380 + $0xc0] sm:$0xff] %vm500, %v4229
        %4298 = vst.msk [vmem:[%s380 + $0xc8] sm:$0xff] %vm500, %v4230
        %4299 = vst.msk [vmem:[%s380 + $0xd0] sm:$0xff] %vm500, %v4231
        %4300 = vst.msk [vmem:[%s380 + $0xd8] sm:$0xff] %vm500, %v4232
        %4301 = vst.msk [vmem:[%s380 + $0xe0] sm:$0xff] %vm500, %v4233
        %4302 = vst.msk [vmem:[%s380 + $0xe8] sm:$0xff] %vm500, %v4234
        %4303 = vst.msk [vmem:[%s380 + $0xf0] sm:$0xff] %vm500, %v4235
        %4304 = vst.msk [vmem:[%s380 + $0xf8] sm:$0xff] %vm500, %v4236
      $region56: #{tpu_custom_call.1} parent=47 // pred_fallthru
        _
      %p4305 = scmp.lt.s32.totalorder %s22, 1
      %s4306 = scalar_select %p4305, %s22, 1
      %s4307 = smul.addr %s4306, 32
      %s4308 = smul.addr %s4307, 8
      %s4309 = scalar_lea.vmem %s7, %s4308
      // Predicated region
      $region57: #{tpu_custom_call.1} parent=47 // pred_check
        %p4310 = pneg %p230
      $region58: #{tpu_custom_call.1} parent=47 // pred_check_branch
        %4312 = sbr.rel (%p4310) target = $region60
      $region59: #{tpu_custom_call.1} parent=47 // pred_region
        _
      $region60: #{tpu_custom_call.1} parent=47 // pred_fallthru
        _
    $region48: #{tpu_custom_call.1} parent=5 // pred_fallthru
      _
    %p4313 = scmp.le.s32.totalorder 2, %s13
    // Predicated region
    $region61: #{tpu_custom_call.1} parent=5 // pred_check
      %p4314 = pneg %p4313
    $region62: #{tpu_custom_call.1} parent=5 // pred_check_branch
      %4316 = sbr.rel (%p4314) target = $region64
    $region63: #{tpu_custom_call.1} parent=5 // pred_region
      %s4317 = ssub.s32 %s13, 2
      // Predicated region
      $region65: #{tpu_custom_call.1} parent=63 // pred_check
        %p4318 = pneg %p236
      $region66: #{tpu_custom_call.1} parent=63 // pred_check_branch
        %4320 = sbr.rel (%p4318) target = $region68
      $region67: #{tpu_custom_call.1} parent=63 // pred_region
        %p4321 = scmp.lt.s32.totalorder %s24, 1
        %s4322 = scalar_select %p4321, %s24, 1
        %s4323 = smul.addr %s4322, 32
        %s4324 = smul.addr %s4323, 8
        %s4325 = scalar_lea.vmem %s7, %s4324
      $region68: #{tpu_custom_call.1} parent=63 // pred_fallthru
        _
    $region64: #{tpu_custom_call.1} parent=5 // pred_fallthru
      _
  $region6: #{tpu_custom_call.1} parent=0 // loop_footer
    %s17 = sadd.s32 1, %s13
  $region7: #{tpu_custom_call.1} parent=0 // loop_footer_branch
    %12 = sbr.rel target = $region3
  $region8: #{tpu_custom_call.1} parent=0 // loop_exit
    _

</llo_original>
